<compile_context>
chip_gen: v5e
topology: v5e:2x2
jax: 0.10.0
libtpu: 0.0.40
codegen_flags: <defaults>
</compile_context>

<pallas_src>
import jax
import jax.numpy as jnp
from jax import lax
from jax.experimental import pallas as pl
from jax.experimental.pallas import tpu as pltpu

# ---- module hyper-parameters (small synthetic sizes, x-transformers defaults kept) ----
N_EMBED   = 32                  # n_embed
N_LAYER   = 2                   # n_layer
N_HEADS   = 8                   # Attention default heads
DIM_HEAD  = 64                  # Attention default dim_head
INNER     = N_HEADS * DIM_HEAD  # 512
FF_INNER  = 4 * N_EMBED         # FeedForward mult=4
SCALE     = DIM_HEAD ** -0.5
EPS       = 1e-5                # nn.LayerNorm default eps
VOCAB     = 1000                # synthetic vocab (real module: 30522)
MAX_SEQ   = 77                  # max_seq_len


def _layer_norm(x, g, b):
    mu = jnp.mean(x, axis=-1, keepdims=True)
    var = jnp.mean(jnp.square(x - mu), axis=-1, keepdims=True)
    return (x - mu) * lax.rsqrt(var + EPS) * g + b


def bert_encoder_kernel(x_ref,
                        ln1g_ref, ln1b_ref, wqkv_ref, wo_ref, bo_ref,
                        ln2g_ref, ln2b_ref, w1_ref, b1_ref, w2_ref, b2_ref,
                        lnfg_ref, lnfb_ref,
                        out_ref):
    x = x_ref[0]                       # (S, D) f32 — one sequence per grid step

    # Static unroll is fine at depth 2; at real depth (12-32 layers) this would become a
    # grid axis / fori_loop with per-layer weight streaming to bound VMEM pressure.
    for l in range(N_LAYER):
        # ----------------- attention block (pre-norm + residual) -----------------
        h = _layer_norm(x, ln1g_ref[l:l + 1], ln1b_ref[l:l + 1])          # (S, D) f32
        # fused QKV: single lane-dense 2-D matmul, f32 accumulation
        qkv = jnp.dot(h.astype(jnp.bfloat16), wqkv_ref[l],
                      preferred_element_type=jnp.float32)                 # (S, 3*INNER)

        o_heads = []
        for hd in range(N_HEADS):
            base = hd * DIM_HEAD
            qh = qkv[:, base:base + DIM_HEAD].astype(jnp.bfloat16)              # (S, Dh)
            kh = qkv[:, INNER + base:INNER + base + DIM_HEAD].astype(jnp.bfloat16)
            vh = qkv[:, 2 * INNER + base:2 * INNER + base + DIM_HEAD].astype(jnp.bfloat16)
            # q @ k^T without an explicit transpose (NT contraction on last dims)
            s = lax.dot_general(qh, kh, (((1,), (1,)), ((), ())),
                                preferred_element_type=jnp.float32) * SCALE      # (S, S)
            s = s - jnp.max(s, axis=-1, keepdims=True)
            e = jnp.exp(s)
            p = e * pl.reciprocal(jnp.sum(e, axis=-1, keepdims=True), approx=True)
            o_heads.append(jnp.dot(p.astype(jnp.bfloat16), vh,
                                   preferred_element_type=jnp.float32))          # (S, Dh)
        # lane-concat per-head contexts -> one K=512 output-projection matmul
        o = jnp.concatenate(o_heads, axis=-1).astype(jnp.bfloat16)        # (S, INNER)
        y = jnp.dot(o, wo_ref[l], preferred_element_type=jnp.float32)     # (S, D)
        x = x + y + bo_ref[l:l + 1]

        # ----------------- feed-forward block (pre-norm + residual) --------------
        h = _layer_norm(x, ln2g_ref[l:l + 1], ln2b_ref[l:l + 1])
        f = jnp.dot(h.astype(jnp.bfloat16), w1_ref[l],
                    preferred_element_type=jnp.float32) + b1_ref[l:l + 1]  # (S, FF)
        f = 0.5 * f * (1.0 + lax.erf(f * (2.0 ** -0.5)))                   # exact GELU (erf)
        f = jnp.dot(f.astype(jnp.bfloat16), w2_ref[l],
                    preferred_element_type=jnp.float32) + b2_ref[l:l + 1]  # (S, D)
        x = x + f

    # final LayerNorm (TransformerWrapper.norm), return_embeddings=True
    out_ref[0] = _layer_norm(x, lnfg_ref[...], lnfb_ref[...])


def _const_spec(shape):
    nd = len(shape)
    return pl.BlockSpec(shape, lambda b, _nd=nd: (0,) * _nd)


def prepare_weights(p):
    """Rearrange the natural (PyTorch-layout-equivalent) params into the kernel layout.

    wq/wk/wv (L, D, H*Dh) -> fused (L, D, 3*H*Dh) bf16, columns [q | k | v], head-major
    within each 512-wide block (column h*Dh + d).  wo stays (L, H*Dh, D) bf16 so the
    concat(heads) layout feeds one K=512 matmul.
    """
    wqkv = jnp.concatenate([p['wq'], p['wk'], p['wv']], axis=-1).astype(jnp.bfloat16)
    return (p['ln1_g'], p['ln1_b'], wqkv, p['wo'].astype(jnp.bfloat16), p['bo'],
            p['ln2_g'], p['ln2_b'],
            p['w1'].astype(jnp.bfloat16), p['b1'],
            p['w2'].astype(jnp.bfloat16), p['b2'],
            p['lnf_g'], p['lnf_b'])


def bert_embedder_forward(tokens, params):
    """tokens: (B, S) int32 -> embeddings (B, S, N_EMBED) float32."""
    B, S = tokens.shape

    # TODO(synk): the HuggingFace BERT tokenizer (text -> token ids) has no Pallas
    # equivalent; integer token ids are fed directly (use_tokenizer=False path).
    # Embedding gather + positional add are plain-JAX glue; the encoder stack runs
    # in the kernel.
    x = (params['tok_emb'][tokens] + params['pos_emb'][:S][None, :, :]).astype(jnp.float32)

    weights = prepare_weights(params)
    operands = (x,) + weights

    in_specs = [pl.BlockSpec((1, S, N_EMBED), lambda b: (b, 0, 0))]
    in_specs += [_const_spec(w.shape) for w in weights]

    z = pl.pallas_call(
        bert_encoder_kernel,
        out_shape=jax.ShapeDtypeStruct((B, S, N_EMBED), jnp.float32),
        grid=(B,),                                       # one sequence per grid step
        in_specs=in_specs,
        out_specs=pl.BlockSpec((1, S, N_EMBED), lambda b: (b, 0, 0)),
        compiler_params=pltpu.CompilerParams(
            dimension_semantics=("parallel",),           # megacore sharding on v7x
            vmem_limit_bytes=32 * 1024 * 1024),
    )(*operands)
    return z


# ----------------------------- pure-JAX reference ---------------------------------
def reference_forward(tokens, params):
    B, S = tokens.shape
    x = (params['tok_emb'][tokens] + params['pos_emb'][:S][None, :, :]).astype(jnp.float32)

    def ln(t, g, b):
        mu = jnp.mean(t, -1, keepdims=True)
        var = jnp.mean(jnp.square(t - mu), -1, keepdims=True)
        return (t - mu) * lax.rsqrt(var + EPS) * g + b

    for l in range(N_LAYER):
        h = ln(x, params['ln1_g'][l], params['ln1_b'][l])
        q = h @ params['wq'][l]
        k = h @ params['wk'][l]
        v = h @ params['wv'][l]
        q = q.reshape(B, S, N_HEADS, DIM_HEAD).transpose(0, 2, 1, 3)
        k = k.reshape(B, S, N_HEADS, DIM_HEAD).transpose(0, 2, 1, 3)
        v = v.reshape(B, S, N_HEADS, DIM_HEAD).transpose(0, 2, 1, 3)
        a = jax.nn.softmax(jnp.einsum('bhqd,bhkd->bhqk', q, k) * SCALE, axis=-1)
        o = jnp.einsum('bhqk,bhkd->bhqd', a, v)
        o = o.transpose(0, 2, 1, 3).reshape(B, S, INNER)
        x = x + o @ params['wo'][l] + params['bo'][l]
        h = ln(x, params['ln2_g'][l], params['ln2_b'][l])
        f = h @ params['w1'][l] + params['b1'][l]
        f = 0.5 * f * (1.0 + lax.erf(f * (2.0 ** -0.5)))
        x = x + f @ params['w2'][l] + params['b2'][l]
    return ln(x, params['lnf_g'], params['lnf_b'])


def init_params(key):
    ks = jax.random.split(key, 16)

    def nrm(k, shape, std=0.02):
        return jax.random.normal(k, shape, dtype=jnp.float32) * std

    L = N_LAYER
    return {
        'tok_emb': nrm(ks[0], (VOCAB, N_EMBED)),
        'pos_emb': nrm(ks[1], (MAX_SEQ, N_EMBED)),
        'ln1_g': 1.0 + nrm(ks[10], (L, N_EMBED), 0.1),
        'ln1_b': nrm(ks[11], (L, N_EMBED)),
        'wq': nrm(ks[2], (L, N_EMBED, INNER)),
        'wk': nrm(ks[3], (L, N_EMBED, INNER)),
        'wv': nrm(ks[4], (L, N_EMBED, INNER)),
        'wo': nrm(ks[5], (L, INNER, N_EMBED)),
        'bo': nrm(ks[9], (L, N_EMBED)),
        'ln2_g': 1.0 + nrm(ks[12], (L, N_EMBED), 0.1),
        'ln2_b': nrm(ks[13], (L, N_EMBED)),
        'w1': nrm(ks[6], (L, N_EMBED, FF_INNER)),
        'b1': nrm(ks[7], (L, FF_INNER)),
        'w2': nrm(ks[8], (L, FF_INNER, N_EMBED)),
        'b2': nrm(ks[14], (L, N_EMBED)),
        'lnf_g': jnp.ones((1, N_EMBED), jnp.float32),
        'lnf_b': jnp.zeros((1, N_EMBED), jnp.float32),
    }


if __name__ == "__main__":
    key = jax.random.PRNGKey(0)
    k_param, k_tok = jax.random.split(key)
    params = init_params(k_param)

    B, S = 2, 8
    tokens = jax.random.randint(k_tok, (B, S), 0, VOCAB, dtype=jnp.int32)

    z = bert_embedder_forward(tokens, params)
    z = jax.block_until_ready(z)

    assert z.shape == (B, S, N_EMBED)
    assert bool(jnp.all(jnp.isfinite(z)))

    # loose tolerance: kernel uses bf16 matmul operands (f32 accumulation) and an
    # approximate reciprocal in softmax; structural bugs would show up as O(1) errors.
    z_ref = reference_forward(tokens, params)
    err = float(jnp.max(jnp.abs(z - z_ref)))
    assert err < 0.2, f"max abs diff vs reference too large: {err}"

    print("KERNEL_OK")
</pallas_src>

<mosaic_0001>
module attributes {stable_mosaic.version = 11 : i64} {
  func.func @bert_encoder_kernel(%arg0: i32, %arg1: memref<1x8x32xf32, #tpu.memory_space<vmem>>, %arg2: memref<2x32xf32, #tpu.memory_space<vmem>>, %arg3: memref<2x32xf32, #tpu.memory_space<vmem>>, %arg4: memref<2x32x1536xbf16, #tpu.memory_space<vmem>>, %arg5: memref<2x512x32xbf16, #tpu.memory_space<vmem>>, %arg6: memref<2x32xf32, #tpu.memory_space<vmem>>, %arg7: memref<2x32xf32, #tpu.memory_space<vmem>>, %arg8: memref<2x32xf32, #tpu.memory_space<vmem>>, %arg9: memref<2x32x128xbf16, #tpu.memory_space<vmem>>, %arg10: memref<2x128xf32, #tpu.memory_space<vmem>>, %arg11: memref<2x128x32xbf16, #tpu.memory_space<vmem>>, %arg12: memref<2x32xf32, #tpu.memory_space<vmem>>, %arg13: memref<1x32xf32, #tpu.memory_space<vmem>>, %arg14: memref<1x32xf32, #tpu.memory_space<vmem>>, %arg15: memref<1x8x32xf32, #tpu.memory_space<vmem>>) attributes {dimension_semantics = [#tpu.dimension_semantics<parallel>], iteration_bounds = array<i64: 2>, scalar_prefetch = 0 : i64, scratch_operands = 0 : i64, tpu.core_type = #tpu.core_type<tc>, window_params = [{transform_indices = @transform_0, window_bounds = array<i64: 1, 8, 32>}, {pipeline_mode = #tpu.pipeline_mode<synchronous>, transform_indices = @transform_1, window_bounds = array<i64: 2, 32>}, {pipeline_mode = #tpu.pipeline_mode<synchronous>, transform_indices = @transform_2, window_bounds = array<i64: 2, 32>}, {pipeline_mode = #tpu.pipeline_mode<synchronous>, transform_indices = @transform_3, window_bounds = array<i64: 2, 32, 1536>}, {pipeline_mode = #tpu.pipeline_mode<synchronous>, transform_indices = @transform_4, window_bounds = array<i64: 2, 512, 32>}, {pipeline_mode = #tpu.pipeline_mode<synchronous>, transform_indices = @transform_5, window_bounds = array<i64: 2, 32>}, {pipeline_mode = #tpu.pipeline_mode<synchronous>, transform_indices = @transform_6, window_bounds = array<i64: 2, 32>}, {pipeline_mode = #tpu.pipeline_mode<synchronous>, transform_indices = @transform_7, window_bounds = array<i64: 2, 32>}, {pipeline_mode = #tpu.pipeline_mode<synchronous>, transform_indices = @transform_8, window_bounds = array<i64: 2, 32, 128>}, {pipeline_mode = #tpu.pipeline_mode<synchronous>, transform_indices = @transform_9, window_bounds = array<i64: 2, 128>}, {pipeline_mode = #tpu.pipeline_mode<synchronous>, transform_indices = @transform_10, window_bounds = array<i64: 2, 128, 32>}, {pipeline_mode = #tpu.pipeline_mode<synchronous>, transform_indices = @transform_11, window_bounds = array<i64: 2, 32>}, {pipeline_mode = #tpu.pipeline_mode<synchronous>, transform_indices = @transform_12, window_bounds = array<i64: 1, 32>}, {pipeline_mode = #tpu.pipeline_mode<synchronous>, transform_indices = @transform_13, window_bounds = array<i64: 1, 32>}, {transform_indices = @transform_14, window_bounds = array<i64: 1, 8, 32>}]} {
    %c0 = arith.constant 0 : index
    %c0_0 = arith.constant 0 : index
    %c0_1 = arith.constant 0 : index
    %0 = vector.load %arg1[%c0, %c0_0, %c0_1] : memref<1x8x32xf32, #tpu.memory_space<vmem>>, vector<1x8x32xf32>
    %1 = vector.shape_cast %0 : vector<1x8x32xf32> to vector<8x32xf32>
    %c0_2 = arith.constant 0 : index
    %c0_3 = arith.constant 0 : index
    %2 = vector.load %arg2[%c0_2, %c0_3] : memref<2x32xf32, #tpu.memory_space<vmem>>, vector<1x32xf32>
    %c0_4 = arith.constant 0 : index
    %c0_5 = arith.constant 0 : index
    %3 = vector.load %arg3[%c0_4, %c0_5] : memref<2x32xf32, #tpu.memory_space<vmem>>, vector<1x32xf32>
    %cst = arith.constant dense<0.000000e+00> : vector<8xf32>
    %4 = vector.multi_reduction <add>, %1, %cst [1] : vector<8x32xf32> to vector<8xf32>
    %5 = vector.shape_cast %4 : vector<8xf32> to vector<8x1xf32>
    %cst_6 = arith.constant 3.200000e+01 : f32
    %6 = vector.broadcast %cst_6 : f32 to vector<8x1xf32>
    %7 = arith.divf %5, %6 : vector<8x1xf32>
    %8 = vector.broadcast %7 : vector<8x1xf32> to vector<8x32xf32>
    %9 = arith.subf %1, %8 : vector<8x32xf32>
    %10 = arith.mulf %9, %9 : vector<8x32xf32>
    %cst_7 = arith.constant dense<0.000000e+00> : vector<8xf32>
    %11 = vector.multi_reduction <add>, %10, %cst_7 [1] : vector<8x32xf32> to vector<8xf32>
    %12 = vector.shape_cast %11 : vector<8xf32> to vector<8x1xf32>
    %cst_8 = arith.constant 3.200000e+01 : f32
    %13 = vector.broadcast %cst_8 : f32 to vector<8x1xf32>
    %14 = arith.divf %12, %13 : vector<8x1xf32>
    %15 = vector.broadcast %7 : vector<8x1xf32> to vector<8x32xf32>
    %16 = arith.subf %1, %15 : vector<8x32xf32>
    %cst_9 = arith.constant 9.99999974E-6 : f32
    %17 = vector.broadcast %cst_9 : f32 to vector<8x1xf32>
    %18 = arith.addf %14, %17 : vector<8x1xf32>
    %19 = math.rsqrt %18 : vector<8x1xf32>
    %20 = vector.broadcast %19 : vector<8x1xf32> to vector<8x32xf32>
    %21 = arith.mulf %16, %20 : vector<8x32xf32>
    %22 = vector.broadcast %2 : vector<1x32xf32> to vector<8x32xf32>
    %23 = arith.mulf %21, %22 : vector<8x32xf32>
    %24 = vector.broadcast %3 : vector<1x32xf32> to vector<8x32xf32>
    %25 = arith.addf %23, %24 : vector<8x32xf32>
    %26 = arith.truncf %25 : vector<8x32xf32> to vector<8x32xbf16>
    %c0_10 = arith.constant 0 : index
    %c0_11 = arith.constant 0 : index
    %c0_12 = arith.constant 0 : index
    %27 = vector.load %arg4[%c0_10, %c0_11, %c0_12] : memref<2x32x1536xbf16, #tpu.memory_space<vmem>>, vector<1x32x1536xbf16>
    %28 = vector.shape_cast %27 : vector<1x32x1536xbf16> to vector<32x1536xbf16>
    %cst_13 = arith.constant dense<0.000000e+00> : vector<8x1536xf32>
    %29 = tpu.matmul %26, %28, %cst_13 {dimension_numbers = #tpu.dot_dimension_numbers<[1], [0], [0], [1], [0, 0, 1, 1], [], []>} : vector<8x32xbf16>, vector<32x1536xbf16>, vector<8x1536xf32> -> vector<8x1536xf32>
    %30 = vector.extract_strided_slice %29 {offsets = [0, 0], sizes = [8, 64], strides = [1, 1]} : vector<8x1536xf32> to vector<8x64xf32>
    %31 = arith.truncf %30 : vector<8x64xf32> to vector<8x64xbf16>
    %32 = vector.extract_strided_slice %29 {offsets = [0, 512], sizes = [8, 64], strides = [1, 1]} : vector<8x1536xf32> to vector<8x64xf32>
    %33 = arith.truncf %32 : vector<8x64xf32> to vector<8x64xbf16>
    %34 = vector.extract_strided_slice %29 {offsets = [0, 1024], sizes = [8, 64], strides = [1, 1]} : vector<8x1536xf32> to vector<8x64xf32>
    %35 = arith.truncf %34 : vector<8x64xf32> to vector<8x64xbf16>
    %cst_14 = arith.constant dense<0.000000e+00> : vector<8x8xf32>
    %36 = tpu.matmul %31, %33, %cst_14 {dimension_numbers = #tpu.dot_dimension_numbers<[1], [1], [0], [0], [0, 0, 1, 0], [], []>} : vector<8x64xbf16>, vector<8x64xbf16>, vector<8x8xf32> -> vector<8x8xf32>
    %cst_15 = arith.constant 1.250000e-01 : f32
    %37 = vector.broadcast %cst_15 : f32 to vector<8x8xf32>
    %38 = arith.mulf %36, %37 : vector<8x8xf32>
    %cst_16 = arith.constant dense<0xFF800000> : vector<8xf32>
    %39 = vector.multi_reduction <maximumf>, %38, %cst_16 [1] : vector<8x8xf32> to vector<8xf32>
    %40 = vector.shape_cast %39 : vector<8xf32> to vector<8x1xf32>
    %41 = vector.broadcast %40 : vector<8x1xf32> to vector<8x8xf32>
    %42 = arith.subf %38, %41 : vector<8x8xf32>
    %43 = math.exp %42 : vector<8x8xf32>
    %cst_17 = arith.constant dense<0.000000e+00> : vector<8xf32>
    %44 = vector.multi_reduction <add>, %43, %cst_17 [1] : vector<8x8xf32> to vector<8xf32>
    %45 = vector.shape_cast %44 : vector<8xf32> to vector<8x1xf32>
    %46 = tpu.reciprocal %45 {approx = true} : vector<8x1xf32> -> vector<8x1xf32>
    %47 = vector.broadcast %46 : vector<8x1xf32> to vector<8x8xf32>
    %48 = arith.mulf %43, %47 : vector<8x8xf32>
    %49 = arith.truncf %48 : vector<8x8xf32> to vector<8x8xbf16>
    %cst_18 = arith.constant dense<0.000000e+00> : vector<8x64xf32>
    %50 = tpu.matmul %49, %35, %cst_18 {dimension_numbers = #tpu.dot_dimension_numbers<[1], [0], [0], [1], [0, 0, 1, 1], [], []>} : vector<8x8xbf16>, vector<8x64xbf16>, vector<8x64xf32> -> vector<8x64xf32>
    %51 = vector.extract_strided_slice %29 {offsets = [0, 64], sizes = [8, 64], strides = [1, 1]} : vector<8x1536xf32> to vector<8x64xf32>
    %52 = arith.truncf %51 : vector<8x64xf32> to vector<8x64xbf16>
    %53 = vector.extract_strided_slice %29 {offsets = [0, 576], sizes = [8, 64], strides = [1, 1]} : vector<8x1536xf32> to vector<8x64xf32>
    %54 = arith.truncf %53 : vector<8x64xf32> to vector<8x64xbf16>
    %55 = vector.extract_strided_slice %29 {offsets = [0, 1088], sizes = [8, 64], strides = [1, 1]} : vector<8x1536xf32> to vector<8x64xf32>
    %56 = arith.truncf %55 : vector<8x64xf32> to vector<8x64xbf16>
    %cst_19 = arith.constant dense<0.000000e+00> : vector<8x8xf32>
    %57 = tpu.matmul %52, %54, %cst_19 {dimension_numbers = #tpu.dot_dimension_numbers<[1], [1], [0], [0], [0, 0, 1, 0], [], []>} : vector<8x64xbf16>, vector<8x64xbf16>, vector<8x8xf32> -> vector<8x8xf32>
    %cst_20 = arith.constant 1.250000e-01 : f32
    %58 = vector.broadcast %cst_20 : f32 to vector<8x8xf32>
    %59 = arith.mulf %57, %58 : vector<8x8xf32>
    %cst_21 = arith.constant dense<0xFF800000> : vector<8xf32>
    %60 = vector.multi_reduction <maximumf>, %59, %cst_21 [1] : vector<8x8xf32> to vector<8xf32>
    %61 = vector.shape_cast %60 : vector<8xf32> to vector<8x1xf32>
    %62 = vector.broadcast %61 : vector<8x1xf32> to vector<8x8xf32>
    %63 = arith.subf %59, %62 : vector<8x8xf32>
    %64 = math.exp %63 : vector<8x8xf32>
    %cst_22 = arith.constant dense<0.000000e+00> : vector<8xf32>
    %65 = vector.multi_reduction <add>, %64, %cst_22 [1] : vector<8x8xf32> to vector<8xf32>
    %66 = vector.shape_cast %65 : vector<8xf32> to vector<8x1xf32>
    %67 = tpu.reciprocal %66 {approx = true} : vector<8x1xf32> -> vector<8x1xf32>
    %68 = vector.broadcast %67 : vector<8x1xf32> to vector<8x8xf32>
    %69 = arith.mulf %64, %68 : vector<8x8xf32>
    %70 = arith.truncf %69 : vector<8x8xf32> to vector<8x8xbf16>
    %cst_23 = arith.constant dense<0.000000e+00> : vector<8x64xf32>
    %71 = tpu.matmul %70, %56, %cst_23 {dimension_numbers = #tpu.dot_dimension_numbers<[1], [0], [0], [1], [0, 0, 1, 1], [], []>} : vector<8x8xbf16>, vector<8x64xbf16>, vector<8x64xf32> -> vector<8x64xf32>
    %72 = vector.extract_strided_slice %29 {offsets = [0, 128], sizes = [8, 64], strides = [1, 1]} : vector<8x1536xf32> to vector<8x64xf32>
    %73 = arith.truncf %72 : vector<8x64xf32> to vector<8x64xbf16>
    %74 = vector.extract_strided_slice %29 {offsets = [0, 640], sizes = [8, 64], strides = [1, 1]} : vector<8x1536xf32> to vector<8x64xf32>
    %75 = arith.truncf %74 : vector<8x64xf32> to vector<8x64xbf16>
    %76 = vector.extract_strided_slice %29 {offsets = [0, 1152], sizes = [8, 64], strides = [1, 1]} : vector<8x1536xf32> to vector<8x64xf32>
    %77 = arith.truncf %76 : vector<8x64xf32> to vector<8x64xbf16>
    %cst_24 = arith.constant dense<0.000000e+00> : vector<8x8xf32>
    %78 = tpu.matmul %73, %75, %cst_24 {dimension_numbers = #tpu.dot_dimension_numbers<[1], [1], [0], [0], [0, 0, 1, 0], [], []>} : vector<8x64xbf16>, vector<8x64xbf16>, vector<8x8xf32> -> vector<8x8xf32>
    %cst_25 = arith.constant 1.250000e-01 : f32
    %79 = vector.broadcast %cst_25 : f32 to vector<8x8xf32>
    %80 = arith.mulf %78, %79 : vector<8x8xf32>
    %cst_26 = arith.constant dense<0xFF800000> : vector<8xf32>
    %81 = vector.multi_reduction <maximumf>, %80, %cst_26 [1] : vector<8x8xf32> to vector<8xf32>
    %82 = vector.shape_cast %81 : vector<8xf32> to vector<8x1xf32>
    %83 = vector.broadcast %82 : vector<8x1xf32> to vector<8x8xf32>
    %84 = arith.subf %80, %83 : vector<8x8xf32>
    %85 = math.exp %84 : vector<8x8xf32>
    %cst_27 = arith.constant dense<0.000000e+00> : vector<8xf32>
    %86 = vector.multi_reduction <add>, %85, %cst_27 [1] : vector<8x8xf32> to vector<8xf32>
    %87 = vector.shape_cast %86 : vector<8xf32> to vector<8x1xf32>
    %88 = tpu.reciprocal %87 {approx = true} : vector<8x1xf32> -> vector<8x1xf32>
    %89 = vector.broadcast %88 : vector<8x1xf32> to vector<8x8xf32>
    %90 = arith.mulf %85, %89 : vector<8x8xf32>
    %91 = arith.truncf %90 : vector<8x8xf32> to vector<8x8xbf16>
    %cst_28 = arith.constant dense<0.000000e+00> : vector<8x64xf32>
    %92 = tpu.matmul %91, %77, %cst_28 {dimension_numbers = #tpu.dot_dimension_numbers<[1], [0], [0], [1], [0, 0, 1, 1], [], []>} : vector<8x8xbf16>, vector<8x64xbf16>, vector<8x64xf32> -> vector<8x64xf32>
    %93 = vector.extract_strided_slice %29 {offsets = [0, 192], sizes = [8, 64], strides = [1, 1]} : vector<8x1536xf32> to vector<8x64xf32>
    %94 = arith.truncf %93 : vector<8x64xf32> to vector<8x64xbf16>
    %95 = vector.extract_strided_slice %29 {offsets = [0, 704], sizes = [8, 64], strides = [1, 1]} : vector<8x1536xf32> to vector<8x64xf32>
    %96 = arith.truncf %95 : vector<8x64xf32> to vector<8x64xbf16>
    %97 = vector.extract_strided_slice %29 {offsets = [0, 1216], sizes = [8, 64], strides = [1, 1]} : vector<8x1536xf32> to vector<8x64xf32>
    %98 = arith.truncf %97 : vector<8x64xf32> to vector<8x64xbf16>
    %cst_29 = arith.constant dense<0.000000e+00> : vector<8x8xf32>
    %99 = tpu.matmul %94, %96, %cst_29 {dimension_numbers = #tpu.dot_dimension_numbers<[1], [1], [0], [0], [0, 0, 1, 0], [], []>} : vector<8x64xbf16>, vector<8x64xbf16>, vector<8x8xf32> -> vector<8x8xf32>
    %cst_30 = arith.constant 1.250000e-01 : f32
    %100 = vector.broadcast %cst_30 : f32 to vector<8x8xf32>
    %101 = arith.mulf %99, %100 : vector<8x8xf32>
    %cst_31 = arith.constant dense<0xFF800000> : vector<8xf32>
    %102 = vector.multi_reduction <maximumf>, %101, %cst_31 [1] : vector<8x8xf32> to vector<8xf32>
    %103 = vector.shape_cast %102 : vector<8xf32> to vector<8x1xf32>
    %104 = vector.broadcast %103 : vector<8x1xf32> to vector<8x8xf32>
    %105 = arith.subf %101, %104 : vector<8x8xf32>
    %106 = math.exp %105 : vector<8x8xf32>
    %cst_32 = arith.constant dense<0.000000e+00> : vector<8xf32>
    %107 = vector.multi_reduction <add>, %106, %cst_32 [1] : vector<8x8xf32> to vector<8xf32>
    %108 = vector.shape_cast %107 : vector<8xf32> to vector<8x1xf32>
    %109 = tpu.reciprocal %108 {approx = true} : vector<8x1xf32> -> vector<8x1xf32>
    %110 = vector.broadcast %109 : vector<8x1xf32> to vector<8x8xf32>
    %111 = arith.mulf %106, %110 : vector<8x8xf32>
    %112 = arith.truncf %111 : vector<8x8xf32> to vector<8x8xbf16>
    %cst_33 = arith.constant dense<0.000000e+00> : vector<8x64xf32>
    %113 = tpu.matmul %112, %98, %cst_33 {dimension_numbers = #tpu.dot_dimension_numbers<[1], [0], [0], [1], [0, 0, 1, 1], [], []>} : vector<8x8xbf16>, vector<8x64xbf16>, vector<8x64xf32> -> vector<8x64xf32>
    %114 = vector.extract_strided_slice %29 {offsets = [0, 256], sizes = [8, 64], strides = [1, 1]} : vector<8x1536xf32> to vector<8x64xf32>
    %115 = arith.truncf %114 : vector<8x64xf32> to vector<8x64xbf16>
    %116 = vector.extract_strided_slice %29 {offsets = [0, 768], sizes = [8, 64], strides = [1, 1]} : vector<8x1536xf32> to vector<8x64xf32>
    %117 = arith.truncf %116 : vector<8x64xf32> to vector<8x64xbf16>
    %118 = vector.extract_strided_slice %29 {offsets = [0, 1280], sizes = [8, 64], strides = [1, 1]} : vector<8x1536xf32> to vector<8x64xf32>
    %119 = arith.truncf %118 : vector<8x64xf32> to vector<8x64xbf16>
    %cst_34 = arith.constant dense<0.000000e+00> : vector<8x8xf32>
    %120 = tpu.matmul %115, %117, %cst_34 {dimension_numbers = #tpu.dot_dimension_numbers<[1], [1], [0], [0], [0, 0, 1, 0], [], []>} : vector<8x64xbf16>, vector<8x64xbf16>, vector<8x8xf32> -> vector<8x8xf32>
    %cst_35 = arith.constant 1.250000e-01 : f32
    %121 = vector.broadcast %cst_35 : f32 to vector<8x8xf32>
    %122 = arith.mulf %120, %121 : vector<8x8xf32>
    %cst_36 = arith.constant dense<0xFF800000> : vector<8xf32>
    %123 = vector.multi_reduction <maximumf>, %122, %cst_36 [1] : vector<8x8xf32> to vector<8xf32>
    %124 = vector.shape_cast %123 : vector<8xf32> to vector<8x1xf32>
    %125 = vector.broadcast %124 : vector<8x1xf32> to vector<8x8xf32>
    %126 = arith.subf %122, %125 : vector<8x8xf32>
    %127 = math.exp %126 : vector<8x8xf32>
    %cst_37 = arith.constant dense<0.000000e+00> : vector<8xf32>
    %128 = vector.multi_reduction <add>, %127, %cst_37 [1] : vector<8x8xf32> to vector<8xf32>
    %129 = vector.shape_cast %128 : vector<8xf32> to vector<8x1xf32>
    %130 = tpu.reciprocal %129 {approx = true} : vector<8x1xf32> -> vector<8x1xf32>
    %131 = vector.broadcast %130 : vector<8x1xf32> to vector<8x8xf32>
    %132 = arith.mulf %127, %131 : vector<8x8xf32>
    %133 = arith.truncf %132 : vector<8x8xf32> to vector<8x8xbf16>
    %cst_38 = arith.constant dense<0.000000e+00> : vector<8x64xf32>
    %134 = tpu.matmul %133, %119, %cst_38 {dimension_numbers = #tpu.dot_dimension_numbers<[1], [0], [0], [1], [0, 0, 1, 1], [], []>} : vector<8x8xbf16>, vector<8x64xbf16>, vector<8x64xf32> -> vector<8x64xf32>
    %135 = vector.extract_strided_slice %29 {offsets = [0, 320], sizes = [8, 64], strides = [1, 1]} : vector<8x1536xf32> to vector<8x64xf32>
    %136 = arith.truncf %135 : vector<8x64xf32> to vector<8x64xbf16>
    %137 = vector.extract_strided_slice %29 {offsets = [0, 832], sizes = [8, 64], strides = [1, 1]} : vector<8x1536xf32> to vector<8x64xf32>
    %138 = arith.truncf %137 : vector<8x64xf32> to vector<8x64xbf16>
    %139 = vector.extract_strided_slice %29 {offsets = [0, 1344], sizes = [8, 64], strides = [1, 1]} : vector<8x1536xf32> to vector<8x64xf32>
    %140 = arith.truncf %139 : vector<8x64xf32> to vector<8x64xbf16>
    %cst_39 = arith.constant dense<0.000000e+00> : vector<8x8xf32>
    %141 = tpu.matmul %136, %138, %cst_39 {dimension_numbers = #tpu.dot_dimension_numbers<[1], [1], [0], [0], [0, 0, 1, 0], [], []>} : vector<8x64xbf16>, vector<8x64xbf16>, vector<8x8xf32> -> vector<8x8xf32>
    %cst_40 = arith.constant 1.250000e-01 : f32
    %142 = vector.broadcast %cst_40 : f32 to vector<8x8xf32>
    %143 = arith.mulf %141, %142 : vector<8x8xf32>
    %cst_41 = arith.constant dense<0xFF800000> : vector<8xf32>
    %144 = vector.multi_reduction <maximumf>, %143, %cst_41 [1] : vector<8x8xf32> to vector<8xf32>
    %145 = vector.shape_cast %144 : vector<8xf32> to vector<8x1xf32>
    %146 = vector.broadcast %145 : vector<8x1xf32> to vector<8x8xf32>
    %147 = arith.subf %143, %146 : vector<8x8xf32>
    %148 = math.exp %147 : vector<8x8xf32>
    %cst_42 = arith.constant dense<0.000000e+00> : vector<8xf32>
    %149 = vector.multi_reduction <add>, %148, %cst_42 [1] : vector<8x8xf32> to vector<8xf32>
    %150 = vector.shape_cast %149 : vector<8xf32> to vector<8x1xf32>
    %151 = tpu.reciprocal %150 {approx = true} : vector<8x1xf32> -> vector<8x1xf32>
    %152 = vector.broadcast %151 : vector<8x1xf32> to vector<8x8xf32>
    %153 = arith.mulf %148, %152 : vector<8x8xf32>
    %154 = arith.truncf %153 : vector<8x8xf32> to vector<8x8xbf16>
    %cst_43 = arith.constant dense<0.000000e+00> : vector<8x64xf32>
    %155 = tpu.matmul %154, %140, %cst_43 {dimension_numbers = #tpu.dot_dimension_numbers<[1], [0], [0], [1], [0, 0, 1, 1], [], []>} : vector<8x8xbf16>, vector<8x64xbf16>, vector<8x64xf32> -> vector<8x64xf32>
    %156 = vector.extract_strided_slice %29 {offsets = [0, 384], sizes = [8, 64], strides = [1, 1]} : vector<8x1536xf32> to vector<8x64xf32>
    %157 = arith.truncf %156 : vector<8x64xf32> to vector<8x64xbf16>
    %158 = vector.extract_strided_slice %29 {offsets = [0, 896], sizes = [8, 64], strides = [1, 1]} : vector<8x1536xf32> to vector<8x64xf32>
    %159 = arith.truncf %158 : vector<8x64xf32> to vector<8x64xbf16>
    %160 = vector.extract_strided_slice %29 {offsets = [0, 1408], sizes = [8, 64], strides = [1, 1]} : vector<8x1536xf32> to vector<8x64xf32>
    %161 = arith.truncf %160 : vector<8x64xf32> to vector<8x64xbf16>
    %cst_44 = arith.constant dense<0.000000e+00> : vector<8x8xf32>
    %162 = tpu.matmul %157, %159, %cst_44 {dimension_numbers = #tpu.dot_dimension_numbers<[1], [1], [0], [0], [0, 0, 1, 0], [], []>} : vector<8x64xbf16>, vector<8x64xbf16>, vector<8x8xf32> -> vector<8x8xf32>
    %cst_45 = arith.constant 1.250000e-01 : f32
    %163 = vector.broadcast %cst_45 : f32 to vector<8x8xf32>
    %164 = arith.mulf %162, %163 : vector<8x8xf32>
    %cst_46 = arith.constant dense<0xFF800000> : vector<8xf32>
    %165 = vector.multi_reduction <maximumf>, %164, %cst_46 [1] : vector<8x8xf32> to vector<8xf32>
    %166 = vector.shape_cast %165 : vector<8xf32> to vector<8x1xf32>
    %167 = vector.broadcast %166 : vector<8x1xf32> to vector<8x8xf32>
    %168 = arith.subf %164, %167 : vector<8x8xf32>
    %169 = math.exp %168 : vector<8x8xf32>
    %cst_47 = arith.constant dense<0.000000e+00> : vector<8xf32>
    %170 = vector.multi_reduction <add>, %169, %cst_47 [1] : vector<8x8xf32> to vector<8xf32>
    %171 = vector.shape_cast %170 : vector<8xf32> to vector<8x1xf32>
    %172 = tpu.reciprocal %171 {approx = true} : vector<8x1xf32> -> vector<8x1xf32>
    %173 = vector.broadcast %172 : vector<8x1xf32> to vector<8x8xf32>
    %174 = arith.mulf %169, %173 : vector<8x8xf32>
    %175 = arith.truncf %174 : vector<8x8xf32> to vector<8x8xbf16>
    %cst_48 = arith.constant dense<0.000000e+00> : vector<8x64xf32>
    %176 = tpu.matmul %175, %161, %cst_48 {dimension_numbers = #tpu.dot_dimension_numbers<[1], [0], [0], [1], [0, 0, 1, 1], [], []>} : vector<8x8xbf16>, vector<8x64xbf16>, vector<8x64xf32> -> vector<8x64xf32>
    %177 = vector.extract_strided_slice %29 {offsets = [0, 448], sizes = [8, 64], strides = [1, 1]} : vector<8x1536xf32> to vector<8x64xf32>
    %178 = arith.truncf %177 : vector<8x64xf32> to vector<8x64xbf16>
    %179 = vector.extract_strided_slice %29 {offsets = [0, 960], sizes = [8, 64], strides = [1, 1]} : vector<8x1536xf32> to vector<8x64xf32>
    %180 = arith.truncf %179 : vector<8x64xf32> to vector<8x64xbf16>
    %181 = vector.extract_strided_slice %29 {offsets = [0, 1472], sizes = [8, 64], strides = [1, 1]} : vector<8x1536xf32> to vector<8x64xf32>
    %182 = arith.truncf %181 : vector<8x64xf32> to vector<8x64xbf16>
    %cst_49 = arith.constant dense<0.000000e+00> : vector<8x8xf32>
    %183 = tpu.matmul %178, %180, %cst_49 {dimension_numbers = #tpu.dot_dimension_numbers<[1], [1], [0], [0], [0, 0, 1, 0], [], []>} : vector<8x64xbf16>, vector<8x64xbf16>, vector<8x8xf32> -> vector<8x8xf32>
    %cst_50 = arith.constant 1.250000e-01 : f32
    %184 = vector.broadcast %cst_50 : f32 to vector<8x8xf32>
    %185 = arith.mulf %183, %184 : vector<8x8xf32>
    %cst_51 = arith.constant dense<0xFF800000> : vector<8xf32>
    %186 = vector.multi_reduction <maximumf>, %185, %cst_51 [1] : vector<8x8xf32> to vector<8xf32>
    %187 = vector.shape_cast %186 : vector<8xf32> to vector<8x1xf32>
    %188 = vector.broadcast %187 : vector<8x1xf32> to vector<8x8xf32>
    %189 = arith.subf %185, %188 : vector<8x8xf32>
    %190 = math.exp %189 : vector<8x8xf32>
    %cst_52 = arith.constant dense<0.000000e+00> : vector<8xf32>
    %191 = vector.multi_reduction <add>, %190, %cst_52 [1] : vector<8x8xf32> to vector<8xf32>
    %192 = vector.shape_cast %191 : vector<8xf32> to vector<8x1xf32>
    %193 = tpu.reciprocal %192 {approx = true} : vector<8x1xf32> -> vector<8x1xf32>
    %194 = vector.broadcast %193 : vector<8x1xf32> to vector<8x8xf32>
    %195 = arith.mulf %190, %194 : vector<8x8xf32>
    %196 = arith.truncf %195 : vector<8x8xf32> to vector<8x8xbf16>
    %cst_53 = arith.constant dense<0.000000e+00> : vector<8x64xf32>
    %197 = tpu.matmul %196, %182, %cst_53 {dimension_numbers = #tpu.dot_dimension_numbers<[1], [0], [0], [1], [0, 0, 1, 1], [], []>} : vector<8x8xbf16>, vector<8x64xbf16>, vector<8x64xf32> -> vector<8x64xf32>
    %198 = tpu.concatenate %50, %71, %92, %113, %134, %155, %176, %197 in 1 : vector<8x64xf32>, vector<8x64xf32>, vector<8x64xf32>, vector<8x64xf32>, vector<8x64xf32>, vector<8x64xf32>, vector<8x64xf32>, vector<8x64xf32> -> vector<8x512xf32>
    %199 = arith.truncf %198 : vector<8x512xf32> to vector<8x512xbf16>
    %c0_54 = arith.constant 0 : index
    %c0_55 = arith.constant 0 : index
    %c0_56 = arith.constant 0 : index
    %200 = vector.load %arg5[%c0_54, %c0_55, %c0_56] : memref<2x512x32xbf16, #tpu.memory_space<vmem>>, vector<1x512x32xbf16>
    %201 = vector.shape_cast %200 : vector<1x512x32xbf16> to vector<512x32xbf16>
    %cst_57 = arith.constant dense<0.000000e+00> : vector<8x32xf32>
    %202 = tpu.matmul %199, %201, %cst_57 {dimension_numbers = #tpu.dot_dimension_numbers<[1], [0], [0], [1], [0, 0, 1, 1], [], []>} : vector<8x512xbf16>, vector<512x32xbf16>, vector<8x32xf32> -> vector<8x32xf32>
    %203 = arith.addf %1, %202 : vector<8x32xf32>
    %c0_58 = arith.constant 0 : index
    %c0_59 = arith.constant 0 : index
    %204 = vector.load %arg6[%c0_58, %c0_59] : memref<2x32xf32, #tpu.memory_space<vmem>>, vector<1x32xf32>
    %205 = vector.broadcast %204 : vector<1x32xf32> to vector<8x32xf32>
    %206 = arith.addf %203, %205 : vector<8x32xf32>
    %c0_60 = arith.constant 0 : index
    %c0_61 = arith.constant 0 : index
    %207 = vector.load %arg7[%c0_60, %c0_61] : memref<2x32xf32, #tpu.memory_space<vmem>>, vector<1x32xf32>
    %c0_62 = arith.constant 0 : index
    %c0_63 = arith.constant 0 : index
    %208 = vector.load %arg8[%c0_62, %c0_63] : memref<2x32xf32, #tpu.memory_space<vmem>>, vector<1x32xf32>
    %cst_64 = arith.constant dense<0.000000e+00> : vector<8xf32>
    %209 = vector.multi_reduction <add>, %206, %cst_64 [1] : vector<8x32xf32> to vector<8xf32>
    %210 = vector.shape_cast %209 : vector<8xf32> to vector<8x1xf32>
    %cst_65 = arith.constant 3.200000e+01 : f32
    %211 = vector.broadcast %cst_65 : f32 to vector<8x1xf32>
    %212 = arith.divf %210, %211 : vector<8x1xf32>
    %213 = vector.broadcast %212 : vector<8x1xf32> to vector<8x32xf32>
    %214 = arith.subf %206, %213 : vector<8x32xf32>
    %215 = arith.mulf %214, %214 : vector<8x32xf32>
    %cst_66 = arith.constant dense<0.000000e+00> : vector<8xf32>
    %216 = vector.multi_reduction <add>, %215, %cst_66 [1] : vector<8x32xf32> to vector<8xf32>
    %217 = vector.shape_cast %216 : vector<8xf32> to vector<8x1xf32>
    %cst_67 = arith.constant 3.200000e+01 : f32
    %218 = vector.broadcast %cst_67 : f32 to vector<8x1xf32>
    %219 = arith.divf %217, %218 : vector<8x1xf32>
    %220 = vector.broadcast %212 : vector<8x1xf32> to vector<8x32xf32>
    %221 = arith.subf %206, %220 : vector<8x32xf32>
    %cst_68 = arith.constant 9.99999974E-6 : f32
    %222 = vector.broadcast %cst_68 : f32 to vector<8x1xf32>
    %223 = arith.addf %219, %222 : vector<8x1xf32>
    %224 = math.rsqrt %223 : vector<8x1xf32>
    %225 = vector.broadcast %224 : vector<8x1xf32> to vector<8x32xf32>
    %226 = arith.mulf %221, %225 : vector<8x32xf32>
    %227 = vector.broadcast %207 : vector<1x32xf32> to vector<8x32xf32>
    %228 = arith.mulf %226, %227 : vector<8x32xf32>
    %229 = vector.broadcast %208 : vector<1x32xf32> to vector<8x32xf32>
    %230 = arith.addf %228, %229 : vector<8x32xf32>
    %231 = arith.truncf %230 : vector<8x32xf32> to vector<8x32xbf16>
    %c0_69 = arith.constant 0 : index
    %c0_70 = arith.constant 0 : index
    %c0_71 = arith.constant 0 : index
    %232 = vector.load %arg9[%c0_69, %c0_70, %c0_71] : memref<2x32x128xbf16, #tpu.memory_space<vmem>>, vector<1x32x128xbf16>
    %233 = vector.shape_cast %232 : vector<1x32x128xbf16> to vector<32x128xbf16>
    %cst_72 = arith.constant dense<0.000000e+00> : vector<8x128xf32>
    %234 = tpu.matmul %231, %233, %cst_72 {dimension_numbers = #tpu.dot_dimension_numbers<[1], [0], [0], [1], [0, 0, 1, 1], [], []>} : vector<8x32xbf16>, vector<32x128xbf16>, vector<8x128xf32> -> vector<8x128xf32>
    %c0_73 = arith.constant 0 : index
    %c0_74 = arith.constant 0 : index
    %235 = vector.load %arg10[%c0_73, %c0_74] : memref<2x128xf32, #tpu.memory_space<vmem>>, vector<1x128xf32>
    %236 = vector.broadcast %235 : vector<1x128xf32> to vector<8x128xf32>
    %237 = arith.addf %234, %236 : vector<8x128xf32>
    %cst_75 = arith.constant 5.000000e-01 : f32
    %238 = vector.broadcast %cst_75 : f32 to vector<8x128xf32>
    %239 = arith.mulf %238, %237 : vector<8x128xf32>
    %cst_76 = arith.constant 0.707106769 : f32
    %240 = vector.broadcast %cst_76 : f32 to vector<8x128xf32>
    %241 = arith.mulf %237, %240 : vector<8x128xf32>
    %242 = math.erf %241 : vector<8x128xf32>
    %cst_77 = arith.constant 1.000000e+00 : f32
    %243 = vector.broadcast %cst_77 : f32 to vector<8x128xf32>
    %244 = arith.addf %243, %242 : vector<8x128xf32>
    %245 = arith.mulf %239, %244 : vector<8x128xf32>
    %246 = arith.truncf %245 : vector<8x128xf32> to vector<8x128xbf16>
    %c0_78 = arith.constant 0 : index
    %c0_79 = arith.constant 0 : index
    %c0_80 = arith.constant 0 : index
    %247 = vector.load %arg11[%c0_78, %c0_79, %c0_80] : memref<2x128x32xbf16, #tpu.memory_space<vmem>>, vector<1x128x32xbf16>
    %248 = vector.shape_cast %247 : vector<1x128x32xbf16> to vector<128x32xbf16>
    %cst_81 = arith.constant dense<0.000000e+00> : vector<8x32xf32>
    %249 = tpu.matmul %246, %248, %cst_81 {dimension_numbers = #tpu.dot_dimension_numbers<[1], [0], [0], [1], [0, 0, 1, 1], [], []>} : vector<8x128xbf16>, vector<128x32xbf16>, vector<8x32xf32> -> vector<8x32xf32>
    %c0_82 = arith.constant 0 : index
    %c0_83 = arith.constant 0 : index
    %250 = vector.load %arg12[%c0_82, %c0_83] : memref<2x32xf32, #tpu.memory_space<vmem>>, vector<1x32xf32>
    %251 = vector.broadcast %250 : vector<1x32xf32> to vector<8x32xf32>
    %252 = arith.addf %249, %251 : vector<8x32xf32>
    %253 = arith.addf %206, %252 : vector<8x32xf32>
    %c1 = arith.constant 1 : index
    %c0_84 = arith.constant 0 : index
    %254 = vector.load %arg2[%c1, %c0_84] : memref<2x32xf32, #tpu.memory_space<vmem>>, vector<1x32xf32>
    %c1_85 = arith.constant 1 : index
    %c0_86 = arith.constant 0 : index
    %255 = vector.load %arg3[%c1_85, %c0_86] : memref<2x32xf32, #tpu.memory_space<vmem>>, vector<1x32xf32>
    %cst_87 = arith.constant dense<0.000000e+00> : vector<8xf32>
    %256 = vector.multi_reduction <add>, %253, %cst_87 [1] : vector<8x32xf32> to vector<8xf32>
    %257 = vector.shape_cast %256 : vector<8xf32> to vector<8x1xf32>
    %cst_88 = arith.constant 3.200000e+01 : f32
    %258 = vector.broadcast %cst_88 : f32 to vector<8x1xf32>
    %259 = arith.divf %257, %258 : vector<8x1xf32>
    %260 = vector.broadcast %259 : vector<8x1xf32> to vector<8x32xf32>
    %261 = arith.subf %253, %260 : vector<8x32xf32>
    %262 = arith.mulf %261, %261 : vector<8x32xf32>
    %cst_89 = arith.constant dense<0.000000e+00> : vector<8xf32>
    %263 = vector.multi_reduction <add>, %262, %cst_89 [1] : vector<8x32xf32> to vector<8xf32>
    %264 = vector.shape_cast %263 : vector<8xf32> to vector<8x1xf32>
    %cst_90 = arith.constant 3.200000e+01 : f32
    %265 = vector.broadcast %cst_90 : f32 to vector<8x1xf32>
    %266 = arith.divf %264, %265 : vector<8x1xf32>
    %267 = vector.broadcast %259 : vector<8x1xf32> to vector<8x32xf32>
    %268 = arith.subf %253, %267 : vector<8x32xf32>
    %cst_91 = arith.constant 9.99999974E-6 : f32
    %269 = vector.broadcast %cst_91 : f32 to vector<8x1xf32>
    %270 = arith.addf %266, %269 : vector<8x1xf32>
    %271 = math.rsqrt %270 : vector<8x1xf32>
    %272 = vector.broadcast %271 : vector<8x1xf32> to vector<8x32xf32>
    %273 = arith.mulf %268, %272 : vector<8x32xf32>
    %274 = vector.broadcast %254 : vector<1x32xf32> to vector<8x32xf32>
    %275 = arith.mulf %273, %274 : vector<8x32xf32>
    %276 = vector.broadcast %255 : vector<1x32xf32> to vector<8x32xf32>
    %277 = arith.addf %275, %276 : vector<8x32xf32>
    %278 = arith.truncf %277 : vector<8x32xf32> to vector<8x32xbf16>
    %c1_92 = arith.constant 1 : index
    %c0_93 = arith.constant 0 : index
    %c0_94 = arith.constant 0 : index
    %279 = vector.load %arg4[%c1_92, %c0_93, %c0_94] : memref<2x32x1536xbf16, #tpu.memory_space<vmem>>, vector<1x32x1536xbf16>
    %280 = vector.shape_cast %279 : vector<1x32x1536xbf16> to vector<32x1536xbf16>
    %cst_95 = arith.constant dense<0.000000e+00> : vector<8x1536xf32>
    %281 = tpu.matmul %278, %280, %cst_95 {dimension_numbers = #tpu.dot_dimension_numbers<[1], [0], [0], [1], [0, 0, 1, 1], [], []>} : vector<8x32xbf16>, vector<32x1536xbf16>, vector<8x1536xf32> -> vector<8x1536xf32>
    %282 = vector.extract_strided_slice %281 {offsets = [0, 0], sizes = [8, 64], strides = [1, 1]} : vector<8x1536xf32> to vector<8x64xf32>
    %283 = arith.truncf %282 : vector<8x64xf32> to vector<8x64xbf16>
    %284 = vector.extract_strided_slice %281 {offsets = [0, 512], sizes = [8, 64], strides = [1, 1]} : vector<8x1536xf32> to vector<8x64xf32>
    %285 = arith.truncf %284 : vector<8x64xf32> to vector<8x64xbf16>
    %286 = vector.extract_strided_slice %281 {offsets = [0, 1024], sizes = [8, 64], strides = [1, 1]} : vector<8x1536xf32> to vector<8x64xf32>
    %287 = arith.truncf %286 : vector<8x64xf32> to vector<8x64xbf16>
    %cst_96 = arith.constant dense<0.000000e+00> : vector<8x8xf32>
    %288 = tpu.matmul %283, %285, %cst_96 {dimension_numbers = #tpu.dot_dimension_numbers<[1], [1], [0], [0], [0, 0, 1, 0], [], []>} : vector<8x64xbf16>, vector<8x64xbf16>, vector<8x8xf32> -> vector<8x8xf32>
    %cst_97 = arith.constant 1.250000e-01 : f32
    %289 = vector.broadcast %cst_97 : f32 to vector<8x8xf32>
    %290 = arith.mulf %288, %289 : vector<8x8xf32>
    %cst_98 = arith.constant dense<0xFF800000> : vector<8xf32>
    %291 = vector.multi_reduction <maximumf>, %290, %cst_98 [1] : vector<8x8xf32> to vector<8xf32>
    %292 = vector.shape_cast %291 : vector<8xf32> to vector<8x1xf32>
    %293 = vector.broadcast %292 : vector<8x1xf32> to vector<8x8xf32>
    %294 = arith.subf %290, %293 : vector<8x8xf32>
    %295 = math.exp %294 : vector<8x8xf32>
    %cst_99 = arith.constant dense<0.000000e+00> : vector<8xf32>
    %296 = vector.multi_reduction <add>, %295, %cst_99 [1] : vector<8x8xf32> to vector<8xf32>
    %297 = vector.shape_cast %296 : vector<8xf32> to vector<8x1xf32>
    %298 = tpu.reciprocal %297 {approx = true} : vector<8x1xf32> -> vector<8x1xf32>
    %299 = vector.broadcast %298 : vector<8x1xf32> to vector<8x8xf32>
    %300 = arith.mulf %295, %299 : vector<8x8xf32>
    %301 = arith.truncf %300 : vector<8x8xf32> to vector<8x8xbf16>
    %cst_100 = arith.constant dense<0.000000e+00> : vector<8x64xf32>
    %302 = tpu.matmul %301, %287, %cst_100 {dimension_numbers = #tpu.dot_dimension_numbers<[1], [0], [0], [1], [0, 0, 1, 1], [], []>} : vector<8x8xbf16>, vector<8x64xbf16>, vector<8x64xf32> -> vector<8x64xf32>
    %303 = vector.extract_strided_slice %281 {offsets = [0, 64], sizes = [8, 64], strides = [1, 1]} : vector<8x1536xf32> to vector<8x64xf32>
    %304 = arith.truncf %303 : vector<8x64xf32> to vector<8x64xbf16>
    %305 = vector.extract_strided_slice %281 {offsets = [0, 576], sizes = [8, 64], strides = [1, 1]} : vector<8x1536xf32> to vector<8x64xf32>
    %306 = arith.truncf %305 : vector<8x64xf32> to vector<8x64xbf16>
    %307 = vector.extract_strided_slice %281 {offsets = [0, 1088], sizes = [8, 64], strides = [1, 1]} : vector<8x1536xf32> to vector<8x64xf32>
    %308 = arith.truncf %307 : vector<8x64xf32> to vector<8x64xbf16>
    %cst_101 = arith.constant dense<0.000000e+00> : vector<8x8xf32>
    %309 = tpu.matmul %304, %306, %cst_101 {dimension_numbers = #tpu.dot_dimension_numbers<[1], [1], [0], [0], [0, 0, 1, 0], [], []>} : vector<8x64xbf16>, vector<8x64xbf16>, vector<8x8xf32> -> vector<8x8xf32>
    %cst_102 = arith.constant 1.250000e-01 : f32
    %310 = vector.broadcast %cst_102 : f32 to vector<8x8xf32>
    %311 = arith.mulf %309, %310 : vector<8x8xf32>
    %cst_103 = arith.constant dense<0xFF800000> : vector<8xf32>
    %312 = vector.multi_reduction <maximumf>, %311, %cst_103 [1] : vector<8x8xf32> to vector<8xf32>
    %313 = vector.shape_cast %312 : vector<8xf32> to vector<8x1xf32>
    %314 = vector.broadcast %313 : vector<8x1xf32> to vector<8x8xf32>
    %315 = arith.subf %311, %314 : vector<8x8xf32>
    %316 = math.exp %315 : vector<8x8xf32>
    %cst_104 = arith.constant dense<0.000000e+00> : vector<8xf32>
    %317 = vector.multi_reduction <add>, %316, %cst_104 [1] : vector<8x8xf32> to vector<8xf32>
    %318 = vector.shape_cast %317 : vector<8xf32> to vector<8x1xf32>
    %319 = tpu.reciprocal %318 {approx = true} : vector<8x1xf32> -> vector<8x1xf32>
    %320 = vector.broadcast %319 : vector<8x1xf32> to vector<8x8xf32>
    %321 = arith.mulf %316, %320 : vector<8x8xf32>
    %322 = arith.truncf %321 : vector<8x8xf32> to vector<8x8xbf16>
    %cst_105 = arith.constant dense<0.000000e+00> : vector<8x64xf32>
    %323 = tpu.matmul %322, %308, %cst_105 {dimension_numbers = #tpu.dot_dimension_numbers<[1], [0], [0], [1], [0, 0, 1, 1], [], []>} : vector<8x8xbf16>, vector<8x64xbf16>, vector<8x64xf32> -> vector<8x64xf32>
    %324 = vector.extract_strided_slice %281 {offsets = [0, 128], sizes = [8, 64], strides = [1, 1]} : vector<8x1536xf32> to vector<8x64xf32>
    %325 = arith.truncf %324 : vector<8x64xf32> to vector<8x64xbf16>
    %326 = vector.extract_strided_slice %281 {offsets = [0, 640], sizes = [8, 64], strides = [1, 1]} : vector<8x1536xf32> to vector<8x64xf32>
    %327 = arith.truncf %326 : vector<8x64xf32> to vector<8x64xbf16>
    %328 = vector.extract_strided_slice %281 {offsets = [0, 1152], sizes = [8, 64], strides = [1, 1]} : vector<8x1536xf32> to vector<8x64xf32>
    %329 = arith.truncf %328 : vector<8x64xf32> to vector<8x64xbf16>
    %cst_106 = arith.constant dense<0.000000e+00> : vector<8x8xf32>
    %330 = tpu.matmul %325, %327, %cst_106 {dimension_numbers = #tpu.dot_dimension_numbers<[1], [1], [0], [0], [0, 0, 1, 0], [], []>} : vector<8x64xbf16>, vector<8x64xbf16>, vector<8x8xf32> -> vector<8x8xf32>
    %cst_107 = arith.constant 1.250000e-01 : f32
    %331 = vector.broadcast %cst_107 : f32 to vector<8x8xf32>
    %332 = arith.mulf %330, %331 : vector<8x8xf32>
    %cst_108 = arith.constant dense<0xFF800000> : vector<8xf32>
    %333 = vector.multi_reduction <maximumf>, %332, %cst_108 [1] : vector<8x8xf32> to vector<8xf32>
    %334 = vector.shape_cast %333 : vector<8xf32> to vector<8x1xf32>
    %335 = vector.broadcast %334 : vector<8x1xf32> to vector<8x8xf32>
    %336 = arith.subf %332, %335 : vector<8x8xf32>
    %337 = math.exp %336 : vector<8x8xf32>
    %cst_109 = arith.constant dense<0.000000e+00> : vector<8xf32>
    %338 = vector.multi_reduction <add>, %337, %cst_109 [1] : vector<8x8xf32> to vector<8xf32>
    %339 = vector.shape_cast %338 : vector<8xf32> to vector<8x1xf32>
    %340 = tpu.reciprocal %339 {approx = true} : vector<8x1xf32> -> vector<8x1xf32>
    %341 = vector.broadcast %340 : vector<8x1xf32> to vector<8x8xf32>
    %342 = arith.mulf %337, %341 : vector<8x8xf32>
    %343 = arith.truncf %342 : vector<8x8xf32> to vector<8x8xbf16>
    %cst_110 = arith.constant dense<0.000000e+00> : vector<8x64xf32>
    %344 = tpu.matmul %343, %329, %cst_110 {dimension_numbers = #tpu.dot_dimension_numbers<[1], [0], [0], [1], [0, 0, 1, 1], [], []>} : vector<8x8xbf16>, vector<8x64xbf16>, vector<8x64xf32> -> vector<8x64xf32>
    %345 = vector.extract_strided_slice %281 {offsets = [0, 192], sizes = [8, 64], strides = [1, 1]} : vector<8x1536xf32> to vector<8x64xf32>
    %346 = arith.truncf %345 : vector<8x64xf32> to vector<8x64xbf16>
    %347 = vector.extract_strided_slice %281 {offsets = [0, 704], sizes = [8, 64], strides = [1, 1]} : vector<8x1536xf32> to vector<8x64xf32>
    %348 = arith.truncf %347 : vector<8x64xf32> to vector<8x64xbf16>
    %349 = vector.extract_strided_slice %281 {offsets = [0, 1216], sizes = [8, 64], strides = [1, 1]} : vector<8x1536xf32> to vector<8x64xf32>
    %350 = arith.truncf %349 : vector<8x64xf32> to vector<8x64xbf16>
    %cst_111 = arith.constant dense<0.000000e+00> : vector<8x8xf32>
    %351 = tpu.matmul %346, %348, %cst_111 {dimension_numbers = #tpu.dot_dimension_numbers<[1], [1], [0], [0], [0, 0, 1, 0], [], []>} : vector<8x64xbf16>, vector<8x64xbf16>, vector<8x8xf32> -> vector<8x8xf32>
    %cst_112 = arith.constant 1.250000e-01 : f32
    %352 = vector.broadcast %cst_112 : f32 to vector<8x8xf32>
    %353 = arith.mulf %351, %352 : vector<8x8xf32>
    %cst_113 = arith.constant dense<0xFF800000> : vector<8xf32>
    %354 = vector.multi_reduction <maximumf>, %353, %cst_113 [1] : vector<8x8xf32> to vector<8xf32>
    %355 = vector.shape_cast %354 : vector<8xf32> to vector<8x1xf32>
    %356 = vector.broadcast %355 : vector<8x1xf32> to vector<8x8xf32>
    %357 = arith.subf %353, %356 : vector<8x8xf32>
    %358 = math.exp %357 : vector<8x8xf32>
    %cst_114 = arith.constant dense<0.000000e+00> : vector<8xf32>
    %359 = vector.multi_reduction <add>, %358, %cst_114 [1] : vector<8x8xf32> to vector<8xf32>
    %360 = vector.shape_cast %359 : vector<8xf32> to vector<8x1xf32>
    %361 = tpu.reciprocal %360 {approx = true} : vector<8x1xf32> -> vector<8x1xf32>
    %362 = vector.broadcast %361 : vector<8x1xf32> to vector<8x8xf32>
    %363 = arith.mulf %358, %362 : vector<8x8xf32>
    %364 = arith.truncf %363 : vector<8x8xf32> to vector<8x8xbf16>
    %cst_115 = arith.constant dense<0.000000e+00> : vector<8x64xf32>
    %365 = tpu.matmul %364, %350, %cst_115 {dimension_numbers = #tpu.dot_dimension_numbers<[1], [0], [0], [1], [0, 0, 1, 1], [], []>} : vector<8x8xbf16>, vector<8x64xbf16>, vector<8x64xf32> -> vector<8x64xf32>
    %366 = vector.extract_strided_slice %281 {offsets = [0, 256], sizes = [8, 64], strides = [1, 1]} : vector<8x1536xf32> to vector<8x64xf32>
    %367 = arith.truncf %366 : vector<8x64xf32> to vector<8x64xbf16>
    %368 = vector.extract_strided_slice %281 {offsets = [0, 768], sizes = [8, 64], strides = [1, 1]} : vector<8x1536xf32> to vector<8x64xf32>
    %369 = arith.truncf %368 : vector<8x64xf32> to vector<8x64xbf16>
    %370 = vector.extract_strided_slice %281 {offsets = [0, 1280], sizes = [8, 64], strides = [1, 1]} : vector<8x1536xf32> to vector<8x64xf32>
    %371 = arith.truncf %370 : vector<8x64xf32> to vector<8x64xbf16>
    %cst_116 = arith.constant dense<0.000000e+00> : vector<8x8xf32>
    %372 = tpu.matmul %367, %369, %cst_116 {dimension_numbers = #tpu.dot_dimension_numbers<[1], [1], [0], [0], [0, 0, 1, 0], [], []>} : vector<8x64xbf16>, vector<8x64xbf16>, vector<8x8xf32> -> vector<8x8xf32>
    %cst_117 = arith.constant 1.250000e-01 : f32
    %373 = vector.broadcast %cst_117 : f32 to vector<8x8xf32>
    %374 = arith.mulf %372, %373 : vector<8x8xf32>
    %cst_118 = arith.constant dense<0xFF800000> : vector<8xf32>
    %375 = vector.multi_reduction <maximumf>, %374, %cst_118 [1] : vector<8x8xf32> to vector<8xf32>
    %376 = vector.shape_cast %375 : vector<8xf32> to vector<8x1xf32>
    %377 = vector.broadcast %376 : vector<8x1xf32> to vector<8x8xf32>
    %378 = arith.subf %374, %377 : vector<8x8xf32>
    %379 = math.exp %378 : vector<8x8xf32>
    %cst_119 = arith.constant dense<0.000000e+00> : vector<8xf32>
    %380 = vector.multi_reduction <add>, %379, %cst_119 [1] : vector<8x8xf32> to vector<8xf32>
    %381 = vector.shape_cast %380 : vector<8xf32> to vector<8x1xf32>
    %382 = tpu.reciprocal %381 {approx = true} : vector<8x1xf32> -> vector<8x1xf32>
    %383 = vector.broadcast %382 : vector<8x1xf32> to vector<8x8xf32>
    %384 = arith.mulf %379, %383 : vector<8x8xf32>
    %385 = arith.truncf %384 : vector<8x8xf32> to vector<8x8xbf16>
    %cst_120 = arith.constant dense<0.000000e+00> : vector<8x64xf32>
    %386 = tpu.matmul %385, %371, %cst_120 {dimension_numbers = #tpu.dot_dimension_numbers<[1], [0], [0], [1], [0, 0, 1, 1], [], []>} : vector<8x8xbf16>, vector<8x64xbf16>, vector<8x64xf32> -> vector<8x64xf32>
    %387 = vector.extract_strided_slice %281 {offsets = [0, 320], sizes = [8, 64], strides = [1, 1]} : vector<8x1536xf32> to vector<8x64xf32>
    %388 = arith.truncf %387 : vector<8x64xf32> to vector<8x64xbf16>
    %389 = vector.extract_strided_slice %281 {offsets = [0, 832], sizes = [8, 64], strides = [1, 1]} : vector<8x1536xf32> to vector<8x64xf32>
    %390 = arith.truncf %389 : vector<8x64xf32> to vector<8x64xbf16>
    %391 = vector.extract_strided_slice %281 {offsets = [0, 1344], sizes = [8, 64], strides = [1, 1]} : vector<8x1536xf32> to vector<8x64xf32>
    %392 = arith.truncf %391 : vector<8x64xf32> to vector<8x64xbf16>
    %cst_121 = arith.constant dense<0.000000e+00> : vector<8x8xf32>
    %393 = tpu.matmul %388, %390, %cst_121 {dimension_numbers = #tpu.dot_dimension_numbers<[1], [1], [0], [0], [0, 0, 1, 0], [], []>} : vector<8x64xbf16>, vector<8x64xbf16>, vector<8x8xf32> -> vector<8x8xf32>
    %cst_122 = arith.constant 1.250000e-01 : f32
    %394 = vector.broadcast %cst_122 : f32 to vector<8x8xf32>
    %395 = arith.mulf %393, %394 : vector<8x8xf32>
    %cst_123 = arith.constant dense<0xFF800000> : vector<8xf32>
    %396 = vector.multi_reduction <maximumf>, %395, %cst_123 [1] : vector<8x8xf32> to vector<8xf32>
    %397 = vector.shape_cast %396 : vector<8xf32> to vector<8x1xf32>
    %398 = vector.broadcast %397 : vector<8x1xf32> to vector<8x8xf32>
    %399 = arith.subf %395, %398 : vector<8x8xf32>
    %400 = math.exp %399 : vector<8x8xf32>
    %cst_124 = arith.constant dense<0.000000e+00> : vector<8xf32>
    %401 = vector.multi_reduction <add>, %400, %cst_124 [1] : vector<8x8xf32> to vector<8xf32>
    %402 = vector.shape_cast %401 : vector<8xf32> to vector<8x1xf32>
    %403 = tpu.reciprocal %402 {approx = true} : vector<8x1xf32> -> vector<8x1xf32>
    %404 = vector.broadcast %403 : vector<8x1xf32> to vector<8x8xf32>
    %405 = arith.mulf %400, %404 : vector<8x8xf32>
    %406 = arith.truncf %405 : vector<8x8xf32> to vector<8x8xbf16>
    %cst_125 = arith.constant dense<0.000000e+00> : vector<8x64xf32>
    %407 = tpu.matmul %406, %392, %cst_125 {dimension_numbers = #tpu.dot_dimension_numbers<[1], [0], [0], [1], [0, 0, 1, 1], [], []>} : vector<8x8xbf16>, vector<8x64xbf16>, vector<8x64xf32> -> vector<8x64xf32>
    %408 = vector.extract_strided_slice %281 {offsets = [0, 384], sizes = [8, 64], strides = [1, 1]} : vector<8x1536xf32> to vector<8x64xf32>
    %409 = arith.truncf %408 : vector<8x64xf32> to vector<8x64xbf16>
    %410 = vector.extract_strided_slice %281 {offsets = [0, 896], sizes = [8, 64], strides = [1, 1]} : vector<8x1536xf32> to vector<8x64xf32>
    %411 = arith.truncf %410 : vector<8x64xf32> to vector<8x64xbf16>
    %412 = vector.extract_strided_slice %281 {offsets = [0, 1408], sizes = [8, 64], strides = [1, 1]} : vector<8x1536xf32> to vector<8x64xf32>
    %413 = arith.truncf %412 : vector<8x64xf32> to vector<8x64xbf16>
    %cst_126 = arith.constant dense<0.000000e+00> : vector<8x8xf32>
    %414 = tpu.matmul %409, %411, %cst_126 {dimension_numbers = #tpu.dot_dimension_numbers<[1], [1], [0], [0], [0, 0, 1, 0], [], []>} : vector<8x64xbf16>, vector<8x64xbf16>, vector<8x8xf32> -> vector<8x8xf32>
    %cst_127 = arith.constant 1.250000e-01 : f32
    %415 = vector.broadcast %cst_127 : f32 to vector<8x8xf32>
    %416 = arith.mulf %414, %415 : vector<8x8xf32>
    %cst_128 = arith.constant dense<0xFF800000> : vector<8xf32>
    %417 = vector.multi_reduction <maximumf>, %416, %cst_128 [1] : vector<8x8xf32> to vector<8xf32>
    %418 = vector.shape_cast %417 : vector<8xf32> to vector<8x1xf32>
    %419 = vector.broadcast %418 : vector<8x1xf32> to vector<8x8xf32>
    %420 = arith.subf %416, %419 : vector<8x8xf32>
    %421 = math.exp %420 : vector<8x8xf32>
    %cst_129 = arith.constant dense<0.000000e+00> : vector<8xf32>
    %422 = vector.multi_reduction <add>, %421, %cst_129 [1] : vector<8x8xf32> to vector<8xf32>
    %423 = vector.shape_cast %422 : vector<8xf32> to vector<8x1xf32>
    %424 = tpu.reciprocal %423 {approx = true} : vector<8x1xf32> -> vector<8x1xf32>
    %425 = vector.broadcast %424 : vector<8x1xf32> to vector<8x8xf32>
    %426 = arith.mulf %421, %425 : vector<8x8xf32>
    %427 = arith.truncf %426 : vector<8x8xf32> to vector<8x8xbf16>
    %cst_130 = arith.constant dense<0.000000e+00> : vector<8x64xf32>
    %428 = tpu.matmul %427, %413, %cst_130 {dimension_numbers = #tpu.dot_dimension_numbers<[1], [0], [0], [1], [0, 0, 1, 1], [], []>} : vector<8x8xbf16>, vector<8x64xbf16>, vector<8x64xf32> -> vector<8x64xf32>
    %429 = vector.extract_strided_slice %281 {offsets = [0, 448], sizes = [8, 64], strides = [1, 1]} : vector<8x1536xf32> to vector<8x64xf32>
    %430 = arith.truncf %429 : vector<8x64xf32> to vector<8x64xbf16>
    %431 = vector.extract_strided_slice %281 {offsets = [0, 960], sizes = [8, 64], strides = [1, 1]} : vector<8x1536xf32> to vector<8x64xf32>
    %432 = arith.truncf %431 : vector<8x64xf32> to vector<8x64xbf16>
    %433 = vector.extract_strided_slice %281 {offsets = [0, 1472], sizes = [8, 64], strides = [1, 1]} : vector<8x1536xf32> to vector<8x64xf32>
    %434 = arith.truncf %433 : vector<8x64xf32> to vector<8x64xbf16>
    %cst_131 = arith.constant dense<0.000000e+00> : vector<8x8xf32>
    %435 = tpu.matmul %430, %432, %cst_131 {dimension_numbers = #tpu.dot_dimension_numbers<[1], [1], [0], [0], [0, 0, 1, 0], [], []>} : vector<8x64xbf16>, vector<8x64xbf16>, vector<8x8xf32> -> vector<8x8xf32>
    %cst_132 = arith.constant 1.250000e-01 : f32
    %436 = vector.broadcast %cst_132 : f32 to vector<8x8xf32>
    %437 = arith.mulf %435, %436 : vector<8x8xf32>
    %cst_133 = arith.constant dense<0xFF800000> : vector<8xf32>
    %438 = vector.multi_reduction <maximumf>, %437, %cst_133 [1] : vector<8x8xf32> to vector<8xf32>
    %439 = vector.shape_cast %438 : vector<8xf32> to vector<8x1xf32>
    %440 = vector.broadcast %439 : vector<8x1xf32> to vector<8x8xf32>
    %441 = arith.subf %437, %440 : vector<8x8xf32>
    %442 = math.exp %441 : vector<8x8xf32>
    %cst_134 = arith.constant dense<0.000000e+00> : vector<8xf32>
    %443 = vector.multi_reduction <add>, %442, %cst_134 [1] : vector<8x8xf32> to vector<8xf32>
    %444 = vector.shape_cast %443 : vector<8xf32> to vector<8x1xf32>
    %445 = tpu.reciprocal %444 {approx = true} : vector<8x1xf32> -> vector<8x1xf32>
    %446 = vector.broadcast %445 : vector<8x1xf32> to vector<8x8xf32>
    %447 = arith.mulf %442, %446 : vector<8x8xf32>
    %448 = arith.truncf %447 : vector<8x8xf32> to vector<8x8xbf16>
    %cst_135 = arith.constant dense<0.000000e+00> : vector<8x64xf32>
    %449 = tpu.matmul %448, %434, %cst_135 {dimension_numbers = #tpu.dot_dimension_numbers<[1], [0], [0], [1], [0, 0, 1, 1], [], []>} : vector<8x8xbf16>, vector<8x64xbf16>, vector<8x64xf32> -> vector<8x64xf32>
    %450 = tpu.concatenate %302, %323, %344, %365, %386, %407, %428, %449 in 1 : vector<8x64xf32>, vector<8x64xf32>, vector<8x64xf32>, vector<8x64xf32>, vector<8x64xf32>, vector<8x64xf32>, vector<8x64xf32>, vector<8x64xf32> -> vector<8x512xf32>
    %451 = arith.truncf %450 : vector<8x512xf32> to vector<8x512xbf16>
    %c1_136 = arith.constant 1 : index
    %c0_137 = arith.constant 0 : index
    %c0_138 = arith.constant 0 : index
    %452 = vector.load %arg5[%c1_136, %c0_137, %c0_138] : memref<2x512x32xbf16, #tpu.memory_space<vmem>>, vector<1x512x32xbf16>
    %453 = vector.shape_cast %452 : vector<1x512x32xbf16> to vector<512x32xbf16>
    %cst_139 = arith.constant dense<0.000000e+00> : vector<8x32xf32>
    %454 = tpu.matmul %451, %453, %cst_139 {dimension_numbers = #tpu.dot_dimension_numbers<[1], [0], [0], [1], [0, 0, 1, 1], [], []>} : vector<8x512xbf16>, vector<512x32xbf16>, vector<8x32xf32> -> vector<8x32xf32>
    %455 = arith.addf %253, %454 : vector<8x32xf32>
    %c1_140 = arith.constant 1 : index
    %c0_141 = arith.constant 0 : index
    %456 = vector.load %arg6[%c1_140, %c0_141] : memref<2x32xf32, #tpu.memory_space<vmem>>, vector<1x32xf32>
    %457 = vector.broadcast %456 : vector<1x32xf32> to vector<8x32xf32>
    %458 = arith.addf %455, %457 : vector<8x32xf32>
    %c1_142 = arith.constant 1 : index
    %c0_143 = arith.constant 0 : index
    %459 = vector.load %arg7[%c1_142, %c0_143] : memref<2x32xf32, #tpu.memory_space<vmem>>, vector<1x32xf32>
    %c1_144 = arith.constant 1 : index
    %c0_145 = arith.constant 0 : index
    %460 = vector.load %arg8[%c1_144, %c0_145] : memref<2x32xf32, #tpu.memory_space<vmem>>, vector<1x32xf32>
    %cst_146 = arith.constant dense<0.000000e+00> : vector<8xf32>
    %461 = vector.multi_reduction <add>, %458, %cst_146 [1] : vector<8x32xf32> to vector<8xf32>
    %462 = vector.shape_cast %461 : vector<8xf32> to vector<8x1xf32>
    %cst_147 = arith.constant 3.200000e+01 : f32
    %463 = vector.broadcast %cst_147 : f32 to vector<8x1xf32>
    %464 = arith.divf %462, %463 : vector<8x1xf32>
    %465 = vector.broadcast %464 : vector<8x1xf32> to vector<8x32xf32>
    %466 = arith.subf %458, %465 : vector<8x32xf32>
    %467 = arith.mulf %466, %466 : vector<8x32xf32>
    %cst_148 = arith.constant dense<0.000000e+00> : vector<8xf32>
    %468 = vector.multi_reduction <add>, %467, %cst_148 [1] : vector<8x32xf32> to vector<8xf32>
    %469 = vector.shape_cast %468 : vector<8xf32> to vector<8x1xf32>
    %cst_149 = arith.constant 3.200000e+01 : f32
    %470 = vector.broadcast %cst_149 : f32 to vector<8x1xf32>
    %471 = arith.divf %469, %470 : vector<8x1xf32>
    %472 = vector.broadcast %464 : vector<8x1xf32> to vector<8x32xf32>
    %473 = arith.subf %458, %472 : vector<8x32xf32>
    %cst_150 = arith.constant 9.99999974E-6 : f32
    %474 = vector.broadcast %cst_150 : f32 to vector<8x1xf32>
    %475 = arith.addf %471, %474 : vector<8x1xf32>
    %476 = math.rsqrt %475 : vector<8x1xf32>
    %477 = vector.broadcast %476 : vector<8x1xf32> to vector<8x32xf32>
    %478 = arith.mulf %473, %477 : vector<8x32xf32>
    %479 = vector.broadcast %459 : vector<1x32xf32> to vector<8x32xf32>
    %480 = arith.mulf %478, %479 : vector<8x32xf32>
    %481 = vector.broadcast %460 : vector<1x32xf32> to vector<8x32xf32>
    %482 = arith.addf %480, %481 : vector<8x32xf32>
    %483 = arith.truncf %482 : vector<8x32xf32> to vector<8x32xbf16>
    %c1_151 = arith.constant 1 : index
    %c0_152 = arith.constant 0 : index
    %c0_153 = arith.constant 0 : index
    %484 = vector.load %arg9[%c1_151, %c0_152, %c0_153] : memref<2x32x128xbf16, #tpu.memory_space<vmem>>, vector<1x32x128xbf16>
    %485 = vector.shape_cast %484 : vector<1x32x128xbf16> to vector<32x128xbf16>
    %cst_154 = arith.constant dense<0.000000e+00> : vector<8x128xf32>
    %486 = tpu.matmul %483, %485, %cst_154 {dimension_numbers = #tpu.dot_dimension_numbers<[1], [0], [0], [1], [0, 0, 1, 1], [], []>} : vector<8x32xbf16>, vector<32x128xbf16>, vector<8x128xf32> -> vector<8x128xf32>
    %c1_155 = arith.constant 1 : index
    %c0_156 = arith.constant 0 : index
    %487 = vector.load %arg10[%c1_155, %c0_156] : memref<2x128xf32, #tpu.memory_space<vmem>>, vector<1x128xf32>
    %488 = vector.broadcast %487 : vector<1x128xf32> to vector<8x128xf32>
    %489 = arith.addf %486, %488 : vector<8x128xf32>
    %cst_157 = arith.constant 5.000000e-01 : f32
    %490 = vector.broadcast %cst_157 : f32 to vector<8x128xf32>
    %491 = arith.mulf %490, %489 : vector<8x128xf32>
    %cst_158 = arith.constant 0.707106769 : f32
    %492 = vector.broadcast %cst_158 : f32 to vector<8x128xf32>
    %493 = arith.mulf %489, %492 : vector<8x128xf32>
    %494 = math.erf %493 : vector<8x128xf32>
    %cst_159 = arith.constant 1.000000e+00 : f32
    %495 = vector.broadcast %cst_159 : f32 to vector<8x128xf32>
    %496 = arith.addf %495, %494 : vector<8x128xf32>
    %497 = arith.mulf %491, %496 : vector<8x128xf32>
    %498 = arith.truncf %497 : vector<8x128xf32> to vector<8x128xbf16>
    %c1_160 = arith.constant 1 : index
    %c0_161 = arith.constant 0 : index
    %c0_162 = arith.constant 0 : index
    %499 = vector.load %arg11[%c1_160, %c0_161, %c0_162] : memref<2x128x32xbf16, #tpu.memory_space<vmem>>, vector<1x128x32xbf16>
    %500 = vector.shape_cast %499 : vector<1x128x32xbf16> to vector<128x32xbf16>
    %cst_163 = arith.constant dense<0.000000e+00> : vector<8x32xf32>
    %501 = tpu.matmul %498, %500, %cst_163 {dimension_numbers = #tpu.dot_dimension_numbers<[1], [0], [0], [1], [0, 0, 1, 1], [], []>} : vector<8x128xbf16>, vector<128x32xbf16>, vector<8x32xf32> -> vector<8x32xf32>
    %c1_164 = arith.constant 1 : index
    %c0_165 = arith.constant 0 : index
    %502 = vector.load %arg12[%c1_164, %c0_165] : memref<2x32xf32, #tpu.memory_space<vmem>>, vector<1x32xf32>
    %503 = vector.broadcast %502 : vector<1x32xf32> to vector<8x32xf32>
    %504 = arith.addf %501, %503 : vector<8x32xf32>
    %505 = arith.addf %458, %504 : vector<8x32xf32>
    %c0_166 = arith.constant 0 : index
    %c0_167 = arith.constant 0 : index
    %506 = vector.load %arg13[%c0_166, %c0_167] : memref<1x32xf32, #tpu.memory_space<vmem>>, vector<1x32xf32>
    %c0_168 = arith.constant 0 : index
    %c0_169 = arith.constant 0 : index
    %507 = vector.load %arg14[%c0_168, %c0_169] : memref<1x32xf32, #tpu.memory_space<vmem>>, vector<1x32xf32>
    %cst_170 = arith.constant dense<0.000000e+00> : vector<8xf32>
    %508 = vector.multi_reduction <add>, %505, %cst_170 [1] : vector<8x32xf32> to vector<8xf32>
    %509 = vector.shape_cast %508 : vector<8xf32> to vector<8x1xf32>
    %cst_171 = arith.constant 3.200000e+01 : f32
    %510 = vector.broadcast %cst_171 : f32 to vector<8x1xf32>
    %511 = arith.divf %509, %510 : vector<8x1xf32>
    %512 = vector.broadcast %511 : vector<8x1xf32> to vector<8x32xf32>
    %513 = arith.subf %505, %512 : vector<8x32xf32>
    %514 = arith.mulf %513, %513 : vector<8x32xf32>
    %cst_172 = arith.constant dense<0.000000e+00> : vector<8xf32>
    %515 = vector.multi_reduction <add>, %514, %cst_172 [1] : vector<8x32xf32> to vector<8xf32>
    %516 = vector.shape_cast %515 : vector<8xf32> to vector<8x1xf32>
    %cst_173 = arith.constant 3.200000e+01 : f32
    %517 = vector.broadcast %cst_173 : f32 to vector<8x1xf32>
    %518 = arith.divf %516, %517 : vector<8x1xf32>
    %519 = vector.broadcast %511 : vector<8x1xf32> to vector<8x32xf32>
    %520 = arith.subf %505, %519 : vector<8x32xf32>
    %cst_174 = arith.constant 9.99999974E-6 : f32
    %521 = vector.broadcast %cst_174 : f32 to vector<8x1xf32>
    %522 = arith.addf %518, %521 : vector<8x1xf32>
    %523 = math.rsqrt %522 : vector<8x1xf32>
    %524 = vector.broadcast %523 : vector<8x1xf32> to vector<8x32xf32>
    %525 = arith.mulf %520, %524 : vector<8x32xf32>
    %526 = vector.broadcast %506 : vector<1x32xf32> to vector<8x32xf32>
    %527 = arith.mulf %525, %526 : vector<8x32xf32>
    %528 = vector.broadcast %507 : vector<1x32xf32> to vector<8x32xf32>
    %529 = arith.addf %527, %528 : vector<8x32xf32>
    %c0_175 = arith.constant 0 : index
    %c0_176 = arith.constant 0 : index
    %c0_177 = arith.constant 0 : index
    %530 = vector.load %arg15[%c0_175, %c0_176, %c0_177] : memref<1x8x32xf32, #tpu.memory_space<vmem>>, vector<1x8x32xf32>
    %531 = vector.shape_cast %530 : vector<1x8x32xf32> to vector<8x32xf32>
    %532 = vector.shape_cast %529 : vector<8x32xf32> to vector<1x8x32xf32>
    tpu.vector_store %arg15[%c0_175, %c0_176, %c0_177], %532 {strides = array<i32>} : memref<1x8x32xf32, #tpu.memory_space<vmem>>, vector<1x8x32xf32>,
    return
  }
  func.func @transform_0(%arg0: i32) -> (i32, i32, i32) {
    %c0_i32 = arith.constant 0 : i32
    %c0_i32_0 = arith.constant 0 : i32
    %c0_i32_1 = arith.constant 0 : i32
    return %arg0, %c0_i32, %c0_i32_0 : i32, i32, i32
  }
  func.func @transform_1(%arg0: i32) -> (i32, i32) {
    %c0_i32 = arith.constant 0 : i32
    %c0_i32_0 = arith.constant 0 : i32
    %c0_i32_1 = arith.constant 0 : i32
    return %c0_i32, %c0_i32_0 : i32, i32
  }
  func.func @transform_2(%arg0: i32) -> (i32, i32) {
    %c0_i32 = arith.constant 0 : i32
    %c0_i32_0 = arith.constant 0 : i32
    %c0_i32_1 = arith.constant 0 : i32
    return %c0_i32, %c0_i32_0 : i32, i32
  }
  func.func @transform_3(%arg0: i32) -> (i32, i32, i32) {
    %c0_i32 = arith.constant 0 : i32
    %c0_i32_0 = arith.constant 0 : i32
    %c0_i32_1 = arith.constant 0 : i32
    %c0_i32_2 = arith.constant 0 : i32
    return %c0_i32, %c0_i32_0, %c0_i32_1 : i32, i32, i32
  }
  func.func @transform_4(%arg0: i32) -> (i32, i32, i32) {
    %c0_i32 = arith.constant 0 : i32
    %c0_i32_0 = arith.constant 0 : i32
    %c0_i32_1 = arith.constant 0 : i32
    %c0_i32_2 = arith.constant 0 : i32
    return %c0_i32, %c0_i32_0, %c0_i32_1 : i32, i32, i32
  }
  func.func @transform_5(%arg0: i32) -> (i32, i32) {
    %c0_i32 = arith.constant 0 : i32
    %c0_i32_0 = arith.constant 0 : i32
    %c0_i32_1 = arith.constant 0 : i32
    return %c0_i32, %c0_i32_0 : i32, i32
  }
  func.func @transform_6(%arg0: i32) -> (i32, i32) {
    %c0_i32 = arith.constant 0 : i32
    %c0_i32_0 = arith.constant 0 : i32
    %c0_i32_1 = arith.constant 0 : i32
    return %c0_i32, %c0_i32_0 : i32, i32
  }
  func.func @transform_7(%arg0: i32) -> (i32, i32) {
    %c0_i32 = arith.constant 0 : i32
    %c0_i32_0 = arith.constant 0 : i32
    %c0_i32_1 = arith.constant 0 : i32
    return %c0_i32, %c0_i32_0 : i32, i32
  }
  func.func @transform_8(%arg0: i32) -> (i32, i32, i32) {
    %c0_i32 = arith.constant 0 : i32
    %c0_i32_0 = arith.constant 0 : i32
    %c0_i32_1 = arith.constant 0 : i32
    %c0_i32_2 = arith.constant 0 : i32
    return %c0_i32, %c0_i32_0, %c0_i32_1 : i32, i32, i32
  }
  func.func @transform_9(%arg0: i32) -> (i32, i32) {
    %c0_i32 = arith.constant 0 : i32
    %c0_i32_0 = arith.constant 0 : i32
    %c0_i32_1 = arith.constant 0 : i32
    return %c0_i32, %c0_i32_0 : i32, i32
  }
  func.func @transform_10(%arg0: i32) -> (i32, i32, i32) {
    %c0_i32 = arith.constant 0 : i32
    %c0_i32_0 = arith.constant 0 : i32
    %c0_i32_1 = arith.constant 0 : i32
    %c0_i32_2 = arith.constant 0 : i32
    return %c0_i32, %c0_i32_0, %c0_i32_1 : i32, i32, i32
  }
  func.func @transform_11(%arg0: i32) -> (i32, i32) {
    %c0_i32 = arith.constant 0 : i32
    %c0_i32_0 = arith.constant 0 : i32
    %c0_i32_1 = arith.constant 0 : i32
    return %c0_i32, %c0_i32_0 : i32, i32
  }
  func.func @transform_12(%arg0: i32) -> (i32, i32) {
    %c0_i32 = arith.constant 0 : i32
    %c0_i32_0 = arith.constant 0 : i32
    %c0_i32_1 = arith.constant 0 : i32
    return %c0_i32, %c0_i32_0 : i32, i32
  }
  func.func @transform_13(%arg0: i32) -> (i32, i32) {
    %c0_i32 = arith.constant 0 : i32
    %c0_i32_0 = arith.constant 0 : i32
    %c0_i32_1 = arith.constant 0 : i32
    return %c0_i32, %c0_i32_0 : i32, i32
  }
  func.func @transform_14(%arg0: i32) -> (i32, i32, i32) {
    %c0_i32 = arith.constant 0 : i32
    %c0_i32_0 = arith.constant 0 : i32
    %c0_i32_1 = arith.constant 0 : i32
    return %arg0, %c0_i32, %c0_i32_0 : i32, i32, i32
  }
}

</mosaic_0001>

<llo_original>
// kernel: tpu_custom_call.1
$region0: #{tpu_custom_call.1}
  #allocation0 [shape = 'u32[]', space=smem, size = 0x4, offset = 0x4, fixed_abs, tag = 'smem constant byte address 0x4 - core index']
  #allocation1 [shape = 'u32[72,128]{1,0:T(1,128)}', space=vmem, size = 0x9000, scoped, tag = 'internal scratch']
  %s0 = inlined_call_operand.vmem [shape: f32[2,8,32], index: 0, kind: input, shape index: {}]
  %s1 = inlined_call_operand.vmem [shape: f32[2,32], index: 1, kind: input, shape index: {}]
  %s2 = inlined_call_operand.vmem [shape: f32[2,32], index: 2, kind: input, shape index: {}]
  %s3 = inlined_call_operand.vmem [shape: bf16[2,32,1536], index: 3, kind: input, shape index: {}]
  %s4 = inlined_call_operand.vmem [shape: bf16[2,512,32], index: 4, kind: input, shape index: {}]
  %s5 = inlined_call_operand.vmem [shape: f32[2,32], index: 5, kind: input, shape index: {}]
  %s6 = inlined_call_operand.vmem [shape: f32[2,32], index: 6, kind: input, shape index: {}]
  %s7 = inlined_call_operand.vmem [shape: f32[2,32], index: 7, kind: input, shape index: {}]
  %s8 = inlined_call_operand.vmem [shape: bf16[2,32,128], index: 8, kind: input, shape index: {}]
  %s9 = inlined_call_operand.vmem [shape: f32[2,128], index: 9, kind: input, shape index: {}]
  %s10 = inlined_call_operand.vmem [shape: bf16[2,128,32], index: 10, kind: input, shape index: {}]
  %s11 = inlined_call_operand.vmem [shape: f32[2,32], index: 11, kind: input, shape index: {}]
  %s12 = inlined_call_operand.vmem [shape: f32[1,32], index: 12, kind: input, shape index: {}]
  %s13 = inlined_call_operand.vmem [shape: f32[1,32], index: 13, kind: input, shape index: {}]
  %s14 = inlined_call_operand.hbm [shape: f32[2,8,32], index: 14, kind: output, shape index: {}]
  %s15 = sld [smem:[#allocation0]]
  $region89: #{tpu_custom_call.1} parent=0
    _
  %s17 = ssub.s32 1, %s15
  %s18 = scalar_select 0, %s17, %s15
  $region1: #{tpu_custom_call.1} parent=0
    #allocation2 [shape = 'u8[8192]{0}', space=vmem, size = 0x2000, scoped, tag = 'output window, operand 0']
    #allocation3 [shape = 's32[2]{0}', space=sflag, size = 0x8, scoped, tag = 'scoped memory for tpu_custom_call.1']
    %19 = vsyncpa [#allocation3], 0
    %s20 = scalar_lea.sflag [#allocation3], 1
    %21 = vsyncpa %s20, 0
    loop: start=0, step=1, limit=4
    $region2: #{tpu_custom_call.1} parent=1 // loop_pre_header
      _
    $region3: #{tpu_custom_call.1} parent=1 // loop_header
      %s23 = sphi 0, %s27
      %p24 = scmp.ge.s32.totalorder %s23, 4
      %s33 = sphi 0, %s35
      %s36 = sphi 0, %s33
      %s37 = sphi 0, %s36
      %s53 = sphi 0, %s37
      %s57 = sphi 0, %s57
      %s59 = sphi 0, %s57
      %s60 = sphi 0, %s59
      %s74 = sphi 0, %s60
      %s78 = sphi 0, %s78
      %s80 = sphi 0, %s78
      %s81 = sphi 0, %s80
      %s95 = sphi 0, %s81
      %s99 = sphi 0, %s99
      %s101 = sphi 0, %s99
      %s102 = sphi 0, %s101
      %s116 = sphi 0, %s102
      %s120 = sphi 0, %s120
      %s122 = sphi 0, %s120
      %s123 = sphi 0, %s122
      %s137 = sphi 0, %s123
      %s141 = sphi 0, %s141
      %s143 = sphi 0, %s141
      %s144 = sphi 0, %s143
      %s158 = sphi 0, %s144
      %s162 = sphi 0, %s162
      %s164 = sphi 0, %s162
      %s165 = sphi 0, %s164
      %s179 = sphi 0, %s165
      %s183 = sphi 0, %s183
      %s185 = sphi 0, %s183
      %s186 = sphi 0, %s185
      %s200 = sphi 0, %s186
      %s204 = sphi 0, %s204
      %s206 = sphi 0, %s204
      %s207 = sphi 0, %s206
      %s221 = sphi 0, %s207
      %s225 = sphi 0, %s225
      %s227 = sphi 0, %s225
      %s228 = sphi 0, %s227
      %s242 = sphi 0, %s228
      %s246 = sphi 0, %s246
      %s248 = sphi 0, %s246
      %s249 = sphi 0, %s248
      %s263 = sphi 0, %s249
      %s267 = sphi 0, %s267
      %s269 = sphi 0, %s267
      %s270 = sphi 0, %s269
      %s284 = sphi 0, %s270
      %s288 = sphi 0, %s288
      %s290 = sphi 0, %s288
      %s291 = sphi 0, %s290
      %s305 = sphi 0, %s291
      %s309 = sphi 0, %s309
      %s311 = sphi 0, %s309
      %s312 = sphi 0, %s311
      %s326 = sphi 0, %s312
      %s332 = sphi 0, %s334
      %s335 = sphi 0, %s332
      %s336 = sphi 0, %s335
      %s352 = sphi 0, %s336
    $region4: #{tpu_custom_call.1} parent=1 // loop_header_branch
      %26 = sbr.rel (%p24) target = $region8
    $region5: #{tpu_custom_call.1} parent=1 // loop_body
      %s28 = ssub.s32 %s23, 1
      %s29 = ssub.s32 %s23, 2
      %s30 = sadd.s32 %s23, 1
      %s31 = ssub.s32 %s23, %s30
      %p32 = scmp.eq.s32.totalorder %s31, 0
      %s34 = sadd.s32 %s33, 1
      %s35 = scalar_select %p32, %s33, %s34
      %p38 = pneg %p32
      %p39 = scmp.eq.s32.totalorder %s23, 1
      %p40 = por %p38, %p39
      %p41 = scmp.ne.s32.totalorder %s33, %s36
      %p42 = scmp.eq.s32.totalorder %s23, 0
      %p43 = por %p41, %p42
      %p44 = scmp.ne.s32.totalorder %s33, %s36
      %p45 = scmp.eq.s32.totalorder %s28, 1
      %p46 = por %p44, %p45
      %p47 = scmp.ne.s32.totalorder %s36, %s37
      %p48 = scmp.eq.s32.totalorder %s28, 0
      %p49 = por %p47, %p48
      %p50 = scmp.ne.s32.totalorder %s36, %s37
      %p51 = scmp.eq.s32.totalorder %s29, 1
      %p52 = por %p50, %p51
      %p54 = scmp.ne.s32.totalorder %s37, %s53
      %p55 = scmp.eq.s32.totalorder %s29, 0
      %p56 = por %p54, %p55
      %s58 = sadd.s32 %s57, 1
      %p61 = scmp.eq.s32.totalorder %s23, 1
      %p62 = scmp.ne.s32.totalorder %s57, %s59
      %p63 = scmp.eq.s32.totalorder %s23, 0
      %p64 = por %p62, %p63
      %p65 = scmp.ne.s32.totalorder %s57, %s59
      %p66 = scmp.eq.s32.totalorder %s28, 1
      %p67 = por %p65, %p66
      %p68 = scmp.ne.s32.totalorder %s59, %s60
      %p69 = scmp.eq.s32.totalorder %s28, 0
      %p70 = por %p68, %p69
      %p71 = scmp.ne.s32.totalorder %s59, %s60
      %p72 = scmp.eq.s32.totalorder %s29, 1
      %p73 = por %p71, %p72
      %p75 = scmp.ne.s32.totalorder %s60, %s74
      %p76 = scmp.eq.s32.totalorder %s29, 0
      %p77 = por %p75, %p76
      %s79 = sadd.s32 %s78, 1
      %p82 = scmp.eq.s32.totalorder %s23, 1
      %p83 = scmp.ne.s32.totalorder %s78, %s80
      %p84 = scmp.eq.s32.totalorder %s23, 0
      %p85 = por %p83, %p84
      %p86 = scmp.ne.s32.totalorder %s78, %s80
      %p87 = scmp.eq.s32.totalorder %s28, 1
      %p88 = por %p86, %p87
      %p89 = scmp.ne.s32.totalorder %s80, %s81
      %p90 = scmp.eq.s32.totalorder %s28, 0
      %p91 = por %p89, %p90
      %p92 = scmp.ne.s32.totalorder %s80, %s81
      %p93 = scmp.eq.s32.totalorder %s29, 1
      %p94 = por %p92, %p93
      %p96 = scmp.ne.s32.totalorder %s81, %s95
      %p97 = scmp.eq.s32.totalorder %s29, 0
      %p98 = por %p96, %p97
      %s100 = sadd.s32 %s99, 1
      %p103 = scmp.eq.s32.totalorder %s23, 1
      %p104 = scmp.ne.s32.totalorder %s99, %s101
      %p105 = scmp.eq.s32.totalorder %s23, 0
      %p106 = por %p104, %p105
      %p107 = scmp.ne.s32.totalorder %s99, %s101
      %p108 = scmp.eq.s32.totalorder %s28, 1
      %p109 = por %p107, %p108
      %p110 = scmp.ne.s32.totalorder %s101, %s102
      %p111 = scmp.eq.s32.totalorder %s28, 0
      %p112 = por %p110, %p111
      %p113 = scmp.ne.s32.totalorder %s101, %s102
      %p114 = scmp.eq.s32.totalorder %s29, 1
      %p115 = por %p113, %p114
      %p117 = scmp.ne.s32.totalorder %s102, %s116
      %p118 = scmp.eq.s32.totalorder %s29, 0
      %p119 = por %p117, %p118
      %s121 = sadd.s32 %s120, 1
      %p124 = scmp.eq.s32.totalorder %s23, 1
      %p125 = scmp.ne.s32.totalorder %s120, %s122
      %p126 = scmp.eq.s32.totalorder %s23, 0
      %p127 = por %p125, %p126
      %p128 = scmp.ne.s32.totalorder %s120, %s122
      %p129 = scmp.eq.s32.totalorder %s28, 1
      %p130 = por %p128, %p129
      %p131 = scmp.ne.s32.totalorder %s122, %s123
      %p132 = scmp.eq.s32.totalorder %s28, 0
      %p133 = por %p131, %p132
      %p134 = scmp.ne.s32.totalorder %s122, %s123
      %p135 = scmp.eq.s32.totalorder %s29, 1
      %p136 = por %p134, %p135
      %p138 = scmp.ne.s32.totalorder %s123, %s137
      %p139 = scmp.eq.s32.totalorder %s29, 0
      %p140 = por %p138, %p139
      %s142 = sadd.s32 %s141, 1
      %p145 = scmp.eq.s32.totalorder %s23, 1
      %p146 = scmp.ne.s32.totalorder %s141, %s143
      %p147 = scmp.eq.s32.totalorder %s23, 0
      %p148 = por %p146, %p147
      %p149 = scmp.ne.s32.totalorder %s141, %s143
      %p150 = scmp.eq.s32.totalorder %s28, 1
      %p151 = por %p149, %p150
      %p152 = scmp.ne.s32.totalorder %s143, %s144
      %p153 = scmp.eq.s32.totalorder %s28, 0
      %p154 = por %p152, %p153
      %p155 = scmp.ne.s32.totalorder %s143, %s144
      %p156 = scmp.eq.s32.totalorder %s29, 1
      %p157 = por %p155, %p156
      %p159 = scmp.ne.s32.totalorder %s144, %s158
      %p160 = scmp.eq.s32.totalorder %s29, 0
      %p161 = por %p159, %p160
      %s163 = sadd.s32 %s162, 1
      %p166 = scmp.eq.s32.totalorder %s23, 1
      %p167 = scmp.ne.s32.totalorder %s162, %s164
      %p168 = scmp.eq.s32.totalorder %s23, 0
      %p169 = por %p167, %p168
      %p170 = scmp.ne.s32.totalorder %s162, %s164
      %p171 = scmp.eq.s32.totalorder %s28, 1
      %p172 = por %p170, %p171
      %p173 = scmp.ne.s32.totalorder %s164, %s165
      %p174 = scmp.eq.s32.totalorder %s28, 0
      %p175 = por %p173, %p174
      %p176 = scmp.ne.s32.totalorder %s164, %s165
      %p177 = scmp.eq.s32.totalorder %s29, 1
      %p178 = por %p176, %p177
      %p180 = scmp.ne.s32.totalorder %s165, %s179
      %p181 = scmp.eq.s32.totalorder %s29, 0
      %p182 = por %p180, %p181
      %s184 = sadd.s32 %s183, 1
      %p187 = scmp.eq.s32.totalorder %s23, 1
      %p188 = scmp.ne.s32.totalorder %s183, %s185
      %p189 = scmp.eq.s32.totalorder %s23, 0
      %p190 = por %p188, %p189
      %p191 = scmp.ne.s32.totalorder %s183, %s185
      %p192 = scmp.eq.s32.totalorder %s28, 1
      %p193 = por %p191, %p192
      %p194 = scmp.ne.s32.totalorder %s185, %s186
      %p195 = scmp.eq.s32.totalorder %s28, 0
      %p196 = por %p194, %p195
      %p197 = scmp.ne.s32.totalorder %s185, %s186
      %p198 = scmp.eq.s32.totalorder %s29, 1
      %p199 = por %p197, %p198
      %p201 = scmp.ne.s32.totalorder %s186, %s200
      %p202 = scmp.eq.s32.totalorder %s29, 0
      %p203 = por %p201, %p202
      %s205 = sadd.s32 %s204, 1
      %p208 = scmp.eq.s32.totalorder %s23, 1
      %p209 = scmp.ne.s32.totalorder %s204, %s206
      %p210 = scmp.eq.s32.totalorder %s23, 0
      %p211 = por %p209, %p210
      %p212 = scmp.ne.s32.totalorder %s204, %s206
      %p213 = scmp.eq.s32.totalorder %s28, 1
      %p214 = por %p212, %p213
      %p215 = scmp.ne.s32.totalorder %s206, %s207
      %p216 = scmp.eq.s32.totalorder %s28, 0
      %p217 = por %p215, %p216
      %p218 = scmp.ne.s32.totalorder %s206, %s207
      %p219 = scmp.eq.s32.totalorder %s29, 1
      %p220 = por %p218, %p219
      %p222 = scmp.ne.s32.totalorder %s207, %s221
      %p223 = scmp.eq.s32.totalorder %s29, 0
      %p224 = por %p222, %p223
      %s226 = sadd.s32 %s225, 1
      %p229 = scmp.eq.s32.totalorder %s23, 1
      %p230 = scmp.ne.s32.totalorder %s225, %s227
      %p231 = scmp.eq.s32.totalorder %s23, 0
      %p232 = por %p230, %p231
      %p233 = scmp.ne.s32.totalorder %s225, %s227
      %p234 = scmp.eq.s32.totalorder %s28, 1
      %p235 = por %p233, %p234
      %p236 = scmp.ne.s32.totalorder %s227, %s228
      %p237 = scmp.eq.s32.totalorder %s28, 0
      %p238 = por %p236, %p237
      %p239 = scmp.ne.s32.totalorder %s227, %s228
      %p240 = scmp.eq.s32.totalorder %s29, 1
      %p241 = por %p239, %p240
      %p243 = scmp.ne.s32.totalorder %s228, %s242
      %p244 = scmp.eq.s32.totalorder %s29, 0
      %p245 = por %p243, %p244
      %s247 = sadd.s32 %s246, 1
      %p250 = scmp.eq.s32.totalorder %s23, 1
      %p251 = scmp.ne.s32.totalorder %s246, %s248
      %p252 = scmp.eq.s32.totalorder %s23, 0
      %p253 = por %p251, %p252
      %p254 = scmp.ne.s32.totalorder %s246, %s248
      %p255 = scmp.eq.s32.totalorder %s28, 1
      %p256 = por %p254, %p255
      %p257 = scmp.ne.s32.totalorder %s248, %s249
      %p258 = scmp.eq.s32.totalorder %s28, 0
      %p259 = por %p257, %p258
      %p260 = scmp.ne.s32.totalorder %s248, %s249
      %p261 = scmp.eq.s32.totalorder %s29, 1
      %p262 = por %p260, %p261
      %p264 = scmp.ne.s32.totalorder %s249, %s263
      %p265 = scmp.eq.s32.totalorder %s29, 0
      %p266 = por %p264, %p265
      %s268 = sadd.s32 %s267, 1
      %p271 = scmp.eq.s32.totalorder %s23, 1
      %p272 = scmp.ne.s32.totalorder %s267, %s269
      %p273 = scmp.eq.s32.totalorder %s23, 0
      %p274 = por %p272, %p273
      %p275 = scmp.ne.s32.totalorder %s267, %s269
      %p276 = scmp.eq.s32.totalorder %s28, 1
      %p277 = por %p275, %p276
      %p278 = scmp.ne.s32.totalorder %s269, %s270
      %p279 = scmp.eq.s32.totalorder %s28, 0
      %p280 = por %p278, %p279
      %p281 = scmp.ne.s32.totalorder %s269, %s270
      %p282 = scmp.eq.s32.totalorder %s29, 1
      %p283 = por %p281, %p282
      %p285 = scmp.ne.s32.totalorder %s270, %s284
      %p286 = scmp.eq.s32.totalorder %s29, 0
      %p287 = por %p285, %p286
      %s289 = sadd.s32 %s288, 1
      %p292 = scmp.eq.s32.totalorder %s23, 1
      %p293 = scmp.ne.s32.totalorder %s288, %s290
      %p294 = scmp.eq.s32.totalorder %s23, 0
      %p295 = por %p293, %p294
      %p296 = scmp.ne.s32.totalorder %s288, %s290
      %p297 = scmp.eq.s32.totalorder %s28, 1
      %p298 = por %p296, %p297
      %p299 = scmp.ne.s32.totalorder %s290, %s291
      %p300 = scmp.eq.s32.totalorder %s28, 0
      %p301 = por %p299, %p300
      %p302 = scmp.ne.s32.totalorder %s290, %s291
      %p303 = scmp.eq.s32.totalorder %s29, 1
      %p304 = por %p302, %p303
      %p306 = scmp.ne.s32.totalorder %s291, %s305
      %p307 = scmp.eq.s32.totalorder %s29, 0
      %p308 = por %p306, %p307
      %s310 = sadd.s32 %s309, 1
      %p313 = scmp.eq.s32.totalorder %s23, 1
      %p314 = scmp.ne.s32.totalorder %s309, %s311
      %p315 = scmp.eq.s32.totalorder %s23, 0
      %p316 = por %p314, %p315
      %p317 = scmp.ne.s32.totalorder %s309, %s311
      %p318 = scmp.eq.s32.totalorder %s28, 1
      %p319 = por %p317, %p318
      %p320 = scmp.ne.s32.totalorder %s311, %s312
      %p321 = scmp.eq.s32.totalorder %s28, 0
      %p322 = por %p320, %p321
      %p323 = scmp.ne.s32.totalorder %s311, %s312
      %p324 = scmp.eq.s32.totalorder %s29, 1
      %p325 = por %p323, %p324
      %p327 = scmp.ne.s32.totalorder %s312, %s326
      %p328 = scmp.eq.s32.totalorder %s29, 0
      %p329 = por %p327, %p328
      %s330 = ssub.s32 %s23, %s30
      %p331 = scmp.eq.s32.totalorder %s330, 0
      %s333 = sadd.s32 %s332, 1
      %s334 = scalar_select %p331, %s332, %s333
      %p337 = pneg %p331
      %p338 = scmp.eq.s32.totalorder %s23, 1
      %p339 = por %p337, %p338
      %p340 = scmp.ne.s32.totalorder %s332, %s335
      %p341 = scmp.eq.s32.totalorder %s23, 0
      %p342 = por %p340, %p341
      %p343 = scmp.ne.s32.totalorder %s332, %s335
      %p344 = scmp.eq.s32.totalorder %s28, 1
      %p345 = por %p343, %p344
      %p346 = scmp.ne.s32.totalorder %s335, %s336
      %p347 = scmp.eq.s32.totalorder %s28, 0
      %p348 = por %p346, %p347
      %p349 = scmp.ne.s32.totalorder %s335, %s336
      %p350 = scmp.eq.s32.totalorder %s29, 1
      %p351 = por %p349, %p350
      %p353 = scmp.ne.s32.totalorder %s336, %s352
      %p354 = scmp.eq.s32.totalorder %s29, 0
      %p355 = por %p353, %p354
      %p356 = scmp.le.s32.totalorder 1, %s23
      %p357 = scmp.lt.s32.totalorder %s23, 3
      %p358 = pnand %p356, %p357
      %p359 = pneg %p358
      // Predicated region
      $region9: #{tpu_custom_call.1} parent=5 // pred_check
        _
      $region10: #{tpu_custom_call.1} parent=5 // pred_check_branch
        %361 = sbr.rel (%p358) target = $region12
      $region11: #{tpu_custom_call.1} parent=5 // pred_region
        %s362 = ssub.s32 %s23, 1
        // Predicated region
        $region13: #{tpu_custom_call.1} parent=11 // pred_check
          %p363 = pneg %p70
        $region14: #{tpu_custom_call.1} parent=11 // pred_check_branch
          %365 = sbr.rel (%p363) target = $region16
        $region15: #{tpu_custom_call.1} parent=11 // pred_region
          _
        $region16: #{tpu_custom_call.1} parent=11 // pred_fallthru
          _
        // Predicated region
        $region17: #{tpu_custom_call.1} parent=11 // pred_check
          %p366 = pneg %p91
        $region18: #{tpu_custom_call.1} parent=11 // pred_check_branch
          %368 = sbr.rel (%p366) target = $region20
        $region19: #{tpu_custom_call.1} parent=11 // pred_region
          _
        $region20: #{tpu_custom_call.1} parent=11 // pred_fallthru
          _
        // Predicated region
        $region21: #{tpu_custom_call.1} parent=11 // pred_check
          %p369 = pneg %p112
        $region22: #{tpu_custom_call.1} parent=11 // pred_check_branch
          %371 = sbr.rel (%p369) target = $region24
        $region23: #{tpu_custom_call.1} parent=11 // pred_region
          _
        $region24: #{tpu_custom_call.1} parent=11 // pred_fallthru
          _
        // Predicated region
        $region25: #{tpu_custom_call.1} parent=11 // pred_check
          %p372 = pneg %p133
        $region26: #{tpu_custom_call.1} parent=11 // pred_check_branch
          %374 = sbr.rel (%p372) target = $region28
        $region27: #{tpu_custom_call.1} parent=11 // pred_region
          _
        $region28: #{tpu_custom_call.1} parent=11 // pred_fallthru
          _
        // Predicated region
        $region29: #{tpu_custom_call.1} parent=11 // pred_check
          %p375 = pneg %p154
        $region30: #{tpu_custom_call.1} parent=11 // pred_check_branch
          %377 = sbr.rel (%p375) target = $region32
        $region31: #{tpu_custom_call.1} parent=11 // pred_region
          _
        $region32: #{tpu_custom_call.1} parent=11 // pred_fallthru
          _
        // Predicated region
        $region33: #{tpu_custom_call.1} parent=11 // pred_check
          %p378 = pneg %p175
        $region34: #{tpu_custom_call.1} parent=11 // pred_check_branch
          %380 = sbr.rel (%p378) target = $region36
        $region35: #{tpu_custom_call.1} parent=11 // pred_region
          _
        $region36: #{tpu_custom_call.1} parent=11 // pred_fallthru
          _
        // Predicated region
        $region37: #{tpu_custom_call.1} parent=11 // pred_check
          %p381 = pneg %p196
        $region38: #{tpu_custom_call.1} parent=11 // pred_check_branch
          %383 = sbr.rel (%p381) target = $region40
        $region39: #{tpu_custom_call.1} parent=11 // pred_region
          _
        $region40: #{tpu_custom_call.1} parent=11 // pred_fallthru
          _
        // Predicated region
        $region41: #{tpu_custom_call.1} parent=11 // pred_check
          %p384 = pneg %p217
        $region42: #{tpu_custom_call.1} parent=11 // pred_check_branch
          %386 = sbr.rel (%p384) target = $region44
        $region43: #{tpu_custom_call.1} parent=11 // pred_region
          _
        $region44: #{tpu_custom_call.1} parent=11 // pred_fallthru
          _
        // Predicated region
        $region45: #{tpu_custom_call.1} parent=11 // pred_check
          %p387 = pneg %p238
        $region46: #{tpu_custom_call.1} parent=11 // pred_check_branch
          %389 = sbr.rel (%p387) target = $region48
        $region47: #{tpu_custom_call.1} parent=11 // pred_region
          _
        $region48: #{tpu_custom_call.1} parent=11 // pred_fallthru
          _
        // Predicated region
        $region49: #{tpu_custom_call.1} parent=11 // pred_check
          %p390 = pneg %p259
        $region50: #{tpu_custom_call.1} parent=11 // pred_check_branch
          %392 = sbr.rel (%p390) target = $region52
        $region51: #{tpu_custom_call.1} parent=11 // pred_region
          _
        $region52: #{tpu_custom_call.1} parent=11 // pred_fallthru
          _
        // Predicated region
        $region53: #{tpu_custom_call.1} parent=11 // pred_check
          %p393 = pneg %p280
        $region54: #{tpu_custom_call.1} parent=11 // pred_check_branch
          %395 = sbr.rel (%p393) target = $region56
        $region55: #{tpu_custom_call.1} parent=11 // pred_region
          _
        $region56: #{tpu_custom_call.1} parent=11 // pred_fallthru
          _
        // Predicated region
        $region57: #{tpu_custom_call.1} parent=11 // pred_check
          %p396 = pneg %p301
        $region58: #{tpu_custom_call.1} parent=11 // pred_check_branch
          %398 = sbr.rel (%p396) target = $region60
        $region59: #{tpu_custom_call.1} parent=11 // pred_region
          _
        $region60: #{tpu_custom_call.1} parent=11 // pred_fallthru
          _
        // Predicated region
        $region61: #{tpu_custom_call.1} parent=11 // pred_check
          %p399 = pneg %p322
        $region62: #{tpu_custom_call.1} parent=11 // pred_check_branch
          %401 = sbr.rel (%p399) target = $region64
        $region63: #{tpu_custom_call.1} parent=11 // pred_region
          _
        $region64: #{tpu_custom_call.1} parent=11 // pred_fallthru
          _
      $region12: #{tpu_custom_call.1} parent=5 // pred_fallthru
        _
      %p402 = scmp.lt.s32.totalorder %s23, 2
      // Predicated region
      $region65: #{tpu_custom_call.1} parent=5 // pred_check
        %p403 = pneg %p402
      $region66: #{tpu_custom_call.1} parent=5 // pred_check_branch
        %405 = sbr.rel (%p403) target = $region68
      $region67: #{tpu_custom_call.1} parent=5 // pred_region
        // Predicated region
        $region69: #{tpu_custom_call.1} parent=67 // pred_check
          %p406 = pneg %p43
        $region70: #{tpu_custom_call.1} parent=67 // pred_check_branch
          %408 = sbr.rel (%p406) target = $region72
        $region71: #{tpu_custom_call.1} parent=67 // pred_region
          %p409 = scmp.lt.s32.totalorder %s23, 1
          %s410 = scalar_select %p409, %s23, 1
          %s411 = smul.addr %s410, 8
          %s412 = scalar_lea.vmem %s0, %s411
        $region72: #{tpu_custom_call.1} parent=67 // pred_fallthru
          _
      $region68: #{tpu_custom_call.1} parent=5 // pred_fallthru
        _
      %p413 = scmp.le.s32.totalorder 1, %s23
      %p414 = scmp.lt.s32.totalorder %s23, 3
      %p415 = pnand %p413, %p414
      %p416 = pneg %p415
      // Predicated region
      $region73: #{tpu_custom_call.1} parent=5 // pred_check
        _
      $region74: #{tpu_custom_call.1} parent=5 // pred_check_branch
        %418 = sbr.rel (%p415) target = $region76
      $region75: #{tpu_custom_call.1} parent=5 // pred_region
        %s419 = ssub.s32 %s23, 1
        %p420 = scmp.lt.s32.totalorder %s28, 1
        %s421 = scalar_select %p420, %s28, 1
        %s422 = smul.addr %s421, 8
        %s423 = scalar_lea.vmem %s0, %s422
        %p424 = pneg %p49
        %p425 = pneg %p46
        %p426 = pneg %p70
        %p427 = pneg %p67
        %p428 = pneg %p91
        %p429 = pneg %p88
        %p430 = pneg %p112
        %p431 = pneg %p109
        %p432 = pneg %p133
        %p433 = pneg %p130
        %p434 = pneg %p154
        %p435 = pneg %p151
        %p436 = pneg %p175
        %p437 = pneg %p172
        %p438 = pneg %p196
        %p439 = pneg %p193
        %p440 = pneg %p217
        %p441 = pneg %p214
        %p442 = pneg %p238
        %p443 = pneg %p235
        %p444 = pneg %p259
        %p445 = pneg %p256
        %p446 = pneg %p280
        %p447 = pneg %p277
        %p448 = pneg %p301
        %p449 = pneg %p298
        %p450 = pneg %p322
        %p451 = pneg %p319
        %p452 = pneg %p348
        %p453 = pneg %p345
        %s454 = sand.u32 %s335, 1
        %s455 = scalar_lea.sflag [#allocation3], %s454
        %s456 = sand.u32 %s335, 1
        %s457 = smul.addr %s456, 8
        %s458 = scalar_lea.vmem [#allocation2], %s457
        %p459 = scmp.lt.s32.totalorder %s28, 1
        %s460 = scalar_select %p459, %s28, 1
        %s461 = smul.addr %s460, 8
        %s462 = scalar_lea.vmem %s0, %s461
        %v464 = vld [vmem:[%s462] sm:$0xff]
        %v465 = vld [vmem:[%s1] sm:$0x1]
        %v466 = vld [vmem:[%s2] sm:$0x1]
        %vm467 = vcmask 261120
        %v468 = vsel %vm467, %v464, 0.0
        %469 = vadd.xlane.f32.xlu0 %v468
        %v470 = vpop.xlane.xlu0 %469
        %v471 = vrcp.pop 32.0
        %v472 = vmul.f32 32.0, %v471
        %v473 = vsub.f32 1.0, %v472
        %v474 = vmul.f32 %v471, %v473
        %v475 = vadd.f32 %v471, %v474
        %vm476 = vweird.f32 %v471
        %v477 = vsel %vm476, %v471, %v475
        %v478 = vmul.f32 %v470, %v477
        %v479 = vsub.f32 %v464, %v478
        %v480 = vmul.f32 %v479, %v479
        %v481 = vsel %vm467, %v480, 0.0
        %482 = vadd.xlane.f32.xlu0 %v481
        %v483 = vpop.xlane.xlu0 %482
        %v484 = vmul.f32 %v483, %v477
        %v485 = vadd.f32 %v484, 1e-05
        %v486 = vrsqrt.pop %v485
        %v487 = vmul.f32 %v486, %v485
        %v488 = vmul.f32 %v487, %v486
        %v489 = vmul.f32 0.5, %v488
        %v490 = vsub.f32 1.5, %v489
        %v491 = vmul.f32 %v486, %v490
        %vm492 = vweird.f32 %v485
        %vm493 = vweird.f32 %v486
        %vm494 = vmor %vm492, %vm493
        %v495 = vsel %vm494, %v486, %v491
        %v496 = vmul.f32 %v479, %v495
        %v497 = vperm.slane %v465, 0
        %v498 = vmul.f32 %v496, %v497
        %v499 = vperm.slane %v466, 0
        %v500 = vadd.f32 %v498, %v499
        %v501 = vpack.c.bf16 %v500, %v500
        %v502 = vld [vmem:[%s3] sm:$0xff]
        %v503 = vld [vmem:[%s3 + $0x8] sm:$0xff]
        %v504 = vld [vmem:[%s3 + $0x10] sm:$0xff]
        %v505 = vld [vmem:[%s3 + $0x18] sm:$0xff]
        %v506 = vld [vmem:[%s3 + $0x20] sm:$0xff]
        %v507 = vld [vmem:[%s3 + $0x28] sm:$0xff]
        %v508 = vld [vmem:[%s3 + $0x30] sm:$0xff]
        %v509 = vld [vmem:[%s3 + $0x38] sm:$0xff]
        %v510 = vld [vmem:[%s3 + $0x40] sm:$0xff]
        %v511 = vld [vmem:[%s3 + $0x48] sm:$0xff]
        %v512 = vld [vmem:[%s3 + $0x50] sm:$0xff]
        %v513 = vld [vmem:[%s3 + $0x58] sm:$0xff]
        %v514 = vld [vmem:[%s3 + $0x60] sm:$0xff]
        %v515 = vld [vmem:[%s3 + $0x68] sm:$0xff]
        %v516 = vld [vmem:[%s3 + $0x70] sm:$0xff]
        %v517 = vld [vmem:[%s3 + $0x78] sm:$0xff]
        %v518 = vld [vmem:[%s3 + $0x80] sm:$0xff]
        %v519 = vld [vmem:[%s3 + $0x88] sm:$0xff]
        %v520 = vld [vmem:[%s3 + $0x90] sm:$0xff]
        %v521 = vld [vmem:[%s3 + $0x98] sm:$0xff]
        %v522 = vld [vmem:[%s3 + $0xa0] sm:$0xff]
        %v523 = vld [vmem:[%s3 + $0xa8] sm:$0xff]
        %v524 = vld [vmem:[%s3 + $0xb0] sm:$0xff]
        %v525 = vld [vmem:[%s3 + $0xb8] sm:$0xff]
        %v550 = vunpack.c.l.b16 %v502
        %v551 = vunpack.c.h.b16 %v502
        %v552 = vunpack.c.l.b16 %v503
        %v553 = vunpack.c.h.b16 %v503
        %v554 = vunpack.c.l.b16 %v504
        %v555 = vunpack.c.h.b16 %v504
        %v556 = vunpack.c.l.b16 %v505
        %v557 = vunpack.c.h.b16 %v505
        %v558 = vunpack.c.l.b16 %v506
        %v559 = vunpack.c.h.b16 %v506
        %v560 = vunpack.c.l.b16 %v507
        %v561 = vunpack.c.h.b16 %v507
        %v562 = vunpack.c.l.b16 %v508
        %v563 = vunpack.c.h.b16 %v508
        %v564 = vunpack.c.l.b16 %v509
        %v565 = vunpack.c.h.b16 %v509
        %v566 = vunpack.c.l.b16 %v510
        %v567 = vunpack.c.h.b16 %v510
        %v568 = vunpack.c.l.b16 %v511
        %v569 = vunpack.c.h.b16 %v511
        %v570 = vunpack.c.l.b16 %v512
        %v571 = vunpack.c.h.b16 %v512
        %v572 = vunpack.c.l.b16 %v513
        %v573 = vunpack.c.h.b16 %v513
        %v574 = vunpack.c.l.b16 %v514
        %v575 = vunpack.c.h.b16 %v514
        %v576 = vunpack.c.l.b16 %v515
        %v577 = vunpack.c.h.b16 %v515
        %v578 = vunpack.c.l.b16 %v516
        %v579 = vunpack.c.h.b16 %v516
        %v580 = vunpack.c.l.b16 %v517
        %v581 = vunpack.c.h.b16 %v517
        %v582 = vunpack.c.l.b16 %v518
        %v583 = vunpack.c.h.b16 %v518
        %v584 = vunpack.c.l.b16 %v519
        %v585 = vunpack.c.h.b16 %v519
        %v586 = vunpack.c.l.b16 %v520
        %v587 = vunpack.c.h.b16 %v520
        %v588 = vunpack.c.l.b16 %v521
        %v589 = vunpack.c.h.b16 %v521
        %v590 = vunpack.c.l.b16 %v522
        %v591 = vunpack.c.h.b16 %v522
        %v592 = vunpack.c.l.b16 %v523
        %v593 = vunpack.c.h.b16 %v523
        %v594 = vunpack.c.l.b16 %v524
        %v595 = vunpack.c.h.b16 %v524
        %v596 = vunpack.c.l.b16 %v525
        %v597 = vunpack.c.h.b16 %v525
        %v598 = vpack.c.b16 %v562, %v550
        %v599 = vpack.c.b16 %v563, %v551
        %v600 = vpack.c.b16 %v564, %v552
        %v601 = vpack.c.b16 %v565, %v553
        %v602 = vpack.c.b16 %v566, %v554
        %v603 = vpack.c.b16 %v567, %v555
        %v604 = vpack.c.b16 %v568, %v556
        %v605 = vpack.c.b16 %v569, %v557
        %v606 = vpack.c.b16 %v570, %v558
        %v607 = vpack.c.b16 %v571, %v559
        %v608 = vpack.c.b16 %v572, %v560
        %v609 = vpack.c.b16 %v573, %v561
        %v610 = vpack.c.b16 %v586, %v574
        %v611 = vpack.c.b16 %v587, %v575
        %v612 = vpack.c.b16 %v588, %v576
        %v613 = vpack.c.b16 %v589, %v577
        %v614 = vpack.c.b16 %v590, %v578
        %v615 = vpack.c.b16 %v591, %v579
        %v616 = vpack.c.b16 %v592, %v580
        %v617 = vpack.c.b16 %v593, %v581
        %v618 = vpack.c.b16 %v594, %v582
        %v619 = vpack.c.b16 %v595, %v583
        %v620 = vpack.c.b16 %v596, %v584
        %v621 = vpack.c.b16 %v597, %v585
        %v647 = vsel %vm467, %v501, 0
        %649 = vmatpush.bf16.msra.mxu0 0
        %650 = vmatpush.bf16.msra.mxu0 0
        %651 = vmatpush.bf16.msra.mxu0 0
        %652 = vmatpush.bf16.msra.mxu0 0
        %653 = vmatpush.bf16.msra.mxu0 0
        %654 = vmatpush.bf16.msra.mxu0 0
        %655 = vmatpush.bf16.msra.mxu0 %v610
        %656 = vmatpush.bf16.msra.mxu0 %v598
        %657 = vmatmul.bf16.gmra.mxu0 %v647
        %v658 = vpop.f32.mrf.mxu0
        %v659 = vadd.f32 0.0, %v658
        %v660 = vpop.f32.mrf.mxu0
        %661 = vdwg.mxu0
        %662 = vmatpush.bf16.msra.mxu0 0
        %663 = vmatpush.bf16.msra.mxu0 0
        %664 = vmatpush.bf16.msra.mxu0 0
        %665 = vmatpush.bf16.msra.mxu0 0
        %666 = vmatpush.bf16.msra.mxu0 0
        %667 = vmatpush.bf16.msra.mxu0 0
        %668 = vmatpush.bf16.msra.mxu0 %v611
        %669 = vmatpush.bf16.msra.mxu0 %v599
        %670 = vmatmul.bf16.gmra.mxu0 %v647
        %v671 = vpop.f32.mrf.mxu0
        %v672 = vadd.f32 0.0, %v671
        %v673 = vpop.f32.mrf.mxu0
        %674 = vdwg.mxu0
        %675 = vmatpush.bf16.msra.mxu0 0
        %676 = vmatpush.bf16.msra.mxu0 0
        %677 = vmatpush.bf16.msra.mxu0 0
        %678 = vmatpush.bf16.msra.mxu0 0
        %679 = vmatpush.bf16.msra.mxu0 0
        %680 = vmatpush.bf16.msra.mxu0 0
        %681 = vmatpush.bf16.msra.mxu0 %v612
        %682 = vmatpush.bf16.msra.mxu0 %v600
        %683 = vmatmul.bf16.gmra.mxu0 %v647
        %v684 = vpop.f32.mrf.mxu0
        %v685 = vadd.f32 0.0, %v684
        %v686 = vpop.f32.mrf.mxu0
        %687 = vdwg.mxu0
        %688 = vmatpush.bf16.msra.mxu0 0
        %689 = vmatpush.bf16.msra.mxu0 0
        %690 = vmatpush.bf16.msra.mxu0 0
        %691 = vmatpush.bf16.msra.mxu0 0
        %692 = vmatpush.bf16.msra.mxu0 0
        %693 = vmatpush.bf16.msra.mxu0 0
        %694 = vmatpush.bf16.msra.mxu0 %v613
        %695 = vmatpush.bf16.msra.mxu0 %v601
        %696 = vmatmul.bf16.gmra.mxu0 %v647
        %v697 = vpop.f32.mrf.mxu0
        %v698 = vadd.f32 0.0, %v697
        %v699 = vpop.f32.mrf.mxu0
        %700 = vdwg.mxu0
        %701 = vmatpush.bf16.msra.mxu0 0
        %702 = vmatpush.bf16.msra.mxu0 0
        %703 = vmatpush.bf16.msra.mxu0 0
        %704 = vmatpush.bf16.msra.mxu0 0
        %705 = vmatpush.bf16.msra.mxu0 0
        %706 = vmatpush.bf16.msra.mxu0 0
        %707 = vmatpush.bf16.msra.mxu0 %v614
        %708 = vmatpush.bf16.msra.mxu0 %v602
        %709 = vmatmul.bf16.gmra.mxu0 %v647
        %v710 = vpop.f32.mrf.mxu0
        %v711 = vadd.f32 0.0, %v710
        %v712 = vpop.f32.mrf.mxu0
        %713 = vdwg.mxu0
        %714 = vmatpush.bf16.msra.mxu0 0
        %715 = vmatpush.bf16.msra.mxu0 0
        %716 = vmatpush.bf16.msra.mxu0 0
        %717 = vmatpush.bf16.msra.mxu0 0
        %718 = vmatpush.bf16.msra.mxu0 0
        %719 = vmatpush.bf16.msra.mxu0 0
        %720 = vmatpush.bf16.msra.mxu0 %v615
        %721 = vmatpush.bf16.msra.mxu0 %v603
        %722 = vmatmul.bf16.gmra.mxu0 %v647
        %v723 = vpop.f32.mrf.mxu0
        %v724 = vadd.f32 0.0, %v723
        %v725 = vpop.f32.mrf.mxu0
        %726 = vdwg.mxu0
        %727 = vmatpush.bf16.msra.mxu0 0
        %728 = vmatpush.bf16.msra.mxu0 0
        %729 = vmatpush.bf16.msra.mxu0 0
        %730 = vmatpush.bf16.msra.mxu0 0
        %731 = vmatpush.bf16.msra.mxu0 0
        %732 = vmatpush.bf16.msra.mxu0 0
        %733 = vmatpush.bf16.msra.mxu0 %v616
        %734 = vmatpush.bf16.msra.mxu0 %v604
        %735 = vmatmul.bf16.gmra.mxu0 %v647
        %v736 = vpop.f32.mrf.mxu0
        %v737 = vadd.f32 0.0, %v736
        %v738 = vpop.f32.mrf.mxu0
        %739 = vdwg.mxu0
        %740 = vmatpush.bf16.msra.mxu0 0
        %741 = vmatpush.bf16.msra.mxu0 0
        %742 = vmatpush.bf16.msra.mxu0 0
        %743 = vmatpush.bf16.msra.mxu0 0
        %744 = vmatpush.bf16.msra.mxu0 0
        %745 = vmatpush.bf16.msra.mxu0 0
        %746 = vmatpush.bf16.msra.mxu0 %v617
        %747 = vmatpush.bf16.msra.mxu0 %v605
        %748 = vmatmul.bf16.gmra.mxu0 %v647
        %v749 = vpop.f32.mrf.mxu0
        %v750 = vadd.f32 0.0, %v749
        %v751 = vpop.f32.mrf.mxu0
        %752 = vdwg.mxu0
        %753 = vmatpush.bf16.msra.mxu0 0
        %754 = vmatpush.bf16.msra.mxu0 0
        %755 = vmatpush.bf16.msra.mxu0 0
        %756 = vmatpush.bf16.msra.mxu0 0
        %757 = vmatpush.bf16.msra.mxu0 0
        %758 = vmatpush.bf16.msra.mxu0 0
        %759 = vmatpush.bf16.msra.mxu0 %v618
        %760 = vmatpush.bf16.msra.mxu0 %v606
        %761 = vmatmul.bf16.gmra.mxu0 %v647
        %v762 = vpop.f32.mrf.mxu0
        %v763 = vadd.f32 0.0, %v762
        %v764 = vpop.f32.mrf.mxu0
        %765 = vdwg.mxu0
        %766 = vmatpush.bf16.msra.mxu0 0
        %767 = vmatpush.bf16.msra.mxu0 0
        %768 = vmatpush.bf16.msra.mxu0 0
        %769 = vmatpush.bf16.msra.mxu0 0
        %770 = vmatpush.bf16.msra.mxu0 0
        %771 = vmatpush.bf16.msra.mxu0 0
        %772 = vmatpush.bf16.msra.mxu0 %v619
        %773 = vmatpush.bf16.msra.mxu0 %v607
        %774 = vmatmul.bf16.gmra.mxu0 %v647
        %v775 = vpop.f32.mrf.mxu0
        %v776 = vadd.f32 0.0, %v775
        %v777 = vpop.f32.mrf.mxu0
        %778 = vdwg.mxu0
        %779 = vmatpush.bf16.msra.mxu0 0
        %780 = vmatpush.bf16.msra.mxu0 0
        %781 = vmatpush.bf16.msra.mxu0 0
        %782 = vmatpush.bf16.msra.mxu0 0
        %783 = vmatpush.bf16.msra.mxu0 0
        %784 = vmatpush.bf16.msra.mxu0 0
        %785 = vmatpush.bf16.msra.mxu0 %v620
        %786 = vmatpush.bf16.msra.mxu0 %v608
        %787 = vmatmul.bf16.gmra.mxu0 %v647
        %v788 = vpop.f32.mrf.mxu0
        %v789 = vadd.f32 0.0, %v788
        %v790 = vpop.f32.mrf.mxu0
        %791 = vdwg.mxu0
        %792 = vmatpush.bf16.msra.mxu0 0
        %793 = vmatpush.bf16.msra.mxu0 0
        %794 = vmatpush.bf16.msra.mxu0 0
        %795 = vmatpush.bf16.msra.mxu0 0
        %796 = vmatpush.bf16.msra.mxu0 0
        %797 = vmatpush.bf16.msra.mxu0 0
        %798 = vmatpush.bf16.msra.mxu0 %v621
        %799 = vmatpush.bf16.msra.mxu0 %v609
        %800 = vmatmul.bf16.gmra.mxu0 %v647
        %v801 = vpop.f32.mrf.mxu0
        %v802 = vadd.f32 0.0, %v801
        %v803 = vpop.f32.mrf.mxu0
        %804 = vdwg.mxu0
        %v805 = vpack.c.bf16 %v659, %v659
        %v806 = vpack.c.bf16 %v711, %v711
        %v807 = vpack.c.bf16 %v763, %v763
        %vm808 = vcmask 523264
        %v810 = vsel %vm808, %v805, 0
        %v813 = vsel %vm808, %v806, 0
        %815 = vmatpush.bf16.xpose.msra.mxu0 0
        %816 = vmatpush.bf16.xpose.msra.mxu0 0
        %817 = vmatpush.bf16.xpose.msra.mxu0 0
        %818 = vmatpush.bf16.xpose.msra.mxu0 0
        %819 = vmatpush.bf16.xpose.msra.mxu0 0
        %820 = vmatpush.bf16.xpose.msra.mxu0 0
        %821 = vmatpush.bf16.xpose.msra.mxu0 0
        %822 = vmatpush.bf16.xpose.msra.mxu0 %v813
        %823 = vmatmul.bf16.gmra.mxu0 %v810
        %v824 = vpop.f32.mrf.mxu0
        %v825 = vadd.f32 0.0, %v824
        %v826 = vpop.f32.mrf.mxu0
        %827 = vdwg.mxu0
        %v828 = vmul.f32 %v825, 0.125
        %vm829 = vcmask 64512
        %v830 = vsel %vm829, %v828, -inf
        %831 = vmax.xlane.f32.xlu0 %v830
        %v832 = vpop.xlane.xlu0 %831
        %v833 = vsub.f32 %v828, %v832
        %v834 = vmul.f32 %v833, 1.442695
        %v835 = vpow.pop %v834
        %v836 = vsel %vm829, %v835, 0.0
        %837 = vadd.xlane.f32.xlu0 %v836
        %v838 = vpop.xlane.xlu0 %837
        %v839 = vrcp.pop %v838
        %v840 = vmul.f32 %v835, %v839
        %v841 = vpack.c.bf16 %v840, %v840
        %v843 = vsel %vm829, %v841, 0
        %vm845 = vcmask 1043456
        %v847 = vsel %vm845, %v807, 0
        %849 = vmatpush.bf16.msra.mxu0 0
        %850 = vmatpush.bf16.msra.mxu0 0
        %851 = vmatpush.bf16.msra.mxu0 0
        %852 = vmatpush.bf16.msra.mxu0 0
        %853 = vmatpush.bf16.msra.mxu0 0
        %854 = vmatpush.bf16.msra.mxu0 0
        %855 = vmatpush.bf16.msra.mxu0 0
        %856 = vmatpush.bf16.msra.mxu0 %v847
        %857 = vmatmul.bf16.gmra.mxu0 %v843
        %v858 = vpop.f32.mrf.mxu0
        %v859 = vadd.f32 0.0, %v858
        %v860 = vpop.f32.mrf.mxu0
        %861 = vdwg.mxu0
        %863 = vrot.lane.b32.xlu0 %v805, 64
        %v864 = vpop.permute.xlu0 %863
        %866 = vrot.lane.b32.xlu0 %v806, 64
        %v867 = vpop.permute.xlu0 %866
        %v869 = vsel %vm808, %v864, 0
        %v872 = vsel %vm808, %v867, 0
        %874 = vmatpush.bf16.xpose.msra.mxu0 0
        %875 = vmatpush.bf16.xpose.msra.mxu0 0
        %876 = vmatpush.bf16.xpose.msra.mxu0 0
        %877 = vmatpush.bf16.xpose.msra.mxu0 0
        %878 = vmatpush.bf16.xpose.msra.mxu0 0
        %879 = vmatpush.bf16.xpose.msra.mxu0 0
        %880 = vmatpush.bf16.xpose.msra.mxu0 0
        %881 = vmatpush.bf16.xpose.msra.mxu0 %v872
        %882 = vmatmul.bf16.gmra.mxu0 %v869
        %v883 = vpop.f32.mrf.mxu0
        %v884 = vadd.f32 0.0, %v883
        %v885 = vpop.f32.mrf.mxu0
        %886 = vdwg.mxu0
        %v887 = vmul.f32 %v884, 0.125
        %v888 = vsel %vm829, %v887, -inf
        %889 = vmax.xlane.f32.xlu0 %v888
        %v890 = vpop.xlane.xlu0 %889
        %v891 = vsub.f32 %v887, %v890
        %v892 = vmul.f32 %v891, 1.442695
        %v893 = vpow.pop %v892
        %v894 = vsel %vm829, %v893, 0.0
        %895 = vadd.xlane.f32.xlu0 %v894
        %v896 = vpop.xlane.xlu0 %895
        %v897 = vrcp.pop %v896
        %v898 = vmul.f32 %v893, %v897
        %v899 = vpack.c.bf16 %v898, %v898
        %901 = vrot.lane.b32.xlu0 %v807, 64
        %v902 = vpop.permute.xlu0 %901
        %v904 = vsel %vm829, %v899, 0
        %v907 = vsel %vm845, %v902, 0
        %909 = vmatpush.bf16.msra.mxu0 0
        %910 = vmatpush.bf16.msra.mxu0 0
        %911 = vmatpush.bf16.msra.mxu0 0
        %912 = vmatpush.bf16.msra.mxu0 0
        %913 = vmatpush.bf16.msra.mxu0 0
        %914 = vmatpush.bf16.msra.mxu0 0
        %915 = vmatpush.bf16.msra.mxu0 0
        %916 = vmatpush.bf16.msra.mxu0 %v907
        %917 = vmatmul.bf16.gmra.mxu0 %v904
        %v918 = vpop.f32.mrf.mxu0
        %v919 = vadd.f32 0.0, %v918
        %v920 = vpop.f32.mrf.mxu0
        %921 = vdwg.mxu0
        %v922 = vpack.c.bf16 %v672, %v672
        %v923 = vpack.c.bf16 %v724, %v724
        %v924 = vpack.c.bf16 %v776, %v776
        %v926 = vsel %vm808, %v922, 0
        %v929 = vsel %vm808, %v923, 0
        %931 = vmatpush.bf16.xpose.msra.mxu0 0
        %932 = vmatpush.bf16.xpose.msra.mxu0 0
        %933 = vmatpush.bf16.xpose.msra.mxu0 0
        %934 = vmatpush.bf16.xpose.msra.mxu0 0
        %935 = vmatpush.bf16.xpose.msra.mxu0 0
        %936 = vmatpush.bf16.xpose.msra.mxu0 0
        %937 = vmatpush.bf16.xpose.msra.mxu0 0
        %938 = vmatpush.bf16.xpose.msra.mxu0 %v929
        %939 = vmatmul.bf16.gmra.mxu0 %v926
        %v940 = vpop.f32.mrf.mxu0
        %v941 = vadd.f32 0.0, %v940
        %v942 = vpop.f32.mrf.mxu0
        %943 = vdwg.mxu0
        %v944 = vmul.f32 %v941, 0.125
        %v945 = vsel %vm829, %v944, -inf
        %946 = vmax.xlane.f32.xlu0 %v945
        %v947 = vpop.xlane.xlu0 %946
        %v948 = vsub.f32 %v944, %v947
        %v949 = vmul.f32 %v948, 1.442695
        %v950 = vpow.pop %v949
        %v951 = vsel %vm829, %v950, 0.0
        %952 = vadd.xlane.f32.xlu0 %v951
        %v953 = vpop.xlane.xlu0 %952
        %v954 = vrcp.pop %v953
        %v955 = vmul.f32 %v950, %v954
        %v956 = vpack.c.bf16 %v955, %v955
        %v958 = vsel %vm829, %v956, 0
        %v961 = vsel %vm845, %v924, 0
        %963 = vmatpush.bf16.msra.mxu0 0
        %964 = vmatpush.bf16.msra.mxu0 0
        %965 = vmatpush.bf16.msra.mxu0 0
        %966 = vmatpush.bf16.msra.mxu0 0
        %967 = vmatpush.bf16.msra.mxu0 0
        %968 = vmatpush.bf16.msra.mxu0 0
        %969 = vmatpush.bf16.msra.mxu0 0
        %970 = vmatpush.bf16.msra.mxu0 %v961
        %971 = vmatmul.bf16.gmra.mxu0 %v958
        %v972 = vpop.f32.mrf.mxu0
        %v973 = vadd.f32 0.0, %v972
        %v974 = vpop.f32.mrf.mxu0
        %975 = vdwg.mxu0
        %977 = vrot.lane.b32.xlu0 %v922, 64
        %v978 = vpop.permute.xlu0 %977
        %980 = vrot.lane.b32.xlu0 %v923, 64
        %v981 = vpop.permute.xlu0 %980
        %v983 = vsel %vm808, %v978, 0
        %v986 = vsel %vm808, %v981, 0
        %988 = vmatpush.bf16.xpose.msra.mxu0 0
        %989 = vmatpush.bf16.xpose.msra.mxu0 0
        %990 = vmatpush.bf16.xpose.msra.mxu0 0
        %991 = vmatpush.bf16.xpose.msra.mxu0 0
        %992 = vmatpush.bf16.xpose.msra.mxu0 0
        %993 = vmatpush.bf16.xpose.msra.mxu0 0
        %994 = vmatpush.bf16.xpose.msra.mxu0 0
        %995 = vmatpush.bf16.xpose.msra.mxu0 %v986
        %996 = vmatmul.bf16.gmra.mxu0 %v983
        %v997 = vpop.f32.mrf.mxu0
        %v998 = vadd.f32 0.0, %v997
        %v999 = vpop.f32.mrf.mxu0
        %1000 = vdwg.mxu0
        %v1001 = vmul.f32 %v998, 0.125
        %v1002 = vsel %vm829, %v1001, -inf
        %1003 = vmax.xlane.f32.xlu0 %v1002
        %v1004 = vpop.xlane.xlu0 %1003
        %v1005 = vsub.f32 %v1001, %v1004
        %v1006 = vmul.f32 %v1005, 1.442695
        %v1007 = vpow.pop %v1006
        %v1008 = vsel %vm829, %v1007, 0.0
        %1009 = vadd.xlane.f32.xlu0 %v1008
        %v1010 = vpop.xlane.xlu0 %1009
        %v1011 = vrcp.pop %v1010
        %v1012 = vmul.f32 %v1007, %v1011
        %v1013 = vpack.c.bf16 %v1012, %v1012
        %1015 = vrot.lane.b32.xlu0 %v924, 64
        %v1016 = vpop.permute.xlu0 %1015
        %v1018 = vsel %vm829, %v1013, 0
        %v1021 = vsel %vm845, %v1016, 0
        %1023 = vmatpush.bf16.msra.mxu0 0
        %1024 = vmatpush.bf16.msra.mxu0 0
        %1025 = vmatpush.bf16.msra.mxu0 0
        %1026 = vmatpush.bf16.msra.mxu0 0
        %1027 = vmatpush.bf16.msra.mxu0 0
        %1028 = vmatpush.bf16.msra.mxu0 0
        %1029 = vmatpush.bf16.msra.mxu0 0
        %1030 = vmatpush.bf16.msra.mxu0 %v1021
        %1031 = vmatmul.bf16.gmra.mxu0 %v1018
        %v1032 = vpop.f32.mrf.mxu0
        %v1033 = vadd.f32 0.0, %v1032
        %v1034 = vpop.f32.mrf.mxu0
        %1035 = vdwg.mxu0
        %v1036 = vpack.c.bf16 %v685, %v685
        %v1037 = vpack.c.bf16 %v737, %v737
        %v1038 = vpack.c.bf16 %v789, %v789
        %v1040 = vsel %vm808, %v1036, 0
        %v1043 = vsel %vm808, %v1037, 0
        %1045 = vmatpush.bf16.xpose.msra.mxu0 0
        %1046 = vmatpush.bf16.xpose.msra.mxu0 0
        %1047 = vmatpush.bf16.xpose.msra.mxu0 0
        %1048 = vmatpush.bf16.xpose.msra.mxu0 0
        %1049 = vmatpush.bf16.xpose.msra.mxu0 0
        %1050 = vmatpush.bf16.xpose.msra.mxu0 0
        %1051 = vmatpush.bf16.xpose.msra.mxu0 0
        %1052 = vmatpush.bf16.xpose.msra.mxu0 %v1043
        %1053 = vmatmul.bf16.gmra.mxu0 %v1040
        %v1054 = vpop.f32.mrf.mxu0
        %v1055 = vadd.f32 0.0, %v1054
        %v1056 = vpop.f32.mrf.mxu0
        %1057 = vdwg.mxu0
        %v1058 = vmul.f32 %v1055, 0.125
        %v1059 = vsel %vm829, %v1058, -inf
        %1060 = vmax.xlane.f32.xlu0 %v1059
        %v1061 = vpop.xlane.xlu0 %1060
        %v1062 = vsub.f32 %v1058, %v1061
        %v1063 = vmul.f32 %v1062, 1.442695
        %v1064 = vpow.pop %v1063
        %v1065 = vsel %vm829, %v1064, 0.0
        %1066 = vadd.xlane.f32.xlu0 %v1065
        %v1067 = vpop.xlane.xlu0 %1066
        %v1068 = vrcp.pop %v1067
        %v1069 = vmul.f32 %v1064, %v1068
        %v1070 = vpack.c.bf16 %v1069, %v1069
        %v1072 = vsel %vm829, %v1070, 0
        %v1075 = vsel %vm845, %v1038, 0
        %1077 = vmatpush.bf16.msra.mxu0 0
        %1078 = vmatpush.bf16.msra.mxu0 0
        %1079 = vmatpush.bf16.msra.mxu0 0
        %1080 = vmatpush.bf16.msra.mxu0 0
        %1081 = vmatpush.bf16.msra.mxu0 0
        %1082 = vmatpush.bf16.msra.mxu0 0
        %1083 = vmatpush.bf16.msra.mxu0 0
        %1084 = vmatpush.bf16.msra.mxu0 %v1075
        %1085 = vmatmul.bf16.gmra.mxu0 %v1072
        %v1086 = vpop.f32.mrf.mxu0
        %v1087 = vadd.f32 0.0, %v1086
        %v1088 = vpop.f32.mrf.mxu0
        %1089 = vdwg.mxu0
        %1091 = vrot.lane.b32.xlu0 %v1036, 64
        %v1092 = vpop.permute.xlu0 %1091
        %1094 = vrot.lane.b32.xlu0 %v1037, 64
        %v1095 = vpop.permute.xlu0 %1094
        %v1097 = vsel %vm808, %v1092, 0
        %v1100 = vsel %vm808, %v1095, 0
        %1102 = vmatpush.bf16.xpose.msra.mxu0 0
        %1103 = vmatpush.bf16.xpose.msra.mxu0 0
        %1104 = vmatpush.bf16.xpose.msra.mxu0 0
        %1105 = vmatpush.bf16.xpose.msra.mxu0 0
        %1106 = vmatpush.bf16.xpose.msra.mxu0 0
        %1107 = vmatpush.bf16.xpose.msra.mxu0 0
        %1108 = vmatpush.bf16.xpose.msra.mxu0 0
        %1109 = vmatpush.bf16.xpose.msra.mxu0 %v1100
        %1110 = vmatmul.bf16.gmra.mxu0 %v1097
        %v1111 = vpop.f32.mrf.mxu0
        %v1112 = vadd.f32 0.0, %v1111
        %v1113 = vpop.f32.mrf.mxu0
        %1114 = vdwg.mxu0
        %v1115 = vmul.f32 %v1112, 0.125
        %v1116 = vsel %vm829, %v1115, -inf
        %1117 = vmax.xlane.f32.xlu0 %v1116
        %v1118 = vpop.xlane.xlu0 %1117
        %v1119 = vsub.f32 %v1115, %v1118
        %v1120 = vmul.f32 %v1119, 1.442695
        %v1121 = vpow.pop %v1120
        %v1122 = vsel %vm829, %v1121, 0.0
        %1123 = vadd.xlane.f32.xlu0 %v1122
        %v1124 = vpop.xlane.xlu0 %1123
        %v1125 = vrcp.pop %v1124
        %v1126 = vmul.f32 %v1121, %v1125
        %v1127 = vpack.c.bf16 %v1126, %v1126
        %1129 = vrot.lane.b32.xlu0 %v1038, 64
        %v1130 = vpop.permute.xlu0 %1129
        %v1132 = vsel %vm829, %v1127, 0
        %v1135 = vsel %vm845, %v1130, 0
        %1137 = vmatpush.bf16.msra.mxu0 0
        %1138 = vmatpush.bf16.msra.mxu0 0
        %1139 = vmatpush.bf16.msra.mxu0 0
        %1140 = vmatpush.bf16.msra.mxu0 0
        %1141 = vmatpush.bf16.msra.mxu0 0
        %1142 = vmatpush.bf16.msra.mxu0 0
        %1143 = vmatpush.bf16.msra.mxu0 0
        %1144 = vmatpush.bf16.msra.mxu0 %v1135
        %1145 = vmatmul.bf16.gmra.mxu0 %v1132
        %v1146 = vpop.f32.mrf.mxu0
        %v1147 = vadd.f32 0.0, %v1146
        %v1148 = vpop.f32.mrf.mxu0
        %1149 = vdwg.mxu0
        %v1150 = vpack.c.bf16 %v698, %v698
        %v1151 = vpack.c.bf16 %v750, %v750
        %v1152 = vpack.c.bf16 %v802, %v802
        %v1154 = vsel %vm808, %v1150, 0
        %v1157 = vsel %vm808, %v1151, 0
        %1159 = vmatpush.bf16.xpose.msra.mxu0 0
        %1160 = vmatpush.bf16.xpose.msra.mxu0 0
        %1161 = vmatpush.bf16.xpose.msra.mxu0 0
        %1162 = vmatpush.bf16.xpose.msra.mxu0 0
        %1163 = vmatpush.bf16.xpose.msra.mxu0 0
        %1164 = vmatpush.bf16.xpose.msra.mxu0 0
        %1165 = vmatpush.bf16.xpose.msra.mxu0 0
        %1166 = vmatpush.bf16.xpose.msra.mxu0 %v1157
        %1167 = vmatmul.bf16.gmra.mxu0 %v1154
        %v1168 = vpop.f32.mrf.mxu0
        %v1169 = vadd.f32 0.0, %v1168
        %v1170 = vpop.f32.mrf.mxu0
        %1171 = vdwg.mxu0
        %v1172 = vmul.f32 %v1169, 0.125
        %v1173 = vsel %vm829, %v1172, -inf
        %1174 = vmax.xlane.f32.xlu0 %v1173
        %v1175 = vpop.xlane.xlu0 %1174
        %v1176 = vsub.f32 %v1172, %v1175
        %v1177 = vmul.f32 %v1176, 1.442695
        %v1178 = vpow.pop %v1177
        %v1179 = vsel %vm829, %v1178, 0.0
        %1180 = vadd.xlane.f32.xlu0 %v1179
        %v1181 = vpop.xlane.xlu0 %1180
        %v1182 = vrcp.pop %v1181
        %v1183 = vmul.f32 %v1178, %v1182
        %v1184 = vpack.c.bf16 %v1183, %v1183
        %v1186 = vsel %vm829, %v1184, 0
        %v1189 = vsel %vm845, %v1152, 0
        %1191 = vmatpush.bf16.msra.mxu0 0
        %1192 = vmatpush.bf16.msra.mxu0 0
        %1193 = vmatpush.bf16.msra.mxu0 0
        %1194 = vmatpush.bf16.msra.mxu0 0
        %1195 = vmatpush.bf16.msra.mxu0 0
        %1196 = vmatpush.bf16.msra.mxu0 0
        %1197 = vmatpush.bf16.msra.mxu0 0
        %1198 = vmatpush.bf16.msra.mxu0 %v1189
        %1199 = vmatmul.bf16.gmra.mxu0 %v1186
        %v1200 = vpop.f32.mrf.mxu0
        %v1201 = vadd.f32 0.0, %v1200
        %v1202 = vpop.f32.mrf.mxu0
        %1203 = vdwg.mxu0
        %1205 = vrot.lane.b32.xlu0 %v1150, 64
        %v1206 = vpop.permute.xlu0 %1205
        %1208 = vrot.lane.b32.xlu0 %v1151, 64
        %v1209 = vpop.permute.xlu0 %1208
        %v1211 = vsel %vm808, %v1206, 0
        %v1214 = vsel %vm808, %v1209, 0
        %1216 = vmatpush.bf16.xpose.msra.mxu0 0
        %1217 = vmatpush.bf16.xpose.msra.mxu0 0
        %1218 = vmatpush.bf16.xpose.msra.mxu0 0
        %1219 = vmatpush.bf16.xpose.msra.mxu0 0
        %1220 = vmatpush.bf16.xpose.msra.mxu0 0
        %1221 = vmatpush.bf16.xpose.msra.mxu0 0
        %1222 = vmatpush.bf16.xpose.msra.mxu0 0
        %1223 = vmatpush.bf16.xpose.msra.mxu0 %v1214
        %1224 = vmatmul.bf16.gmra.mxu0 %v1211
        %v1225 = vpop.f32.mrf.mxu0
        %v1226 = vadd.f32 0.0, %v1225
        %v1227 = vpop.f32.mrf.mxu0
        %1228 = vdwg.mxu0
        %v1229 = vmul.f32 %v1226, 0.125
        %v1230 = vsel %vm829, %v1229, -inf
        %1231 = vmax.xlane.f32.xlu0 %v1230
        %v1232 = vpop.xlane.xlu0 %1231
        %v1233 = vsub.f32 %v1229, %v1232
        %v1234 = vmul.f32 %v1233, 1.442695
        %v1235 = vpow.pop %v1234
        %v1236 = vsel %vm829, %v1235, 0.0
        %1237 = vadd.xlane.f32.xlu0 %v1236
        %v1238 = vpop.xlane.xlu0 %1237
        %v1239 = vrcp.pop %v1238
        %v1240 = vmul.f32 %v1235, %v1239
        %v1241 = vpack.c.bf16 %v1240, %v1240
        %1243 = vrot.lane.b32.xlu0 %v1152, 64
        %v1244 = vpop.permute.xlu0 %1243
        %v1246 = vsel %vm829, %v1241, 0
        %v1249 = vsel %vm845, %v1244, 0
        %1251 = vmatpush.bf16.msra.mxu0 0
        %1252 = vmatpush.bf16.msra.mxu0 0
        %1253 = vmatpush.bf16.msra.mxu0 0
        %1254 = vmatpush.bf16.msra.mxu0 0
        %1255 = vmatpush.bf16.msra.mxu0 0
        %1256 = vmatpush.bf16.msra.mxu0 0
        %1257 = vmatpush.bf16.msra.mxu0 0
        %1258 = vmatpush.bf16.msra.mxu0 %v1249
        %1259 = vmatmul.bf16.gmra.mxu0 %v1246
        %v1260 = vpop.f32.mrf.mxu0
        %v1261 = vadd.f32 0.0, %v1260
        %v1262 = vpop.f32.mrf.mxu0
        %1263 = vdwg.mxu0
        %1265 = vrot.lane.b32.xlu0 %v919, 64
        %v1266 = vpop.permute.xlu0 %1265
        %1269 = vrot.lane.b32.xlu0 %v1033, 64
        %v1270 = vpop.permute.xlu0 %1269
        %1273 = vrot.lane.b32.xlu0 %v1147, 64
        %v1274 = vpop.permute.xlu0 %1273
        %1277 = vrot.lane.b32.xlu0 %v1261, 64
        %v1278 = vpop.permute.xlu0 %1277
        %v1280 = vsel %vm808, %v859, %v1266
        %v1281 = vsel %vm808, %v973, %v1270
        %v1282 = vsel %vm808, %v1087, %v1274
        %v1283 = vsel %vm808, %v1201, %v1278
        %v1284 = vpack.c.bf16 %v1280, %v1280
        %v1285 = vpack.c.bf16 %v1281, %v1281
        %v1286 = vpack.c.bf16 %v1282, %v1282
        %v1287 = vpack.c.bf16 %v1283, %v1283
        %v1288 = vld [vmem:[%s4] sm:$0xf]
        %v1289 = vld [vmem:[%s4 + $0x4] sm:$0xf]
        %v1290 = vld [vmem:[%s4 + $0x8] sm:$0xf]
        %v1291 = vld [vmem:[%s4 + $0xc] sm:$0xf]
        %v1292 = vld [vmem:[%s4 + $0x10] sm:$0xf]
        %v1293 = vld [vmem:[%s4 + $0x14] sm:$0xf]
        %v1294 = vld [vmem:[%s4 + $0x18] sm:$0xf]
        %v1295 = vld [vmem:[%s4 + $0x1c] sm:$0xf]
        %v1296 = vld [vmem:[%s4 + $0x20] sm:$0xf]
        %v1297 = vld [vmem:[%s4 + $0x24] sm:$0xf]
        %v1298 = vld [vmem:[%s4 + $0x28] sm:$0xf]
        %v1299 = vld [vmem:[%s4 + $0x2c] sm:$0xf]
        %v1300 = vld [vmem:[%s4 + $0x30] sm:$0xf]
        %v1301 = vld [vmem:[%s4 + $0x34] sm:$0xf]
        %v1302 = vld [vmem:[%s4 + $0x38] sm:$0xf]
        %v1303 = vld [vmem:[%s4 + $0x3c] sm:$0xf]
        %v1304 = vld [vmem:[%s4 + $0x40] sm:$0xf]
        %v1305 = vld [vmem:[%s4 + $0x44] sm:$0xf]
        %v1306 = vld [vmem:[%s4 + $0x48] sm:$0xf]
        %v1307 = vld [vmem:[%s4 + $0x4c] sm:$0xf]
        %v1308 = vld [vmem:[%s4 + $0x50] sm:$0xf]
        %v1309 = vld [vmem:[%s4 + $0x54] sm:$0xf]
        %v1310 = vld [vmem:[%s4 + $0x58] sm:$0xf]
        %v1311 = vld [vmem:[%s4 + $0x5c] sm:$0xf]
        %v1312 = vld [vmem:[%s4 + $0x60] sm:$0xf]
        %v1313 = vld [vmem:[%s4 + $0x64] sm:$0xf]
        %v1314 = vld [vmem:[%s4 + $0x68] sm:$0xf]
        %v1315 = vld [vmem:[%s4 + $0x6c] sm:$0xf]
        %v1316 = vld [vmem:[%s4 + $0x70] sm:$0xf]
        %v1317 = vld [vmem:[%s4 + $0x74] sm:$0xf]
        %v1318 = vld [vmem:[%s4 + $0x78] sm:$0xf]
        %v1319 = vld [vmem:[%s4 + $0x7c] sm:$0xf]
        %v1320 = vld [vmem:[%s4 + $0x80] sm:$0xf]
        %v1321 = vld [vmem:[%s4 + $0x84] sm:$0xf]
        %v1322 = vld [vmem:[%s4 + $0x88] sm:$0xf]
        %v1323 = vld [vmem:[%s4 + $0x8c] sm:$0xf]
        %v1324 = vld [vmem:[%s4 + $0x90] sm:$0xf]
        %v1325 = vld [vmem:[%s4 + $0x94] sm:$0xf]
        %v1326 = vld [vmem:[%s4 + $0x98] sm:$0xf]
        %v1327 = vld [vmem:[%s4 + $0x9c] sm:$0xf]
        %v1328 = vld [vmem:[%s4 + $0xa0] sm:$0xf]
        %v1329 = vld [vmem:[%s4 + $0xa4] sm:$0xf]
        %v1330 = vld [vmem:[%s4 + $0xa8] sm:$0xf]
        %v1331 = vld [vmem:[%s4 + $0xac] sm:$0xf]
        %v1332 = vld [vmem:[%s4 + $0xb0] sm:$0xf]
        %v1333 = vld [vmem:[%s4 + $0xb4] sm:$0xf]
        %v1334 = vld [vmem:[%s4 + $0xb8] sm:$0xf]
        %v1335 = vld [vmem:[%s4 + $0xbc] sm:$0xf]
        %v1336 = vld [vmem:[%s4 + $0xc0] sm:$0xf]
        %v1337 = vld [vmem:[%s4 + $0xc4] sm:$0xf]
        %v1338 = vld [vmem:[%s4 + $0xc8] sm:$0xf]
        %v1339 = vld [vmem:[%s4 + $0xcc] sm:$0xf]
        %v1340 = vld [vmem:[%s4 + $0xd0] sm:$0xf]
        %v1341 = vld [vmem:[%s4 + $0xd4] sm:$0xf]
        %v1342 = vld [vmem:[%s4 + $0xd8] sm:$0xf]
        %v1343 = vld [vmem:[%s4 + $0xdc] sm:$0xf]
        %v1344 = vld [vmem:[%s4 + $0xe0] sm:$0xf]
        %v1345 = vld [vmem:[%s4 + $0xe4] sm:$0xf]
        %v1346 = vld [vmem:[%s4 + $0xe8] sm:$0xf]
        %v1347 = vld [vmem:[%s4 + $0xec] sm:$0xf]
        %v1348 = vld [vmem:[%s4 + $0xf0] sm:$0xf]
        %v1349 = vld [vmem:[%s4 + $0xf4] sm:$0xf]
        %v1350 = vld [vmem:[%s4 + $0xf8] sm:$0xf]
        %v1351 = vld [vmem:[%s4 + $0xfc] sm:$0xf]
        %v1416 = vunpack.c.l.b16 %v1288
        %v1417 = vunpack.c.l.b16 %v1289
        %v1418 = vunpack.c.l.b16 %v1290
        %v1419 = vunpack.c.l.b16 %v1291
        %v1420 = vunpack.c.l.b16 %v1292
        %v1421 = vunpack.c.l.b16 %v1293
        %v1422 = vunpack.c.l.b16 %v1294
        %v1423 = vunpack.c.l.b16 %v1295
        %v1424 = vunpack.c.l.b16 %v1296
        %v1425 = vunpack.c.l.b16 %v1297
        %v1426 = vunpack.c.l.b16 %v1298
        %v1427 = vunpack.c.l.b16 %v1299
        %v1428 = vunpack.c.l.b16 %v1300
        %v1429 = vunpack.c.l.b16 %v1301
        %v1430 = vunpack.c.l.b16 %v1302
        %v1431 = vunpack.c.l.b16 %v1303
        %v1432 = vunpack.c.l.b16 %v1304
        %v1433 = vunpack.c.l.b16 %v1305
        %v1434 = vunpack.c.l.b16 %v1306
        %v1435 = vunpack.c.l.b16 %v1307
        %v1436 = vunpack.c.l.b16 %v1308
        %v1437 = vunpack.c.l.b16 %v1309
        %v1438 = vunpack.c.l.b16 %v1310
        %v1439 = vunpack.c.l.b16 %v1311
        %v1440 = vunpack.c.l.b16 %v1312
        %v1441 = vunpack.c.l.b16 %v1313
        %v1442 = vunpack.c.l.b16 %v1314
        %v1443 = vunpack.c.l.b16 %v1315
        %v1444 = vunpack.c.l.b16 %v1316
        %v1445 = vunpack.c.l.b16 %v1317
        %v1446 = vunpack.c.l.b16 %v1318
        %v1447 = vunpack.c.l.b16 %v1319
        %v1448 = vunpack.c.l.b16 %v1320
        %v1449 = vunpack.c.l.b16 %v1321
        %v1450 = vunpack.c.l.b16 %v1322
        %v1451 = vunpack.c.l.b16 %v1323
        %v1452 = vunpack.c.l.b16 %v1324
        %v1453 = vunpack.c.l.b16 %v1325
        %v1454 = vunpack.c.l.b16 %v1326
        %v1455 = vunpack.c.l.b16 %v1327
        %v1456 = vunpack.c.l.b16 %v1328
        %v1457 = vunpack.c.l.b16 %v1329
        %v1458 = vunpack.c.l.b16 %v1330
        %v1459 = vunpack.c.l.b16 %v1331
        %v1460 = vunpack.c.l.b16 %v1332
        %v1461 = vunpack.c.l.b16 %v1333
        %v1462 = vunpack.c.l.b16 %v1334
        %v1463 = vunpack.c.l.b16 %v1335
        %v1464 = vunpack.c.l.b16 %v1336
        %v1465 = vunpack.c.l.b16 %v1337
        %v1466 = vunpack.c.l.b16 %v1338
        %v1467 = vunpack.c.l.b16 %v1339
        %v1468 = vunpack.c.l.b16 %v1340
        %v1469 = vunpack.c.l.b16 %v1341
        %v1470 = vunpack.c.l.b16 %v1342
        %v1471 = vunpack.c.l.b16 %v1343
        %v1472 = vunpack.c.l.b16 %v1344
        %v1473 = vunpack.c.l.b16 %v1345
        %v1474 = vunpack.c.l.b16 %v1346
        %v1475 = vunpack.c.l.b16 %v1347
        %v1476 = vunpack.c.l.b16 %v1348
        %v1477 = vunpack.c.l.b16 %v1349
        %v1478 = vunpack.c.l.b16 %v1350
        %v1479 = vunpack.c.l.b16 %v1351
        %v1480 = vpack.c.b16 %v1417, %v1416
        %v1481 = vpack.c.b16 %v1419, %v1418
        %v1482 = vpack.c.b16 %v1421, %v1420
        %v1483 = vpack.c.b16 %v1423, %v1422
        %v1484 = vpack.c.b16 %v1425, %v1424
        %v1485 = vpack.c.b16 %v1427, %v1426
        %v1486 = vpack.c.b16 %v1429, %v1428
        %v1487 = vpack.c.b16 %v1431, %v1430
        %v1488 = vpack.c.b16 %v1433, %v1432
        %v1489 = vpack.c.b16 %v1435, %v1434
        %v1490 = vpack.c.b16 %v1437, %v1436
        %v1491 = vpack.c.b16 %v1439, %v1438
        %v1492 = vpack.c.b16 %v1441, %v1440
        %v1493 = vpack.c.b16 %v1443, %v1442
        %v1494 = vpack.c.b16 %v1445, %v1444
        %v1495 = vpack.c.b16 %v1447, %v1446
        %v1496 = vpack.c.b16 %v1449, %v1448
        %v1497 = vpack.c.b16 %v1451, %v1450
        %v1498 = vpack.c.b16 %v1453, %v1452
        %v1499 = vpack.c.b16 %v1455, %v1454
        %v1500 = vpack.c.b16 %v1457, %v1456
        %v1501 = vpack.c.b16 %v1459, %v1458
        %v1502 = vpack.c.b16 %v1461, %v1460
        %v1503 = vpack.c.b16 %v1463, %v1462
        %v1504 = vpack.c.b16 %v1465, %v1464
        %v1505 = vpack.c.b16 %v1467, %v1466
        %v1506 = vpack.c.b16 %v1469, %v1468
        %v1507 = vpack.c.b16 %v1471, %v1470
        %v1508 = vpack.c.b16 %v1473, %v1472
        %v1509 = vpack.c.b16 %v1475, %v1474
        %v1510 = vpack.c.b16 %v1477, %v1476
        %v1511 = vpack.c.b16 %v1479, %v1478
        %1544 = vmatpush.bf16.msra.mxu0 %v1487
        %1545 = vmatpush.bf16.msra.mxu0 %v1486
        %1546 = vmatpush.bf16.msra.mxu0 %v1485
        %1547 = vmatpush.bf16.msra.mxu0 %v1484
        %1548 = vmatpush.bf16.msra.mxu0 %v1483
        %1549 = vmatpush.bf16.msra.mxu0 %v1482
        %1550 = vmatpush.bf16.msra.mxu0 %v1481
        %1551 = vmatpush.bf16.msra.mxu0 %v1480
        %1552 = vmatmul.bf16.gmra.mxu0 %v1284
        %v1553 = vpop.f32.mrf.mxu0
        %v1554 = vadd.f32 0.0, %v1553
        %v1555 = vpop.f32.mrf.mxu0
        %1556 = vdwg.mxu0
        %1557 = vmatpush.bf16.msra.mxu0 %v1495
        %1558 = vmatpush.bf16.msra.mxu0 %v1494
        %1559 = vmatpush.bf16.msra.mxu0 %v1493
        %1560 = vmatpush.bf16.msra.mxu0 %v1492
        %1561 = vmatpush.bf16.msra.mxu0 %v1491
        %1562 = vmatpush.bf16.msra.mxu0 %v1490
        %1563 = vmatpush.bf16.msra.mxu0 %v1489
        %1564 = vmatpush.bf16.msra.mxu0 %v1488
        %1565 = vmatmul.bf16.gmra.mxu0 %v1285
        %v1566 = vpop.f32.mrf.mxu0
        %v1567 = vadd.f32 %v1554, %v1566
        %v1568 = vpop.f32.mrf.mxu0
        %1569 = vdwg.mxu0
        %1570 = vmatpush.bf16.msra.mxu0 %v1503
        %1571 = vmatpush.bf16.msra.mxu0 %v1502
        %1572 = vmatpush.bf16.msra.mxu0 %v1501
        %1573 = vmatpush.bf16.msra.mxu0 %v1500
        %1574 = vmatpush.bf16.msra.mxu0 %v1499
        %1575 = vmatpush.bf16.msra.mxu0 %v1498
        %1576 = vmatpush.bf16.msra.mxu0 %v1497
        %1577 = vmatpush.bf16.msra.mxu0 %v1496
        %1578 = vmatmul.bf16.gmra.mxu0 %v1286
        %v1579 = vpop.f32.mrf.mxu0
        %v1580 = vadd.f32 %v1567, %v1579
        %v1581 = vpop.f32.mrf.mxu0
        %1582 = vdwg.mxu0
        %1583 = vmatpush.bf16.msra.mxu0 %v1511
        %1584 = vmatpush.bf16.msra.mxu0 %v1510
        %1585 = vmatpush.bf16.msra.mxu0 %v1509
        %1586 = vmatpush.bf16.msra.mxu0 %v1508
        %1587 = vmatpush.bf16.msra.mxu0 %v1507
        %1588 = vmatpush.bf16.msra.mxu0 %v1506
        %1589 = vmatpush.bf16.msra.mxu0 %v1505
        %1590 = vmatpush.bf16.msra.mxu0 %v1504
        %1591 = vmatmul.bf16.gmra.mxu0 %v1287
        %v1592 = vpop.f32.mrf.mxu0
        %v1593 = vadd.f32 %v1580, %v1592
        %v1594 = vpop.f32.mrf.mxu0
        %1595 = vdwg.mxu0
        %v1596 = vadd.f32 %v464, %v1593
        %v1597 = vld [vmem:[%s5] sm:$0x1]
        %v1598 = vperm.slane %v1597, 0
        %v1599 = vadd.f32 %v1596, %v1598
        %v1600 = vld [vmem:[%s6] sm:$0x1]
        %v1601 = vld [vmem:[%s7] sm:$0x1]
        %v1602 = vsel %vm467, %v1599, 0.0
        %1603 = vadd.xlane.f32.xlu0 %v1602
        %v1604 = vpop.xlane.xlu0 %1603
        %v1605 = vmul.f32 %v1604, %v477
        %v1606 = vsub.f32 %v1599, %v1605
        %v1607 = vmul.f32 %v1606, %v1606
        %v1608 = vsel %vm467, %v1607, 0.0
        %1609 = vadd.xlane.f32.xlu0 %v1608
        %v1610 = vpop.xlane.xlu0 %1609
        %v1611 = vmul.f32 %v1610, %v477
        %v1612 = vadd.f32 %v1611, 1e-05
        %v1613 = vrsqrt.pop %v1612
        %v1614 = vmul.f32 %v1613, %v1612
        %v1615 = vmul.f32 %v1614, %v1613
        %v1616 = vmul.f32 0.5, %v1615
        %v1617 = vsub.f32 1.5, %v1616
        %v1618 = vmul.f32 %v1613, %v1617
        %vm1619 = vweird.f32 %v1612
        %vm1620 = vweird.f32 %v1613
        %vm1621 = vmor %vm1619, %vm1620
        %v1622 = vsel %vm1621, %v1613, %v1618
        %v1623 = vmul.f32 %v1606, %v1622
        %v1624 = vperm.slane %v1600, 0
        %v1625 = vmul.f32 %v1623, %v1624
        %v1626 = vperm.slane %v1601, 0
        %v1627 = vadd.f32 %v1625, %v1626
        %v1628 = vpack.c.bf16 %v1627, %v1627
        %v1629 = vld [vmem:[%s8] sm:$0xf]
        %v1630 = vld [vmem:[%s8 + $0x4] sm:$0xf]
        %v1631 = vld [vmem:[%s8 + $0x8] sm:$0xf]
        %v1632 = vld [vmem:[%s8 + $0xc] sm:$0xf]
        %v1633 = vld [vmem:[%s9] sm:$0x1]
        %v1634 = vperm.slane %v1633, 0
        %v1639 = vunpack.c.l.b16 %v1629
        %v1640 = vunpack.c.l.b16 %v1630
        %v1641 = vunpack.c.l.b16 %v1631
        %v1642 = vunpack.c.l.b16 %v1632
        %v1643 = vpack.c.b16 %v1640, %v1639
        %v1644 = vpack.c.b16 %v1642, %v1641
        %v1648 = vsel %vm467, %v1628, 0
        %1650 = vmatpush.bf16.msra.mxu0 0
        %1651 = vmatpush.bf16.msra.mxu0 0
        %1652 = vmatpush.bf16.msra.mxu0 0
        %1653 = vmatpush.bf16.msra.mxu0 0
        %1654 = vmatpush.bf16.msra.mxu0 0
        %1655 = vmatpush.bf16.msra.mxu0 0
        %1656 = vmatpush.bf16.msra.mxu0 %v1644
        %1657 = vmatpush.bf16.msra.mxu0 %v1643
        %1658 = vmatmul.bf16.gmra.mxu0 %v1648
        %v1659 = vpop.f32.mrf.mxu0
        %v1660 = vadd.f32 %v1634, %v1659
        %v1661 = vpop.f32.mrf.mxu0
        %1662 = vdwg.mxu0
        %v1663 = vmul.f32 %v1660, 0.5
        %v1664 = vmul.f32 %v1660, 0.70710677
        %v1665 = vmul.f32 %v1664, %v1664
        %v1666 = vmin.f32 16.0, %v1665
        %v1667 = vmul.f32 %v1666, 2.1237322e-06
        %v1668 = vadd.f32 %v1667, 0.00028619796
        %v1669 = vmul.f32 %v1666, %v1668
        %v1670 = vadd.f32 %v1669, 0.0036580483
        %v1671 = vmul.f32 %v1666, %v1670
        %v1672 = vadd.f32 %v1671, 0.05243302
        %v1673 = vmul.f32 %v1666, %v1672
        %v1674 = vadd.f32 %v1673, 0.18741608
        %v1675 = vmul.f32 %v1666, %v1674
        %v1676 = vadd.f32 %v1675, 1.1283791
        %v1677 = vmul.f32 %v1664, %v1676
        %v1678 = vmul.f32 %v1666, 3.8918573e-05
        %v1679 = vadd.f32 %v1678, 0.001143296
        %v1680 = vmul.f32 %v1666, %v1679
        %v1681 = vadd.f32 %v1680, 0.014752088
        %v1682 = vmul.f32 %v1666, %v1681
        %v1683 = vadd.f32 %v1682, 0.112945676
        %v1684 = vmul.f32 %v1666, %v1683
        %v1685 = vadd.f32 %v1684, 0.4994258
        %v1686 = vmul.f32 %v1666, %v1685
        %v1687 = vadd.f32 %v1686, 1.0
        %v1688 = vrcp.pop %v1687
        %v1689 = vmul.f32 %v1687, %v1688
        %v1690 = vsub.f32 1.0, %v1689
        %v1691 = vmul.f32 %v1688, %v1690
        %v1692 = vadd.f32 %v1688, %v1691
        %vm1693 = vweird.f32 %v1687
        %vm1694 = vweird.f32 %v1688
        %vm1695 = vmor %vm1693, %vm1694
        %v1696 = vsel %vm1695, %v1688, %v1692
        %v1697 = vand.u32 2147483647, %v1687
        %vm1698 = vcmp.eq.f32.partialorder %v1697, 8.507059e+37
        %v1699 = vand.u32 %v1687, 2147483648
        %v1700 = vor.u32 1.1754944e-38, %v1699
        %v1701 = vsel %vm1698, %v1700, %v1696
        %v1702 = vmul.f32 %v1677, %v1701
        %v1703 = vmin.f32 %v1702, 1.0
        %v1704 = vmax.f32 %v1703, -1.0
        %v1705 = vadd.f32 %v1704, 1.0
        %v1706 = vmul.f32 %v1663, %v1705
        %v1707 = vpack.c.bf16 %v1706, %v1706
        %v1708 = vld [vmem:[%s10] sm:$0xf]
        %v1709 = vld [vmem:[%s10 + $0x4] sm:$0xf]
        %v1710 = vld [vmem:[%s10 + $0x8] sm:$0xf]
        %v1711 = vld [vmem:[%s10 + $0xc] sm:$0xf]
        %v1712 = vld [vmem:[%s10 + $0x10] sm:$0xf]
        %v1713 = vld [vmem:[%s10 + $0x14] sm:$0xf]
        %v1714 = vld [vmem:[%s10 + $0x18] sm:$0xf]
        %v1715 = vld [vmem:[%s10 + $0x1c] sm:$0xf]
        %v1716 = vld [vmem:[%s10 + $0x20] sm:$0xf]
        %v1717 = vld [vmem:[%s10 + $0x24] sm:$0xf]
        %v1718 = vld [vmem:[%s10 + $0x28] sm:$0xf]
        %v1719 = vld [vmem:[%s10 + $0x2c] sm:$0xf]
        %v1720 = vld [vmem:[%s10 + $0x30] sm:$0xf]
        %v1721 = vld [vmem:[%s10 + $0x34] sm:$0xf]
        %v1722 = vld [vmem:[%s10 + $0x38] sm:$0xf]
        %v1723 = vld [vmem:[%s10 + $0x3c] sm:$0xf]
        %v1724 = vld [vmem:[%s11] sm:$0x1]
        %v1725 = vperm.slane %v1724, 0
        %v1742 = vunpack.c.l.b16 %v1708
        %v1743 = vunpack.c.l.b16 %v1709
        %v1744 = vunpack.c.l.b16 %v1710
        %v1745 = vunpack.c.l.b16 %v1711
        %v1746 = vunpack.c.l.b16 %v1712
        %v1747 = vunpack.c.l.b16 %v1713
        %v1748 = vunpack.c.l.b16 %v1714
        %v1749 = vunpack.c.l.b16 %v1715
        %v1750 = vunpack.c.l.b16 %v1716
        %v1751 = vunpack.c.l.b16 %v1717
        %v1752 = vunpack.c.l.b16 %v1718
        %v1753 = vunpack.c.l.b16 %v1719
        %v1754 = vunpack.c.l.b16 %v1720
        %v1755 = vunpack.c.l.b16 %v1721
        %v1756 = vunpack.c.l.b16 %v1722
        %v1757 = vunpack.c.l.b16 %v1723
        %v1758 = vpack.c.b16 %v1743, %v1742
        %v1759 = vpack.c.b16 %v1745, %v1744
        %v1760 = vpack.c.b16 %v1747, %v1746
        %v1761 = vpack.c.b16 %v1749, %v1748
        %v1762 = vpack.c.b16 %v1751, %v1750
        %v1763 = vpack.c.b16 %v1753, %v1752
        %v1764 = vpack.c.b16 %v1755, %v1754
        %v1765 = vpack.c.b16 %v1757, %v1756
        %1774 = vmatpush.bf16.msra.mxu0 %v1765
        %1775 = vmatpush.bf16.msra.mxu0 %v1764
        %1776 = vmatpush.bf16.msra.mxu0 %v1763
        %1777 = vmatpush.bf16.msra.mxu0 %v1762
        %1778 = vmatpush.bf16.msra.mxu0 %v1761
        %1779 = vmatpush.bf16.msra.mxu0 %v1760
        %1780 = vmatpush.bf16.msra.mxu0 %v1759
        %1781 = vmatpush.bf16.msra.mxu0 %v1758
        %1782 = vmatmul.bf16.gmra.mxu0 %v1707
        %v1783 = vpop.f32.mrf.mxu0
        %v1784 = vadd.f32 %v1725, %v1783
        %v1785 = vpop.f32.mrf.mxu0
        %1786 = vdwg.mxu0
        %v1787 = vadd.f32 %v1599, %v1784
        %v1788 = vld [vmem:[%s1 + $0x1] sm:$0x1]
        %v1789 = vld [vmem:[%s2 + $0x1] sm:$0x1]
        %v1790 = vsel %vm467, %v1787, 0.0
        %1791 = vadd.xlane.f32.xlu0 %v1790
        %v1792 = vpop.xlane.xlu0 %1791
        %v1793 = vmul.f32 %v1792, %v477
        %v1794 = vsub.f32 %v1787, %v1793
        %v1795 = vmul.f32 %v1794, %v1794
        %v1796 = vsel %vm467, %v1795, 0.0
        %1797 = vadd.xlane.f32.xlu0 %v1796
        %v1798 = vpop.xlane.xlu0 %1797
        %v1799 = vmul.f32 %v1798, %v477
        %v1800 = vadd.f32 %v1799, 1e-05
        %v1801 = vrsqrt.pop %v1800
        %v1802 = vmul.f32 %v1801, %v1800
        %v1803 = vmul.f32 %v1802, %v1801
        %v1804 = vmul.f32 0.5, %v1803
        %v1805 = vsub.f32 1.5, %v1804
        %v1806 = vmul.f32 %v1801, %v1805
        %vm1807 = vweird.f32 %v1800
        %vm1808 = vweird.f32 %v1801
        %vm1809 = vmor %vm1807, %vm1808
        %v1810 = vsel %vm1809, %v1801, %v1806
        %v1811 = vmul.f32 %v1794, %v1810
        %v1812 = vperm.slane %v1788, 0
        %v1813 = vmul.f32 %v1811, %v1812
        %v1814 = vperm.slane %v1789, 0
        %v1815 = vadd.f32 %v1813, %v1814
        %v1816 = vpack.c.bf16 %v1815, %v1815
        %s1817 = scalar_lea.vmem %s3, 192
        %v1818 = vld [vmem:[%s1817] sm:$0xff]
        %v1819 = vld [vmem:[%s1817 + $0x8] sm:$0xff]
        %v1820 = vld [vmem:[%s1817 + $0x10] sm:$0xff]
        %v1821 = vld [vmem:[%s1817 + $0x18] sm:$0xff]
        %v1822 = vld [vmem:[%s1817 + $0x20] sm:$0xff]
        %v1823 = vld [vmem:[%s1817 + $0x28] sm:$0xff]
        %v1824 = vld [vmem:[%s1817 + $0x30] sm:$0xff]
        %v1825 = vld [vmem:[%s1817 + $0x38] sm:$0xff]
        %v1826 = vld [vmem:[%s1817 + $0x40] sm:$0xff]
        %v1827 = vld [vmem:[%s1817 + $0x48] sm:$0xff]
        %v1828 = vld [vmem:[%s1817 + $0x50] sm:$0xff]
        %v1829 = vld [vmem:[%s1817 + $0x58] sm:$0xff]
        %v1830 = vld [vmem:[%s1817 + $0x60] sm:$0xff]
        %v1831 = vld [vmem:[%s1817 + $0x68] sm:$0xff]
        %v1832 = vld [vmem:[%s1817 + $0x70] sm:$0xff]
        %v1833 = vld [vmem:[%s1817 + $0x78] sm:$0xff]
        %v1834 = vld [vmem:[%s1817 + $0x80] sm:$0xff]
        %v1835 = vld [vmem:[%s1817 + $0x88] sm:$0xff]
        %v1836 = vld [vmem:[%s1817 + $0x90] sm:$0xff]
        %v1837 = vld [vmem:[%s1817 + $0x98] sm:$0xff]
        %v1838 = vld [vmem:[%s1817 + $0xa0] sm:$0xff]
        %v1839 = vld [vmem:[%s1817 + $0xa8] sm:$0xff]
        %v1840 = vld [vmem:[%s1817 + $0xb0] sm:$0xff]
        %v1841 = vld [vmem:[%s1817 + $0xb8] sm:$0xff]
        %v1866 = vunpack.c.l.b16 %v1818
        %v1867 = vunpack.c.h.b16 %v1818
        %v1868 = vunpack.c.l.b16 %v1819
        %v1869 = vunpack.c.h.b16 %v1819
        %v1870 = vunpack.c.l.b16 %v1820
        %v1871 = vunpack.c.h.b16 %v1820
        %v1872 = vunpack.c.l.b16 %v1821
        %v1873 = vunpack.c.h.b16 %v1821
        %v1874 = vunpack.c.l.b16 %v1822
        %v1875 = vunpack.c.h.b16 %v1822
        %v1876 = vunpack.c.l.b16 %v1823
        %v1877 = vunpack.c.h.b16 %v1823
        %v1878 = vunpack.c.l.b16 %v1824
        %v1879 = vunpack.c.h.b16 %v1824
        %v1880 = vunpack.c.l.b16 %v1825
        %v1881 = vunpack.c.h.b16 %v1825
        %v1882 = vunpack.c.l.b16 %v1826
        %v1883 = vunpack.c.h.b16 %v1826
        %v1884 = vunpack.c.l.b16 %v1827
        %v1885 = vunpack.c.h.b16 %v1827
        %v1886 = vunpack.c.l.b16 %v1828
        %v1887 = vunpack.c.h.b16 %v1828
        %v1888 = vunpack.c.l.b16 %v1829
        %v1889 = vunpack.c.h.b16 %v1829
        %v1890 = vunpack.c.l.b16 %v1830
        %v1891 = vunpack.c.h.b16 %v1830
        %v1892 = vunpack.c.l.b16 %v1831
        %v1893 = vunpack.c.h.b16 %v1831
        %v1894 = vunpack.c.l.b16 %v1832
        %v1895 = vunpack.c.h.b16 %v1832
        %v1896 = vunpack.c.l.b16 %v1833
        %v1897 = vunpack.c.h.b16 %v1833
        %v1898 = vunpack.c.l.b16 %v1834
        %v1899 = vunpack.c.h.b16 %v1834
        %v1900 = vunpack.c.l.b16 %v1835
        %v1901 = vunpack.c.h.b16 %v1835
        %v1902 = vunpack.c.l.b16 %v1836
        %v1903 = vunpack.c.h.b16 %v1836
        %v1904 = vunpack.c.l.b16 %v1837
        %v1905 = vunpack.c.h.b16 %v1837
        %v1906 = vunpack.c.l.b16 %v1838
        %v1907 = vunpack.c.h.b16 %v1838
        %v1908 = vunpack.c.l.b16 %v1839
        %v1909 = vunpack.c.h.b16 %v1839
        %v1910 = vunpack.c.l.b16 %v1840
        %v1911 = vunpack.c.h.b16 %v1840
        %v1912 = vunpack.c.l.b16 %v1841
        %v1913 = vunpack.c.h.b16 %v1841
        %v1914 = vpack.c.b16 %v1878, %v1866
        %v1915 = vpack.c.b16 %v1879, %v1867
        %v1916 = vpack.c.b16 %v1880, %v1868
        %v1917 = vpack.c.b16 %v1881, %v1869
        %v1918 = vpack.c.b16 %v1882, %v1870
        %v1919 = vpack.c.b16 %v1883, %v1871
        %v1920 = vpack.c.b16 %v1884, %v1872
        %v1921 = vpack.c.b16 %v1885, %v1873
        %v1922 = vpack.c.b16 %v1886, %v1874
        %v1923 = vpack.c.b16 %v1887, %v1875
        %v1924 = vpack.c.b16 %v1888, %v1876
        %v1925 = vpack.c.b16 %v1889, %v1877
        %v1926 = vpack.c.b16 %v1902, %v1890
        %v1927 = vpack.c.b16 %v1903, %v1891
        %v1928 = vpack.c.b16 %v1904, %v1892
        %v1929 = vpack.c.b16 %v1905, %v1893
        %v1930 = vpack.c.b16 %v1906, %v1894
        %v1931 = vpack.c.b16 %v1907, %v1895
        %v1932 = vpack.c.b16 %v1908, %v1896
        %v1933 = vpack.c.b16 %v1909, %v1897
        %v1934 = vpack.c.b16 %v1910, %v1898
        %v1935 = vpack.c.b16 %v1911, %v1899
        %v1936 = vpack.c.b16 %v1912, %v1900
        %v1937 = vpack.c.b16 %v1913, %v1901
        %v1963 = vsel %vm467, %v1816, 0
        %1965 = vmatpush.bf16.msra.mxu0 0
        %1966 = vmatpush.bf16.msra.mxu0 0
        %1967 = vmatpush.bf16.msra.mxu0 0
        %1968 = vmatpush.bf16.msra.mxu0 0
        %1969 = vmatpush.bf16.msra.mxu0 0
        %1970 = vmatpush.bf16.msra.mxu0 0
        %1971 = vmatpush.bf16.msra.mxu0 %v1926
        %1972 = vmatpush.bf16.msra.mxu0 %v1914
        %1973 = vmatmul.bf16.gmra.mxu0 %v1963
        %v1974 = vpop.f32.mrf.mxu0
        %v1975 = vadd.f32 0.0, %v1974
        %v1976 = vpop.f32.mrf.mxu0
        %1977 = vdwg.mxu0
        %1978 = vmatpush.bf16.msra.mxu0 0
        %1979 = vmatpush.bf16.msra.mxu0 0
        %1980 = vmatpush.bf16.msra.mxu0 0
        %1981 = vmatpush.bf16.msra.mxu0 0
        %1982 = vmatpush.bf16.msra.mxu0 0
        %1983 = vmatpush.bf16.msra.mxu0 0
        %1984 = vmatpush.bf16.msra.mxu0 %v1927
        %1985 = vmatpush.bf16.msra.mxu0 %v1915
        %1986 = vmatmul.bf16.gmra.mxu0 %v1963
        %v1987 = vpop.f32.mrf.mxu0
        %v1988 = vadd.f32 0.0, %v1987
        %v1989 = vpop.f32.mrf.mxu0
        %1990 = vdwg.mxu0
        %1991 = vmatpush.bf16.msra.mxu0 0
        %1992 = vmatpush.bf16.msra.mxu0 0
        %1993 = vmatpush.bf16.msra.mxu0 0
        %1994 = vmatpush.bf16.msra.mxu0 0
        %1995 = vmatpush.bf16.msra.mxu0 0
        %1996 = vmatpush.bf16.msra.mxu0 0
        %1997 = vmatpush.bf16.msra.mxu0 %v1928
        %1998 = vmatpush.bf16.msra.mxu0 %v1916
        %1999 = vmatmul.bf16.gmra.mxu0 %v1963
        %v2000 = vpop.f32.mrf.mxu0
        %v2001 = vadd.f32 0.0, %v2000
        %v2002 = vpop.f32.mrf.mxu0
        %2003 = vdwg.mxu0
        %2004 = vmatpush.bf16.msra.mxu0 0
        %2005 = vmatpush.bf16.msra.mxu0 0
        %2006 = vmatpush.bf16.msra.mxu0 0
        %2007 = vmatpush.bf16.msra.mxu0 0
        %2008 = vmatpush.bf16.msra.mxu0 0
        %2009 = vmatpush.bf16.msra.mxu0 0
        %2010 = vmatpush.bf16.msra.mxu0 %v1929
        %2011 = vmatpush.bf16.msra.mxu0 %v1917
        %2012 = vmatmul.bf16.gmra.mxu0 %v1963
        %v2013 = vpop.f32.mrf.mxu0
        %v2014 = vadd.f32 0.0, %v2013
        %v2015 = vpop.f32.mrf.mxu0
        %2016 = vdwg.mxu0
        %2017 = vmatpush.bf16.msra.mxu0 0
        %2018 = vmatpush.bf16.msra.mxu0 0
        %2019 = vmatpush.bf16.msra.mxu0 0
        %2020 = vmatpush.bf16.msra.mxu0 0
        %2021 = vmatpush.bf16.msra.mxu0 0
        %2022 = vmatpush.bf16.msra.mxu0 0
        %2023 = vmatpush.bf16.msra.mxu0 %v1930
        %2024 = vmatpush.bf16.msra.mxu0 %v1918
        %2025 = vmatmul.bf16.gmra.mxu0 %v1963
        %v2026 = vpop.f32.mrf.mxu0
        %v2027 = vadd.f32 0.0, %v2026
        %v2028 = vpop.f32.mrf.mxu0
        %2029 = vdwg.mxu0
        %2030 = vmatpush.bf16.msra.mxu0 0
        %2031 = vmatpush.bf16.msra.mxu0 0
        %2032 = vmatpush.bf16.msra.mxu0 0
        %2033 = vmatpush.bf16.msra.mxu0 0
        %2034 = vmatpush.bf16.msra.mxu0 0
        %2035 = vmatpush.bf16.msra.mxu0 0
        %2036 = vmatpush.bf16.msra.mxu0 %v1931
        %2037 = vmatpush.bf16.msra.mxu0 %v1919
        %2038 = vmatmul.bf16.gmra.mxu0 %v1963
        %v2039 = vpop.f32.mrf.mxu0
        %v2040 = vadd.f32 0.0, %v2039
        %v2041 = vpop.f32.mrf.mxu0
        %2042 = vdwg.mxu0
        %2043 = vmatpush.bf16.msra.mxu0 0
        %2044 = vmatpush.bf16.msra.mxu0 0
        %2045 = vmatpush.bf16.msra.mxu0 0
        %2046 = vmatpush.bf16.msra.mxu0 0
        %2047 = vmatpush.bf16.msra.mxu0 0
        %2048 = vmatpush.bf16.msra.mxu0 0
        %2049 = vmatpush.bf16.msra.mxu0 %v1932
        %2050 = vmatpush.bf16.msra.mxu0 %v1920
        %2051 = vmatmul.bf16.gmra.mxu0 %v1963
        %v2052 = vpop.f32.mrf.mxu0
        %v2053 = vadd.f32 0.0, %v2052
        %v2054 = vpop.f32.mrf.mxu0
        %2055 = vdwg.mxu0
        %2056 = vmatpush.bf16.msra.mxu0 0
        %2057 = vmatpush.bf16.msra.mxu0 0
        %2058 = vmatpush.bf16.msra.mxu0 0
        %2059 = vmatpush.bf16.msra.mxu0 0
        %2060 = vmatpush.bf16.msra.mxu0 0
        %2061 = vmatpush.bf16.msra.mxu0 0
        %2062 = vmatpush.bf16.msra.mxu0 %v1933
        %2063 = vmatpush.bf16.msra.mxu0 %v1921
        %2064 = vmatmul.bf16.gmra.mxu0 %v1963
        %v2065 = vpop.f32.mrf.mxu0
        %v2066 = vadd.f32 0.0, %v2065
        %v2067 = vpop.f32.mrf.mxu0
        %2068 = vdwg.mxu0
        %2069 = vmatpush.bf16.msra.mxu0 0
        %2070 = vmatpush.bf16.msra.mxu0 0
        %2071 = vmatpush.bf16.msra.mxu0 0
        %2072 = vmatpush.bf16.msra.mxu0 0
        %2073 = vmatpush.bf16.msra.mxu0 0
        %2074 = vmatpush.bf16.msra.mxu0 0
        %2075 = vmatpush.bf16.msra.mxu0 %v1934
        %2076 = vmatpush.bf16.msra.mxu0 %v1922
        %2077 = vmatmul.bf16.gmra.mxu0 %v1963
        %v2078 = vpop.f32.mrf.mxu0
        %v2079 = vadd.f32 0.0, %v2078
        %v2080 = vpop.f32.mrf.mxu0
        %2081 = vdwg.mxu0
        %2082 = vmatpush.bf16.msra.mxu0 0
        %2083 = vmatpush.bf16.msra.mxu0 0
        %2084 = vmatpush.bf16.msra.mxu0 0
        %2085 = vmatpush.bf16.msra.mxu0 0
        %2086 = vmatpush.bf16.msra.mxu0 0
        %2087 = vmatpush.bf16.msra.mxu0 0
        %2088 = vmatpush.bf16.msra.mxu0 %v1935
        %2089 = vmatpush.bf16.msra.mxu0 %v1923
        %2090 = vmatmul.bf16.gmra.mxu0 %v1963
        %v2091 = vpop.f32.mrf.mxu0
        %v2092 = vadd.f32 0.0, %v2091
        %v2093 = vpop.f32.mrf.mxu0
        %2094 = vdwg.mxu0
        %2095 = vmatpush.bf16.msra.mxu0 0
        %2096 = vmatpush.bf16.msra.mxu0 0
        %2097 = vmatpush.bf16.msra.mxu0 0
        %2098 = vmatpush.bf16.msra.mxu0 0
        %2099 = vmatpush.bf16.msra.mxu0 0
        %2100 = vmatpush.bf16.msra.mxu0 0
        %2101 = vmatpush.bf16.msra.mxu0 %v1936
        %2102 = vmatpush.bf16.msra.mxu0 %v1924
        %2103 = vmatmul.bf16.gmra.mxu0 %v1963
        %v2104 = vpop.f32.mrf.mxu0
        %v2105 = vadd.f32 0.0, %v2104
        %v2106 = vpop.f32.mrf.mxu0
        %2107 = vdwg.mxu0
        %2108 = vmatpush.bf16.msra.mxu0 0
        %2109 = vmatpush.bf16.msra.mxu0 0
        %2110 = vmatpush.bf16.msra.mxu0 0
        %2111 = vmatpush.bf16.msra.mxu0 0
        %2112 = vmatpush.bf16.msra.mxu0 0
        %2113 = vmatpush.bf16.msra.mxu0 0
        %2114 = vmatpush.bf16.msra.mxu0 %v1937
        %2115 = vmatpush.bf16.msra.mxu0 %v1925
        %2116 = vmatmul.bf16.gmra.mxu0 %v1963
        %v2117 = vpop.f32.mrf.mxu0
        %v2118 = vadd.f32 0.0, %v2117
        %v2119 = vpop.f32.mrf.mxu0
        %2120 = vdwg.mxu0
        %v2121 = vpack.c.bf16 %v1975, %v1975
        %v2122 = vpack.c.bf16 %v2027, %v2027
        %v2123 = vpack.c.bf16 %v2079, %v2079
        %v2125 = vsel %vm808, %v2121, 0
        %v2128 = vsel %vm808, %v2122, 0
        %2130 = vmatpush.bf16.xpose.msra.mxu0 0
        %2131 = vmatpush.bf16.xpose.msra.mxu0 0
        %2132 = vmatpush.bf16.xpose.msra.mxu0 0
        %2133 = vmatpush.bf16.xpose.msra.mxu0 0
        %2134 = vmatpush.bf16.xpose.msra.mxu0 0
        %2135 = vmatpush.bf16.xpose.msra.mxu0 0
        %2136 = vmatpush.bf16.xpose.msra.mxu0 0
        %2137 = vmatpush.bf16.xpose.msra.mxu0 %v2128
        %2138 = vmatmul.bf16.gmra.mxu0 %v2125
        %v2139 = vpop.f32.mrf.mxu0
        %v2140 = vadd.f32 0.0, %v2139
        %v2141 = vpop.f32.mrf.mxu0
        %2142 = vdwg.mxu0
        %v2143 = vmul.f32 %v2140, 0.125
        %v2144 = vsel %vm829, %v2143, -inf
        %2145 = vmax.xlane.f32.xlu0 %v2144
        %v2146 = vpop.xlane.xlu0 %2145
        %v2147 = vsub.f32 %v2143, %v2146
        %v2148 = vmul.f32 %v2147, 1.442695
        %v2149 = vpow.pop %v2148
        %v2150 = vsel %vm829, %v2149, 0.0
        %2151 = vadd.xlane.f32.xlu0 %v2150
        %v2152 = vpop.xlane.xlu0 %2151
        %v2153 = vrcp.pop %v2152
        %v2154 = vmul.f32 %v2149, %v2153
        %v2155 = vpack.c.bf16 %v2154, %v2154
        %v2157 = vsel %vm829, %v2155, 0
        %v2160 = vsel %vm845, %v2123, 0
        %2162 = vmatpush.bf16.msra.mxu0 0
        %2163 = vmatpush.bf16.msra.mxu0 0
        %2164 = vmatpush.bf16.msra.mxu0 0
        %2165 = vmatpush.bf16.msra.mxu0 0
        %2166 = vmatpush.bf16.msra.mxu0 0
        %2167 = vmatpush.bf16.msra.mxu0 0
        %2168 = vmatpush.bf16.msra.mxu0 0
        %2169 = vmatpush.bf16.msra.mxu0 %v2160
        %2170 = vmatmul.bf16.gmra.mxu0 %v2157
        %v2171 = vpop.f32.mrf.mxu0
        %v2172 = vadd.f32 0.0, %v2171
        %v2173 = vpop.f32.mrf.mxu0
        %2174 = vdwg.mxu0
        %2176 = vrot.lane.b32.xlu0 %v2121, 64
        %v2177 = vpop.permute.xlu0 %2176
        %2179 = vrot.lane.b32.xlu0 %v2122, 64
        %v2180 = vpop.permute.xlu0 %2179
        %v2182 = vsel %vm808, %v2177, 0
        %v2185 = vsel %vm808, %v2180, 0
        %2187 = vmatpush.bf16.xpose.msra.mxu0 0
        %2188 = vmatpush.bf16.xpose.msra.mxu0 0
        %2189 = vmatpush.bf16.xpose.msra.mxu0 0
        %2190 = vmatpush.bf16.xpose.msra.mxu0 0
        %2191 = vmatpush.bf16.xpose.msra.mxu0 0
        %2192 = vmatpush.bf16.xpose.msra.mxu0 0
        %2193 = vmatpush.bf16.xpose.msra.mxu0 0
        %2194 = vmatpush.bf16.xpose.msra.mxu0 %v2185
        %2195 = vmatmul.bf16.gmra.mxu0 %v2182
        %v2196 = vpop.f32.mrf.mxu0
        %v2197 = vadd.f32 0.0, %v2196
        %v2198 = vpop.f32.mrf.mxu0
        %2199 = vdwg.mxu0
        %v2200 = vmul.f32 %v2197, 0.125
        %v2201 = vsel %vm829, %v2200, -inf
        %2202 = vmax.xlane.f32.xlu0 %v2201
        %v2203 = vpop.xlane.xlu0 %2202
        %v2204 = vsub.f32 %v2200, %v2203
        %v2205 = vmul.f32 %v2204, 1.442695
        %v2206 = vpow.pop %v2205
        %v2207 = vsel %vm829, %v2206, 0.0
        %2208 = vadd.xlane.f32.xlu0 %v2207
        %v2209 = vpop.xlane.xlu0 %2208
        %v2210 = vrcp.pop %v2209
        %v2211 = vmul.f32 %v2206, %v2210
        %v2212 = vpack.c.bf16 %v2211, %v2211
        %2214 = vrot.lane.b32.xlu0 %v2123, 64
        %v2215 = vpop.permute.xlu0 %2214
        %v2217 = vsel %vm829, %v2212, 0
        %v2220 = vsel %vm845, %v2215, 0
        %2222 = vmatpush.bf16.msra.mxu0 0
        %2223 = vmatpush.bf16.msra.mxu0 0
        %2224 = vmatpush.bf16.msra.mxu0 0
        %2225 = vmatpush.bf16.msra.mxu0 0
        %2226 = vmatpush.bf16.msra.mxu0 0
        %2227 = vmatpush.bf16.msra.mxu0 0
        %2228 = vmatpush.bf16.msra.mxu0 0
        %2229 = vmatpush.bf16.msra.mxu0 %v2220
        %2230 = vmatmul.bf16.gmra.mxu0 %v2217
        %v2231 = vpop.f32.mrf.mxu0
        %v2232 = vadd.f32 0.0, %v2231
        %v2233 = vpop.f32.mrf.mxu0
        %2234 = vdwg.mxu0
        %v2235 = vpack.c.bf16 %v1988, %v1988
        %v2236 = vpack.c.bf16 %v2040, %v2040
        %v2237 = vpack.c.bf16 %v2092, %v2092
        %v2239 = vsel %vm808, %v2235, 0
        %v2242 = vsel %vm808, %v2236, 0
        %2244 = vmatpush.bf16.xpose.msra.mxu0 0
        %2245 = vmatpush.bf16.xpose.msra.mxu0 0
        %2246 = vmatpush.bf16.xpose.msra.mxu0 0
        %2247 = vmatpush.bf16.xpose.msra.mxu0 0
        %2248 = vmatpush.bf16.xpose.msra.mxu0 0
        %2249 = vmatpush.bf16.xpose.msra.mxu0 0
        %2250 = vmatpush.bf16.xpose.msra.mxu0 0
        %2251 = vmatpush.bf16.xpose.msra.mxu0 %v2242
        %2252 = vmatmul.bf16.gmra.mxu0 %v2239
        %v2253 = vpop.f32.mrf.mxu0
        %v2254 = vadd.f32 0.0, %v2253
        %v2255 = vpop.f32.mrf.mxu0
        %2256 = vdwg.mxu0
        %v2257 = vmul.f32 %v2254, 0.125
        %v2258 = vsel %vm829, %v2257, -inf
        %2259 = vmax.xlane.f32.xlu0 %v2258
        %v2260 = vpop.xlane.xlu0 %2259
        %v2261 = vsub.f32 %v2257, %v2260
        %v2262 = vmul.f32 %v2261, 1.442695
        %v2263 = vpow.pop %v2262
        %v2264 = vsel %vm829, %v2263, 0.0
        %2265 = vadd.xlane.f32.xlu0 %v2264
        %v2266 = vpop.xlane.xlu0 %2265
        %v2267 = vrcp.pop %v2266
        %v2268 = vmul.f32 %v2263, %v2267
        %v2269 = vpack.c.bf16 %v2268, %v2268
        %v2271 = vsel %vm829, %v2269, 0
        %v2274 = vsel %vm845, %v2237, 0
        %2276 = vmatpush.bf16.msra.mxu0 0
        %2277 = vmatpush.bf16.msra.mxu0 0
        %2278 = vmatpush.bf16.msra.mxu0 0
        %2279 = vmatpush.bf16.msra.mxu0 0
        %2280 = vmatpush.bf16.msra.mxu0 0
        %2281 = vmatpush.bf16.msra.mxu0 0
        %2282 = vmatpush.bf16.msra.mxu0 0
        %2283 = vmatpush.bf16.msra.mxu0 %v2274
        %2284 = vmatmul.bf16.gmra.mxu0 %v2271
        %v2285 = vpop.f32.mrf.mxu0
        %v2286 = vadd.f32 0.0, %v2285
        %v2287 = vpop.f32.mrf.mxu0
        %2288 = vdwg.mxu0
        %2290 = vrot.lane.b32.xlu0 %v2235, 64
        %v2291 = vpop.permute.xlu0 %2290
        %2293 = vrot.lane.b32.xlu0 %v2236, 64
        %v2294 = vpop.permute.xlu0 %2293
        %v2296 = vsel %vm808, %v2291, 0
        %v2299 = vsel %vm808, %v2294, 0
        %2301 = vmatpush.bf16.xpose.msra.mxu0 0
        %2302 = vmatpush.bf16.xpose.msra.mxu0 0
        %2303 = vmatpush.bf16.xpose.msra.mxu0 0
        %2304 = vmatpush.bf16.xpose.msra.mxu0 0
        %2305 = vmatpush.bf16.xpose.msra.mxu0 0
        %2306 = vmatpush.bf16.xpose.msra.mxu0 0
        %2307 = vmatpush.bf16.xpose.msra.mxu0 0
        %2308 = vmatpush.bf16.xpose.msra.mxu0 %v2299
        %2309 = vmatmul.bf16.gmra.mxu0 %v2296
        %v2310 = vpop.f32.mrf.mxu0
        %v2311 = vadd.f32 0.0, %v2310
        %v2312 = vpop.f32.mrf.mxu0
        %2313 = vdwg.mxu0
        %v2314 = vmul.f32 %v2311, 0.125
        %v2315 = vsel %vm829, %v2314, -inf
        %2316 = vmax.xlane.f32.xlu0 %v2315
        %v2317 = vpop.xlane.xlu0 %2316
        %v2318 = vsub.f32 %v2314, %v2317
        %v2319 = vmul.f32 %v2318, 1.442695
        %v2320 = vpow.pop %v2319
        %v2321 = vsel %vm829, %v2320, 0.0
        %2322 = vadd.xlane.f32.xlu0 %v2321
        %v2323 = vpop.xlane.xlu0 %2322
        %v2324 = vrcp.pop %v2323
        %v2325 = vmul.f32 %v2320, %v2324
        %v2326 = vpack.c.bf16 %v2325, %v2325
        %2328 = vrot.lane.b32.xlu0 %v2237, 64
        %v2329 = vpop.permute.xlu0 %2328
        %v2331 = vsel %vm829, %v2326, 0
        %v2334 = vsel %vm845, %v2329, 0
        %2336 = vmatpush.bf16.msra.mxu0 0
        %2337 = vmatpush.bf16.msra.mxu0 0
        %2338 = vmatpush.bf16.msra.mxu0 0
        %2339 = vmatpush.bf16.msra.mxu0 0
        %2340 = vmatpush.bf16.msra.mxu0 0
        %2341 = vmatpush.bf16.msra.mxu0 0
        %2342 = vmatpush.bf16.msra.mxu0 0
        %2343 = vmatpush.bf16.msra.mxu0 %v2334
        %2344 = vmatmul.bf16.gmra.mxu0 %v2331
        %v2345 = vpop.f32.mrf.mxu0
        %v2346 = vadd.f32 0.0, %v2345
        %v2347 = vpop.f32.mrf.mxu0
        %2348 = vdwg.mxu0
        %v2349 = vpack.c.bf16 %v2001, %v2001
        %v2350 = vpack.c.bf16 %v2053, %v2053
        %v2351 = vpack.c.bf16 %v2105, %v2105
        %v2353 = vsel %vm808, %v2349, 0
        %v2356 = vsel %vm808, %v2350, 0
        %2358 = vmatpush.bf16.xpose.msra.mxu0 0
        %2359 = vmatpush.bf16.xpose.msra.mxu0 0
        %2360 = vmatpush.bf16.xpose.msra.mxu0 0
        %2361 = vmatpush.bf16.xpose.msra.mxu0 0
        %2362 = vmatpush.bf16.xpose.msra.mxu0 0
        %2363 = vmatpush.bf16.xpose.msra.mxu0 0
        %2364 = vmatpush.bf16.xpose.msra.mxu0 0
        %2365 = vmatpush.bf16.xpose.msra.mxu0 %v2356
        %2366 = vmatmul.bf16.gmra.mxu0 %v2353
        %v2367 = vpop.f32.mrf.mxu0
        %v2368 = vadd.f32 0.0, %v2367
        %v2369 = vpop.f32.mrf.mxu0
        %2370 = vdwg.mxu0
        %v2371 = vmul.f32 %v2368, 0.125
        %v2372 = vsel %vm829, %v2371, -inf
        %2373 = vmax.xlane.f32.xlu0 %v2372
        %v2374 = vpop.xlane.xlu0 %2373
        %v2375 = vsub.f32 %v2371, %v2374
        %v2376 = vmul.f32 %v2375, 1.442695
        %v2377 = vpow.pop %v2376
        %v2378 = vsel %vm829, %v2377, 0.0
        %2379 = vadd.xlane.f32.xlu0 %v2378
        %v2380 = vpop.xlane.xlu0 %2379
        %v2381 = vrcp.pop %v2380
        %v2382 = vmul.f32 %v2377, %v2381
        %v2383 = vpack.c.bf16 %v2382, %v2382
        %v2385 = vsel %vm829, %v2383, 0
        %v2388 = vsel %vm845, %v2351, 0
        %2390 = vmatpush.bf16.msra.mxu0 0
        %2391 = vmatpush.bf16.msra.mxu0 0
        %2392 = vmatpush.bf16.msra.mxu0 0
        %2393 = vmatpush.bf16.msra.mxu0 0
        %2394 = vmatpush.bf16.msra.mxu0 0
        %2395 = vmatpush.bf16.msra.mxu0 0
        %2396 = vmatpush.bf16.msra.mxu0 0
        %2397 = vmatpush.bf16.msra.mxu0 %v2388
        %2398 = vmatmul.bf16.gmra.mxu0 %v2385
        %v2399 = vpop.f32.mrf.mxu0
        %v2400 = vadd.f32 0.0, %v2399
        %v2401 = vpop.f32.mrf.mxu0
        %2402 = vdwg.mxu0
        %2404 = vrot.lane.b32.xlu0 %v2349, 64
        %v2405 = vpop.permute.xlu0 %2404
        %2407 = vrot.lane.b32.xlu0 %v2350, 64
        %v2408 = vpop.permute.xlu0 %2407
        %v2410 = vsel %vm808, %v2405, 0
        %v2413 = vsel %vm808, %v2408, 0
        %2415 = vmatpush.bf16.xpose.msra.mxu0 0
        %2416 = vmatpush.bf16.xpose.msra.mxu0 0
        %2417 = vmatpush.bf16.xpose.msra.mxu0 0
        %2418 = vmatpush.bf16.xpose.msra.mxu0 0
        %2419 = vmatpush.bf16.xpose.msra.mxu0 0
        %2420 = vmatpush.bf16.xpose.msra.mxu0 0
        %2421 = vmatpush.bf16.xpose.msra.mxu0 0
        %2422 = vmatpush.bf16.xpose.msra.mxu0 %v2413
        %2423 = vmatmul.bf16.gmra.mxu0 %v2410
        %v2424 = vpop.f32.mrf.mxu0
        %v2425 = vadd.f32 0.0, %v2424
        %v2426 = vpop.f32.mrf.mxu0
        %2427 = vdwg.mxu0
        %v2428 = vmul.f32 %v2425, 0.125
        %v2429 = vsel %vm829, %v2428, -inf
        %2430 = vmax.xlane.f32.xlu0 %v2429
        %v2431 = vpop.xlane.xlu0 %2430
        %v2432 = vsub.f32 %v2428, %v2431
        %v2433 = vmul.f32 %v2432, 1.442695
        %v2434 = vpow.pop %v2433
        %v2435 = vsel %vm829, %v2434, 0.0
        %2436 = vadd.xlane.f32.xlu0 %v2435
        %v2437 = vpop.xlane.xlu0 %2436
        %v2438 = vrcp.pop %v2437
        %v2439 = vmul.f32 %v2434, %v2438
        %v2440 = vpack.c.bf16 %v2439, %v2439
        %2442 = vrot.lane.b32.xlu0 %v2351, 64
        %v2443 = vpop.permute.xlu0 %2442
        %v2445 = vsel %vm829, %v2440, 0
        %v2448 = vsel %vm845, %v2443, 0
        %2450 = vmatpush.bf16.msra.mxu0 0
        %2451 = vmatpush.bf16.msra.mxu0 0
        %2452 = vmatpush.bf16.msra.mxu0 0
        %2453 = vmatpush.bf16.msra.mxu0 0
        %2454 = vmatpush.bf16.msra.mxu0 0
        %2455 = vmatpush.bf16.msra.mxu0 0
        %2456 = vmatpush.bf16.msra.mxu0 0
        %2457 = vmatpush.bf16.msra.mxu0 %v2448
        %2458 = vmatmul.bf16.gmra.mxu0 %v2445
        %v2459 = vpop.f32.mrf.mxu0
        %v2460 = vadd.f32 0.0, %v2459
        %v2461 = vpop.f32.mrf.mxu0
        %2462 = vdwg.mxu0
        %v2463 = vpack.c.bf16 %v2014, %v2014
        %v2464 = vpack.c.bf16 %v2066, %v2066
        %v2465 = vpack.c.bf16 %v2118, %v2118
        %v2467 = vsel %vm808, %v2463, 0
        %v2470 = vsel %vm808, %v2464, 0
        %2472 = vmatpush.bf16.xpose.msra.mxu0 0
        %2473 = vmatpush.bf16.xpose.msra.mxu0 0
        %2474 = vmatpush.bf16.xpose.msra.mxu0 0
        %2475 = vmatpush.bf16.xpose.msra.mxu0 0
        %2476 = vmatpush.bf16.xpose.msra.mxu0 0
        %2477 = vmatpush.bf16.xpose.msra.mxu0 0
        %2478 = vmatpush.bf16.xpose.msra.mxu0 0
        %2479 = vmatpush.bf16.xpose.msra.mxu0 %v2470
        %2480 = vmatmul.bf16.gmra.mxu0 %v2467
        %v2481 = vpop.f32.mrf.mxu0
        %v2482 = vadd.f32 0.0, %v2481
        %v2483 = vpop.f32.mrf.mxu0
        %2484 = vdwg.mxu0
        %v2485 = vmul.f32 %v2482, 0.125
        %v2486 = vsel %vm829, %v2485, -inf
        %2487 = vmax.xlane.f32.xlu0 %v2486
        %v2488 = vpop.xlane.xlu0 %2487
        %v2489 = vsub.f32 %v2485, %v2488
        %v2490 = vmul.f32 %v2489, 1.442695
        %v2491 = vpow.pop %v2490
        %v2492 = vsel %vm829, %v2491, 0.0
        %2493 = vadd.xlane.f32.xlu0 %v2492
        %v2494 = vpop.xlane.xlu0 %2493
        %v2495 = vrcp.pop %v2494
        %v2496 = vmul.f32 %v2491, %v2495
        %v2497 = vpack.c.bf16 %v2496, %v2496
        %v2499 = vsel %vm829, %v2497, 0
        %v2502 = vsel %vm845, %v2465, 0
        %2504 = vmatpush.bf16.msra.mxu0 0
        %2505 = vmatpush.bf16.msra.mxu0 0
        %2506 = vmatpush.bf16.msra.mxu0 0
        %2507 = vmatpush.bf16.msra.mxu0 0
        %2508 = vmatpush.bf16.msra.mxu0 0
        %2509 = vmatpush.bf16.msra.mxu0 0
        %2510 = vmatpush.bf16.msra.mxu0 0
        %2511 = vmatpush.bf16.msra.mxu0 %v2502
        %2512 = vmatmul.bf16.gmra.mxu0 %v2499
        %v2513 = vpop.f32.mrf.mxu0
        %v2514 = vadd.f32 0.0, %v2513
        %v2515 = vpop.f32.mrf.mxu0
        %2516 = vdwg.mxu0
        %2518 = vrot.lane.b32.xlu0 %v2463, 64
        %v2519 = vpop.permute.xlu0 %2518
        %2521 = vrot.lane.b32.xlu0 %v2464, 64
        %v2522 = vpop.permute.xlu0 %2521
        %v2524 = vsel %vm808, %v2519, 0
        %v2527 = vsel %vm808, %v2522, 0
        %2529 = vmatpush.bf16.xpose.msra.mxu0 0
        %2530 = vmatpush.bf16.xpose.msra.mxu0 0
        %2531 = vmatpush.bf16.xpose.msra.mxu0 0
        %2532 = vmatpush.bf16.xpose.msra.mxu0 0
        %2533 = vmatpush.bf16.xpose.msra.mxu0 0
        %2534 = vmatpush.bf16.xpose.msra.mxu0 0
        %2535 = vmatpush.bf16.xpose.msra.mxu0 0
        %2536 = vmatpush.bf16.xpose.msra.mxu0 %v2527
        %2537 = vmatmul.bf16.gmra.mxu0 %v2524
        %v2538 = vpop.f32.mrf.mxu0
        %v2539 = vadd.f32 0.0, %v2538
        %v2540 = vpop.f32.mrf.mxu0
        %2541 = vdwg.mxu0
        %v2542 = vmul.f32 %v2539, 0.125
        %v2543 = vsel %vm829, %v2542, -inf
        %2544 = vmax.xlane.f32.xlu0 %v2543
        %v2545 = vpop.xlane.xlu0 %2544
        %v2546 = vsub.f32 %v2542, %v2545
        %v2547 = vmul.f32 %v2546, 1.442695
        %v2548 = vpow.pop %v2547
        %v2549 = vsel %vm829, %v2548, 0.0
        %2550 = vadd.xlane.f32.xlu0 %v2549
        %v2551 = vpop.xlane.xlu0 %2550
        %v2552 = vrcp.pop %v2551
        %v2553 = vmul.f32 %v2548, %v2552
        %v2554 = vpack.c.bf16 %v2553, %v2553
        %2556 = vrot.lane.b32.xlu0 %v2465, 64
        %v2557 = vpop.permute.xlu0 %2556
        %v2559 = vsel %vm829, %v2554, 0
        %v2562 = vsel %vm845, %v2557, 0
        %2564 = vmatpush.bf16.msra.mxu0 0
        %2565 = vmatpush.bf16.msra.mxu0 0
        %2566 = vmatpush.bf16.msra.mxu0 0
        %2567 = vmatpush.bf16.msra.mxu0 0
        %2568 = vmatpush.bf16.msra.mxu0 0
        %2569 = vmatpush.bf16.msra.mxu0 0
        %2570 = vmatpush.bf16.msra.mxu0 0
        %2571 = vmatpush.bf16.msra.mxu0 %v2562
        %2572 = vmatmul.bf16.gmra.mxu0 %v2559
        %v2573 = vpop.f32.mrf.mxu0
        %v2574 = vadd.f32 0.0, %v2573
        %v2575 = vpop.f32.mrf.mxu0
        %2576 = vdwg.mxu0
        %2578 = vrot.lane.b32.xlu0 %v2232, 64
        %v2579 = vpop.permute.xlu0 %2578
        %2582 = vrot.lane.b32.xlu0 %v2346, 64
        %v2583 = vpop.permute.xlu0 %2582
        %2586 = vrot.lane.b32.xlu0 %v2460, 64
        %v2587 = vpop.permute.xlu0 %2586
        %2590 = vrot.lane.b32.xlu0 %v2574, 64
        %v2591 = vpop.permute.xlu0 %2590
        %v2593 = vsel %vm808, %v2172, %v2579
        %v2594 = vsel %vm808, %v2286, %v2583
        %v2595 = vsel %vm808, %v2400, %v2587
        %v2596 = vsel %vm808, %v2514, %v2591
        %v2597 = vpack.c.bf16 %v2593, %v2593
        %v2598 = vpack.c.bf16 %v2594, %v2594
        %v2599 = vpack.c.bf16 %v2595, %v2595
        %v2600 = vpack.c.bf16 %v2596, %v2596
        %s2601 = scalar_lea.vmem %s4, 256
        %v2602 = vld [vmem:[%s2601] sm:$0xf]
        %v2603 = vld [vmem:[%s2601 + $0x4] sm:$0xf]
        %v2604 = vld [vmem:[%s2601 + $0x8] sm:$0xf]
        %v2605 = vld [vmem:[%s2601 + $0xc] sm:$0xf]
        %v2606 = vld [vmem:[%s2601 + $0x10] sm:$0xf]
        %v2607 = vld [vmem:[%s2601 + $0x14] sm:$0xf]
        %v2608 = vld [vmem:[%s2601 + $0x18] sm:$0xf]
        %v2609 = vld [vmem:[%s2601 + $0x1c] sm:$0xf]
        %v2610 = vld [vmem:[%s2601 + $0x20] sm:$0xf]
        %v2611 = vld [vmem:[%s2601 + $0x24] sm:$0xf]
        %v2612 = vld [vmem:[%s2601 + $0x28] sm:$0xf]
        %v2613 = vld [vmem:[%s2601 + $0x2c] sm:$0xf]
        %v2614 = vld [vmem:[%s2601 + $0x30] sm:$0xf]
        %v2615 = vld [vmem:[%s2601 + $0x34] sm:$0xf]
        %v2616 = vld [vmem:[%s2601 + $0x38] sm:$0xf]
        %v2617 = vld [vmem:[%s2601 + $0x3c] sm:$0xf]
        %v2618 = vld [vmem:[%s2601 + $0x40] sm:$0xf]
        %v2619 = vld [vmem:[%s2601 + $0x44] sm:$0xf]
        %v2620 = vld [vmem:[%s2601 + $0x48] sm:$0xf]
        %v2621 = vld [vmem:[%s2601 + $0x4c] sm:$0xf]
        %v2622 = vld [vmem:[%s2601 + $0x50] sm:$0xf]
        %v2623 = vld [vmem:[%s2601 + $0x54] sm:$0xf]
        %v2624 = vld [vmem:[%s2601 + $0x58] sm:$0xf]
        %v2625 = vld [vmem:[%s2601 + $0x5c] sm:$0xf]
        %v2626 = vld [vmem:[%s2601 + $0x60] sm:$0xf]
        %v2627 = vld [vmem:[%s2601 + $0x64] sm:$0xf]
        %v2628 = vld [vmem:[%s2601 + $0x68] sm:$0xf]
        %v2629 = vld [vmem:[%s2601 + $0x6c] sm:$0xf]
        %v2630 = vld [vmem:[%s2601 + $0x70] sm:$0xf]
        %v2631 = vld [vmem:[%s2601 + $0x74] sm:$0xf]
        %v2632 = vld [vmem:[%s2601 + $0x78] sm:$0xf]
        %v2633 = vld [vmem:[%s2601 + $0x7c] sm:$0xf]
        %v2634 = vld [vmem:[%s2601 + $0x80] sm:$0xf]
        %v2635 = vld [vmem:[%s2601 + $0x84] sm:$0xf]
        %v2636 = vld [vmem:[%s2601 + $0x88] sm:$0xf]
        %v2637 = vld [vmem:[%s2601 + $0x8c] sm:$0xf]
        %v2638 = vld [vmem:[%s2601 + $0x90] sm:$0xf]
        %v2639 = vld [vmem:[%s2601 + $0x94] sm:$0xf]
        %v2640 = vld [vmem:[%s2601 + $0x98] sm:$0xf]
        %v2641 = vld [vmem:[%s2601 + $0x9c] sm:$0xf]
        %v2642 = vld [vmem:[%s2601 + $0xa0] sm:$0xf]
        %v2643 = vld [vmem:[%s2601 + $0xa4] sm:$0xf]
        %v2644 = vld [vmem:[%s2601 + $0xa8] sm:$0xf]
        %v2645 = vld [vmem:[%s2601 + $0xac] sm:$0xf]
        %v2646 = vld [vmem:[%s2601 + $0xb0] sm:$0xf]
        %v2647 = vld [vmem:[%s2601 + $0xb4] sm:$0xf]
        %v2648 = vld [vmem:[%s2601 + $0xb8] sm:$0xf]
        %v2649 = vld [vmem:[%s2601 + $0xbc] sm:$0xf]
        %v2650 = vld [vmem:[%s2601 + $0xc0] sm:$0xf]
        %v2651 = vld [vmem:[%s2601 + $0xc4] sm:$0xf]
        %v2652 = vld [vmem:[%s2601 + $0xc8] sm:$0xf]
        %v2653 = vld [vmem:[%s2601 + $0xcc] sm:$0xf]
        %v2654 = vld [vmem:[%s2601 + $0xd0] sm:$0xf]
        %v2655 = vld [vmem:[%s2601 + $0xd4] sm:$0xf]
        %v2656 = vld [vmem:[%s2601 + $0xd8] sm:$0xf]
        %v2657 = vld [vmem:[%s2601 + $0xdc] sm:$0xf]
        %v2658 = vld [vmem:[%s2601 + $0xe0] sm:$0xf]
        %v2659 = vld [vmem:[%s2601 + $0xe4] sm:$0xf]
        %v2660 = vld [vmem:[%s2601 + $0xe8] sm:$0xf]
        %v2661 = vld [vmem:[%s2601 + $0xec] sm:$0xf]
        %v2662 = vld [vmem:[%s2601 + $0xf0] sm:$0xf]
        %v2663 = vld [vmem:[%s2601 + $0xf4] sm:$0xf]
        %v2664 = vld [vmem:[%s2601 + $0xf8] sm:$0xf]
        %v2665 = vld [vmem:[%s2601 + $0xfc] sm:$0xf]
        %v2730 = vunpack.c.l.b16 %v2602
        %v2731 = vunpack.c.l.b16 %v2603
        %v2732 = vunpack.c.l.b16 %v2604
        %v2733 = vunpack.c.l.b16 %v2605
        %v2734 = vunpack.c.l.b16 %v2606
        %v2735 = vunpack.c.l.b16 %v2607
        %v2736 = vunpack.c.l.b16 %v2608
        %v2737 = vunpack.c.l.b16 %v2609
        %v2738 = vunpack.c.l.b16 %v2610
        %v2739 = vunpack.c.l.b16 %v2611
        %v2740 = vunpack.c.l.b16 %v2612
        %v2741 = vunpack.c.l.b16 %v2613
        %v2742 = vunpack.c.l.b16 %v2614
        %v2743 = vunpack.c.l.b16 %v2615
        %v2744 = vunpack.c.l.b16 %v2616
        %v2745 = vunpack.c.l.b16 %v2617
        %v2746 = vunpack.c.l.b16 %v2618
        %v2747 = vunpack.c.l.b16 %v2619
        %v2748 = vunpack.c.l.b16 %v2620
        %v2749 = vunpack.c.l.b16 %v2621
        %v2750 = vunpack.c.l.b16 %v2622
        %v2751 = vunpack.c.l.b16 %v2623
        %v2752 = vunpack.c.l.b16 %v2624
        %v2753 = vunpack.c.l.b16 %v2625
        %v2754 = vunpack.c.l.b16 %v2626
        %v2755 = vunpack.c.l.b16 %v2627
        %v2756 = vunpack.c.l.b16 %v2628
        %v2757 = vunpack.c.l.b16 %v2629
        %v2758 = vunpack.c.l.b16 %v2630
        %v2759 = vunpack.c.l.b16 %v2631
        %v2760 = vunpack.c.l.b16 %v2632
        %v2761 = vunpack.c.l.b16 %v2633
        %v2762 = vunpack.c.l.b16 %v2634
        %v2763 = vunpack.c.l.b16 %v2635
        %v2764 = vunpack.c.l.b16 %v2636
        %v2765 = vunpack.c.l.b16 %v2637
        %v2766 = vunpack.c.l.b16 %v2638
        %v2767 = vunpack.c.l.b16 %v2639
        %v2768 = vunpack.c.l.b16 %v2640
        %v2769 = vunpack.c.l.b16 %v2641
        %v2770 = vunpack.c.l.b16 %v2642
        %v2771 = vunpack.c.l.b16 %v2643
        %v2772 = vunpack.c.l.b16 %v2644
        %v2773 = vunpack.c.l.b16 %v2645
        %v2774 = vunpack.c.l.b16 %v2646
        %v2775 = vunpack.c.l.b16 %v2647
        %v2776 = vunpack.c.l.b16 %v2648
        %v2777 = vunpack.c.l.b16 %v2649
        %v2778 = vunpack.c.l.b16 %v2650
        %v2779 = vunpack.c.l.b16 %v2651
        %v2780 = vunpack.c.l.b16 %v2652
        %v2781 = vunpack.c.l.b16 %v2653
        %v2782 = vunpack.c.l.b16 %v2654
        %v2783 = vunpack.c.l.b16 %v2655
        %v2784 = vunpack.c.l.b16 %v2656
        %v2785 = vunpack.c.l.b16 %v2657
        %v2786 = vunpack.c.l.b16 %v2658
        %v2787 = vunpack.c.l.b16 %v2659
        %v2788 = vunpack.c.l.b16 %v2660
        %v2789 = vunpack.c.l.b16 %v2661
        %v2790 = vunpack.c.l.b16 %v2662
        %v2791 = vunpack.c.l.b16 %v2663
        %v2792 = vunpack.c.l.b16 %v2664
        %v2793 = vunpack.c.l.b16 %v2665
        %v2794 = vpack.c.b16 %v2731, %v2730
        %v2795 = vpack.c.b16 %v2733, %v2732
        %v2796 = vpack.c.b16 %v2735, %v2734
        %v2797 = vpack.c.b16 %v2737, %v2736
        %v2798 = vpack.c.b16 %v2739, %v2738
        %v2799 = vpack.c.b16 %v2741, %v2740
        %v2800 = vpack.c.b16 %v2743, %v2742
        %v2801 = vpack.c.b16 %v2745, %v2744
        %v2802 = vpack.c.b16 %v2747, %v2746
        %v2803 = vpack.c.b16 %v2749, %v2748
        %v2804 = vpack.c.b16 %v2751, %v2750
        %v2805 = vpack.c.b16 %v2753, %v2752
        %v2806 = vpack.c.b16 %v2755, %v2754
        %v2807 = vpack.c.b16 %v2757, %v2756
        %v2808 = vpack.c.b16 %v2759, %v2758
        %v2809 = vpack.c.b16 %v2761, %v2760
        %v2810 = vpack.c.b16 %v2763, %v2762
        %v2811 = vpack.c.b16 %v2765, %v2764
        %v2812 = vpack.c.b16 %v2767, %v2766
        %v2813 = vpack.c.b16 %v2769, %v2768
        %v2814 = vpack.c.b16 %v2771, %v2770
        %v2815 = vpack.c.b16 %v2773, %v2772
        %v2816 = vpack.c.b16 %v2775, %v2774
        %v2817 = vpack.c.b16 %v2777, %v2776
        %v2818 = vpack.c.b16 %v2779, %v2778
        %v2819 = vpack.c.b16 %v2781, %v2780
        %v2820 = vpack.c.b16 %v2783, %v2782
        %v2821 = vpack.c.b16 %v2785, %v2784
        %v2822 = vpack.c.b16 %v2787, %v2786
        %v2823 = vpack.c.b16 %v2789, %v2788
        %v2824 = vpack.c.b16 %v2791, %v2790
        %v2825 = vpack.c.b16 %v2793, %v2792
        %2858 = vmatpush.bf16.msra.mxu0 %v2801
        %2859 = vmatpush.bf16.msra.mxu0 %v2800
        %2860 = vmatpush.bf16.msra.mxu0 %v2799
        %2861 = vmatpush.bf16.msra.mxu0 %v2798
        %2862 = vmatpush.bf16.msra.mxu0 %v2797
        %2863 = vmatpush.bf16.msra.mxu0 %v2796
        %2864 = vmatpush.bf16.msra.mxu0 %v2795
        %2865 = vmatpush.bf16.msra.mxu0 %v2794
        %2866 = vmatmul.bf16.gmra.mxu0 %v2597
        %v2867 = vpop.f32.mrf.mxu0
        %v2868 = vadd.f32 0.0, %v2867
        %v2869 = vpop.f32.mrf.mxu0
        %2870 = vdwg.mxu0
        %2871 = vmatpush.bf16.msra.mxu0 %v2809
        %2872 = vmatpush.bf16.msra.mxu0 %v2808
        %2873 = vmatpush.bf16.msra.mxu0 %v2807
        %2874 = vmatpush.bf16.msra.mxu0 %v2806
        %2875 = vmatpush.bf16.msra.mxu0 %v2805
        %2876 = vmatpush.bf16.msra.mxu0 %v2804
        %2877 = vmatpush.bf16.msra.mxu0 %v2803
        %2878 = vmatpush.bf16.msra.mxu0 %v2802
        %2879 = vmatmul.bf16.gmra.mxu0 %v2598
        %v2880 = vpop.f32.mrf.mxu0
        %v2881 = vadd.f32 %v2868, %v2880
        %v2882 = vpop.f32.mrf.mxu0
        %2883 = vdwg.mxu0
        %2884 = vmatpush.bf16.msra.mxu0 %v2817
        %2885 = vmatpush.bf16.msra.mxu0 %v2816
        %2886 = vmatpush.bf16.msra.mxu0 %v2815
        %2887 = vmatpush.bf16.msra.mxu0 %v2814
        %2888 = vmatpush.bf16.msra.mxu0 %v2813
        %2889 = vmatpush.bf16.msra.mxu0 %v2812
        %2890 = vmatpush.bf16.msra.mxu0 %v2811
        %2891 = vmatpush.bf16.msra.mxu0 %v2810
        %2892 = vmatmul.bf16.gmra.mxu0 %v2599
        %v2893 = vpop.f32.mrf.mxu0
        %v2894 = vadd.f32 %v2881, %v2893
        %v2895 = vpop.f32.mrf.mxu0
        %2896 = vdwg.mxu0
        %2897 = vmatpush.bf16.msra.mxu0 %v2825
        %2898 = vmatpush.bf16.msra.mxu0 %v2824
        %2899 = vmatpush.bf16.msra.mxu0 %v2823
        %2900 = vmatpush.bf16.msra.mxu0 %v2822
        %2901 = vmatpush.bf16.msra.mxu0 %v2821
        %2902 = vmatpush.bf16.msra.mxu0 %v2820
        %2903 = vmatpush.bf16.msra.mxu0 %v2819
        %2904 = vmatpush.bf16.msra.mxu0 %v2818
        %2905 = vmatmul.bf16.gmra.mxu0 %v2600
        %v2906 = vpop.f32.mrf.mxu0
        %v2907 = vadd.f32 %v2894, %v2906
        %v2908 = vpop.f32.mrf.mxu0
        %2909 = vdwg.mxu0
        %v2910 = vadd.f32 %v1787, %v2907
        %v2911 = vld [vmem:[%s5 + $0x1] sm:$0x1]
        %v2912 = vperm.slane %v2911, 0
        %v2913 = vadd.f32 %v2910, %v2912
        %v2914 = vld [vmem:[%s6 + $0x1] sm:$0x1]
        %v2915 = vld [vmem:[%s7 + $0x1] sm:$0x1]
        %v2916 = vsel %vm467, %v2913, 0.0
        %2917 = vadd.xlane.f32.xlu0 %v2916
        %v2918 = vpop.xlane.xlu0 %2917
        %v2919 = vmul.f32 %v2918, %v477
        %v2920 = vsub.f32 %v2913, %v2919
        %v2921 = vmul.f32 %v2920, %v2920
        %v2922 = vsel %vm467, %v2921, 0.0
        %2923 = vadd.xlane.f32.xlu0 %v2922
        %v2924 = vpop.xlane.xlu0 %2923
        %v2925 = vmul.f32 %v2924, %v477
        %v2926 = vadd.f32 %v2925, 1e-05
        %v2927 = vrsqrt.pop %v2926
        %v2928 = vmul.f32 %v2927, %v2926
        %v2929 = vmul.f32 %v2928, %v2927
        %v2930 = vmul.f32 0.5, %v2929
        %v2931 = vsub.f32 1.5, %v2930
        %v2932 = vmul.f32 %v2927, %v2931
        %vm2933 = vweird.f32 %v2926
        %vm2934 = vweird.f32 %v2927
        %vm2935 = vmor %vm2933, %vm2934
        %v2936 = vsel %vm2935, %v2927, %v2932
        %v2937 = vmul.f32 %v2920, %v2936
        %v2938 = vperm.slane %v2914, 0
        %v2939 = vmul.f32 %v2937, %v2938
        %v2940 = vperm.slane %v2915, 0
        %v2941 = vadd.f32 %v2939, %v2940
        %v2942 = vpack.c.bf16 %v2941, %v2941
        %s2943 = scalar_lea.vmem %s8, 16
        %v2944 = vld [vmem:[%s2943] sm:$0xf]
        %v2945 = vld [vmem:[%s2943 + $0x4] sm:$0xf]
        %v2946 = vld [vmem:[%s2943 + $0x8] sm:$0xf]
        %v2947 = vld [vmem:[%s2943 + $0xc] sm:$0xf]
        %v2948 = vld [vmem:[%s9 + $0x1] sm:$0x1]
        %v2949 = vperm.slane %v2948, 0
        %v2954 = vunpack.c.l.b16 %v2944
        %v2955 = vunpack.c.l.b16 %v2945
        %v2956 = vunpack.c.l.b16 %v2946
        %v2957 = vunpack.c.l.b16 %v2947
        %v2958 = vpack.c.b16 %v2955, %v2954
        %v2959 = vpack.c.b16 %v2957, %v2956
        %v2963 = vsel %vm467, %v2942, 0
        %2965 = vmatpush.bf16.msra.mxu0 0
        %2966 = vmatpush.bf16.msra.mxu0 0
        %2967 = vmatpush.bf16.msra.mxu0 0
        %2968 = vmatpush.bf16.msra.mxu0 0
        %2969 = vmatpush.bf16.msra.mxu0 0
        %2970 = vmatpush.bf16.msra.mxu0 0
        %2971 = vmatpush.bf16.msra.mxu0 %v2959
        %2972 = vmatpush.bf16.msra.mxu0 %v2958
        %2973 = vmatmul.bf16.gmra.mxu0 %v2963
        %v2974 = vpop.f32.mrf.mxu0
        %v2975 = vadd.f32 %v2949, %v2974
        %v2976 = vpop.f32.mrf.mxu0
        %2977 = vdwg.mxu0
        %v2978 = vmul.f32 %v2975, 0.5
        %v2979 = vmul.f32 %v2975, 0.70710677
        %v2980 = vmul.f32 %v2979, %v2979
        %v2981 = vmin.f32 16.0, %v2980
        %v2982 = vmul.f32 %v2981, 2.1237322e-06
        %v2983 = vadd.f32 %v2982, 0.00028619796
        %v2984 = vmul.f32 %v2981, %v2983
        %v2985 = vadd.f32 %v2984, 0.0036580483
        %v2986 = vmul.f32 %v2981, %v2985
        %v2987 = vadd.f32 %v2986, 0.05243302
        %v2988 = vmul.f32 %v2981, %v2987
        %v2989 = vadd.f32 %v2988, 0.18741608
        %v2990 = vmul.f32 %v2981, %v2989
        %v2991 = vadd.f32 %v2990, 1.1283791
        %v2992 = vmul.f32 %v2979, %v2991
        %v2993 = vmul.f32 %v2981, 3.8918573e-05
        %v2994 = vadd.f32 %v2993, 0.001143296
        %v2995 = vmul.f32 %v2981, %v2994
        %v2996 = vadd.f32 %v2995, 0.014752088
        %v2997 = vmul.f32 %v2981, %v2996
        %v2998 = vadd.f32 %v2997, 0.112945676
        %v2999 = vmul.f32 %v2981, %v2998
        %v3000 = vadd.f32 %v2999, 0.4994258
        %v3001 = vmul.f32 %v2981, %v3000
        %v3002 = vadd.f32 %v3001, 1.0
        %v3003 = vrcp.pop %v3002
        %v3004 = vmul.f32 %v3002, %v3003
        %v3005 = vsub.f32 1.0, %v3004
        %v3006 = vmul.f32 %v3003, %v3005
        %v3007 = vadd.f32 %v3003, %v3006
        %vm3008 = vweird.f32 %v3002
        %vm3009 = vweird.f32 %v3003
        %vm3010 = vmor %vm3008, %vm3009
        %v3011 = vsel %vm3010, %v3003, %v3007
        %v3012 = vand.u32 2147483647, %v3002
        %vm3013 = vcmp.eq.f32.partialorder %v3012, 8.507059e+37
        %v3014 = vand.u32 %v3002, 2147483648
        %v3015 = vor.u32 1.1754944e-38, %v3014
        %v3016 = vsel %vm3013, %v3015, %v3011
        %v3017 = vmul.f32 %v2992, %v3016
        %v3018 = vmin.f32 %v3017, 1.0
        %v3019 = vmax.f32 %v3018, -1.0
        %v3020 = vadd.f32 %v3019, 1.0
        %v3021 = vmul.f32 %v2978, %v3020
        %v3022 = vpack.c.bf16 %v3021, %v3021
        %s3023 = scalar_lea.vmem %s10, 64
        %v3024 = vld [vmem:[%s3023] sm:$0xf]
        %v3025 = vld [vmem:[%s3023 + $0x4] sm:$0xf]
        %v3026 = vld [vmem:[%s3023 + $0x8] sm:$0xf]
        %v3027 = vld [vmem:[%s3023 + $0xc] sm:$0xf]
        %v3028 = vld [vmem:[%s3023 + $0x10] sm:$0xf]
        %v3029 = vld [vmem:[%s3023 + $0x14] sm:$0xf]
        %v3030 = vld [vmem:[%s3023 + $0x18] sm:$0xf]
        %v3031 = vld [vmem:[%s3023 + $0x1c] sm:$0xf]
        %v3032 = vld [vmem:[%s3023 + $0x20] sm:$0xf]
        %v3033 = vld [vmem:[%s3023 + $0x24] sm:$0xf]
        %v3034 = vld [vmem:[%s3023 + $0x28] sm:$0xf]
        %v3035 = vld [vmem:[%s3023 + $0x2c] sm:$0xf]
        %v3036 = vld [vmem:[%s3023 + $0x30] sm:$0xf]
        %v3037 = vld [vmem:[%s3023 + $0x34] sm:$0xf]
        %v3038 = vld [vmem:[%s3023 + $0x38] sm:$0xf]
        %v3039 = vld [vmem:[%s3023 + $0x3c] sm:$0xf]
        %v3040 = vld [vmem:[%s11 + $0x1] sm:$0x1]
        %v3041 = vperm.slane %v3040, 0
        %v3058 = vunpack.c.l.b16 %v3024
        %v3059 = vunpack.c.l.b16 %v3025
        %v3060 = vunpack.c.l.b16 %v3026
        %v3061 = vunpack.c.l.b16 %v3027
        %v3062 = vunpack.c.l.b16 %v3028
        %v3063 = vunpack.c.l.b16 %v3029
        %v3064 = vunpack.c.l.b16 %v3030
        %v3065 = vunpack.c.l.b16 %v3031
        %v3066 = vunpack.c.l.b16 %v3032
        %v3067 = vunpack.c.l.b16 %v3033
        %v3068 = vunpack.c.l.b16 %v3034
        %v3069 = vunpack.c.l.b16 %v3035
        %v3070 = vunpack.c.l.b16 %v3036
        %v3071 = vunpack.c.l.b16 %v3037
        %v3072 = vunpack.c.l.b16 %v3038
        %v3073 = vunpack.c.l.b16 %v3039
        %v3074 = vpack.c.b16 %v3059, %v3058
        %v3075 = vpack.c.b16 %v3061, %v3060
        %v3076 = vpack.c.b16 %v3063, %v3062
        %v3077 = vpack.c.b16 %v3065, %v3064
        %v3078 = vpack.c.b16 %v3067, %v3066
        %v3079 = vpack.c.b16 %v3069, %v3068
        %v3080 = vpack.c.b16 %v3071, %v3070
        %v3081 = vpack.c.b16 %v3073, %v3072
        %3090 = vmatpush.bf16.msra.mxu0 %v3081
        %3091 = vmatpush.bf16.msra.mxu0 %v3080
        %3092 = vmatpush.bf16.msra.mxu0 %v3079
        %3093 = vmatpush.bf16.msra.mxu0 %v3078
        %3094 = vmatpush.bf16.msra.mxu0 %v3077
        %3095 = vmatpush.bf16.msra.mxu0 %v3076
        %3096 = vmatpush.bf16.msra.mxu0 %v3075
        %3097 = vmatpush.bf16.msra.mxu0 %v3074
        %3098 = vmatmul.bf16.gmra.mxu0 %v3022
        %v3099 = vpop.f32.mrf.mxu0
        %v3100 = vadd.f32 %v3041, %v3099
        %v3101 = vpop.f32.mrf.mxu0
        %3102 = vdwg.mxu0
        %v3103 = vadd.f32 %v2913, %v3100
        %v3104 = vld [vmem:[%s12] sm:$0x1]
        %v3105 = vld [vmem:[%s13] sm:$0x1]
        %v3106 = vsel %vm467, %v3103, 0.0
        %3107 = vadd.xlane.f32.xlu0 %v3106
        %v3108 = vpop.xlane.xlu0 %3107
        %v3109 = vmul.f32 %v3108, %v477
        %v3110 = vsub.f32 %v3103, %v3109
        %v3111 = vmul.f32 %v3110, %v3110
        %v3112 = vsel %vm467, %v3111, 0.0
        %3113 = vadd.xlane.f32.xlu0 %v3112
        %v3114 = vpop.xlane.xlu0 %3113
        %v3115 = vmul.f32 %v3114, %v477
        %v3116 = vadd.f32 %v3115, 1e-05
        %v3117 = vrsqrt.pop %v3116
        %v3118 = vmul.f32 %v3117, %v3116
        %v3119 = vmul.f32 %v3118, %v3117
        %v3120 = vmul.f32 0.5, %v3119
        %v3121 = vsub.f32 1.5, %v3120
        %v3122 = vmul.f32 %v3117, %v3121
        %vm3123 = vweird.f32 %v3116
        %vm3124 = vweird.f32 %v3117
        %vm3125 = vmor %vm3123, %vm3124
        %v3126 = vsel %vm3125, %v3117, %v3122
        %v3127 = vmul.f32 %v3110, %v3126
        %v3129 = vperm.slane %v3104, 0
        %v3131 = vmul.f32 %v3127, %v3129
        %v3133 = vperm.slane %v3105, 0
        %v3135 = vadd.f32 %v3131, %v3133
        %3136 = vst.msk [vmem:[%s458] sm:$0xff] %vm467, %v3135
        %s3137 = sand.u32 %s335, 1
        %s3138 = scalar_lea.sflag [#allocation3], %s3137
        %s3139 = sand.u32 %s335, 1
        %s3140 = smul.addr %s3139, 8
        %s3141 = scalar_lea.vmem [#allocation2], %s3140
        // Predicated region
        $region77: #{tpu_custom_call.1} parent=75 // pred_check
          %p3142 = pneg %p345
        $region78: #{tpu_custom_call.1} parent=75 // pred_check_branch
          %3144 = sbr.rel (%p3142) target = $region80
        $region79: #{tpu_custom_call.1} parent=75 // pred_region
          %3146 = vsyncadd %s3138, 0
          %s3147 = smul.addr %s28, 8
          %s3148 = scalar_lea.hbm %s14, %s3147
          %s3150 = sshll.u32 %s3141, 4
          %s3151 = int_to_ptr.vmem [resolvable:$true] %s3150
          %s3152 = sshll.u32 %s3148, 4
          %s3153 = int_to_ptr.hbm [resolvable:$true] %s3152
          %3155 = dma.vmem_to_hbm [thread:$0]  %s3151, 128, %s3153, %s3138
        $region80: #{tpu_custom_call.1} parent=75 // pred_fallthru
          _
      $region76: #{tpu_custom_call.1} parent=5 // pred_fallthru
        _
      %p3156 = scmp.le.s32.totalorder 2, %s23
      // Predicated region
      $region81: #{tpu_custom_call.1} parent=5 // pred_check
        %p3157 = pneg %p3156
      $region82: #{tpu_custom_call.1} parent=5 // pred_check_branch
        %3159 = sbr.rel (%p3157) target = $region84
      $region83: #{tpu_custom_call.1} parent=5 // pred_region
        %s3160 = ssub.s32 %s23, 2
        // Predicated region
        $region85: #{tpu_custom_call.1} parent=83 // pred_check
          %p3161 = pneg %p351
        $region86: #{tpu_custom_call.1} parent=83 // pred_check_branch
          %3163 = sbr.rel (%p3161) target = $region88
        $region87: #{tpu_custom_call.1} parent=83 // pred_region
          %s3164 = sand.u32 %s336, 1
          %s3165 = scalar_lea.sflag [#allocation3], %s3164
          %s3166 = sand.u32 %s336, 1
          %s3167 = smul.addr %s3166, 8
          %s3168 = scalar_lea.vmem [#allocation2], %s3167
          %3170 = dma.done %s3165, 128
        $region88: #{tpu_custom_call.1} parent=83 // pred_fallthru
          _
      $region84: #{tpu_custom_call.1} parent=5 // pred_fallthru
        _
    $region6: #{tpu_custom_call.1} parent=1 // loop_footer
      %s27 = sadd.s32 1, %s23
    $region7: #{tpu_custom_call.1} parent=1 // loop_footer_branch
      %22 = sbr.rel target = $region3
    $region8: #{tpu_custom_call.1} parent=1 // loop_exit
      _
    %3171 = vsyncpa [#allocation3], 1
    %s3172 = scalar_lea.sflag [#allocation3], 1
    %3173 = vsyncpa %s3172, 1

</llo_original>
